<compile_context>
chip_gen: v6e
topology: v6e:2x2x1
jax: 0.10.0
libtpu: 0.0.40
codegen_flags: <defaults>
</compile_context>

<pallas_src>
import functools

import numpy as np
import jax
import jax.numpy as jnp
from jax import lax
from jax.experimental import pallas as pl
from jax.experimental.pallas import tpu as pltpu

LANE = 128


def _ceil_to(x, m):
    return ((x + m - 1) // m) * m


# ----------------------------------------------------------------------------
# Conv (one im2col matmul) + BN partial-statistics kernel.
#   cols:(M, KP) @ wcol:(KP, CP) -> y:(M, CP)
#   stats: per row-tile [sum_rows(y); sum_rows(y*y)] for BatchNorm.
# ----------------------------------------------------------------------------
def _conv_stats_kernel(cols_ref, w_ref, y_ref, stats_ref):
    y = jnp.dot(cols_ref[...], w_ref[...], preferred_element_type=jnp.float32)
    y_ref[...] = y
    cp = y.shape[1]
    sums = jnp.sum(y, axis=0, keepdims=True)
    sqs = jnp.sum(y * y, axis=0, keepdims=True)
    pad = jnp.zeros((6, cp), jnp.float32)
    stats_ref[...] = jnp.concatenate([sums, sqs, pad], axis=0)[None]


def conv_matmul_stats(cols, wcol, tile_m):
    M, KP = cols.shape
    CP = wcol.shape[1]
    n_t = M // tile_m
    return pl.pallas_call(
        _conv_stats_kernel,
        out_shape=(jax.ShapeDtypeStruct((M, CP), jnp.float32),
                   jax.ShapeDtypeStruct((n_t, 8, CP), jnp.float32)),
        grid=(n_t,),
        in_specs=[pl.BlockSpec((tile_m, KP), lambda i: (i, 0)),
                  pl.BlockSpec((KP, CP), lambda i: (0, 0))],
        out_specs=(pl.BlockSpec((tile_m, CP), lambda i: (i, 0)),
                   pl.BlockSpec((1, 8, CP), lambda i: (i, 0, 0))),
        compiler_params=pltpu.CompilerParams(
            dimension_semantics=("parallel",)),
    )(cols, wcol)


# ----------------------------------------------------------------------------
# Folded-BN (scale/bias) + ReLU, lane-dense elementwise kernel.
# ----------------------------------------------------------------------------
def _bn_relu_kernel(x_ref, s_ref, b_ref, o_ref):
    o_ref[...] = jnp.maximum(x_ref[...] * s_ref[...] + b_ref[...], 0.0)


def bn_relu(x, scale, bias, tile_m):
    M, CP = x.shape
    n_t = M // tile_m
    return pl.pallas_call(
        _bn_relu_kernel,
        out_shape=jax.ShapeDtypeStruct((M, CP), jnp.float32),
        grid=(n_t,),
        in_specs=[pl.BlockSpec((tile_m, CP), lambda i: (i, 0)),
                  pl.BlockSpec((1, CP), lambda i: (0, 0)),
                  pl.BlockSpec((1, CP), lambda i: (0, 0))],
        out_specs=pl.BlockSpec((tile_m, CP), lambda i: (i, 0)),
        compiler_params=pltpu.CompilerParams(
            dimension_semantics=("parallel",)),
    )(x, scale, bias)


# ----------------------------------------------------------------------------
# Fused tail kernel (per batch): BN2 + residual + ReLU, CBAM channel attention,
# CBAM spatial attention (7x7 conv as a dense NxN matmul) and SelfAttention
# (softmax(q k^T) v, tiled over query rows).
# ----------------------------------------------------------------------------
def _tail_kernel(y2_ref, idn_ref, s2_ref, b2_ref,
                 caw1_ref, caw2_ref, sca_ref,
                 wq_ref, wk_ref, wv_ref, bq_ref, bk_ref, bv_ref, gamma_ref,
                 o_ref, feat_sc, k_sc, v_sc, *, inv_c, q_tile):
    n = y2_ref.shape[1]

    # BN2 (folded scale/bias) + residual + ReLU
    feat = jnp.maximum(y2_ref[0] * s2_ref[...] + b2_ref[...] + idn_ref[0], 0.0)

    # --- CBAM channel attention: global avg/max pool + shared 2-layer MLP ---
    avg_c = jnp.sum(feat, axis=0, keepdims=True) * (1.0 / n)        # (1, CP)
    max_c = jnp.max(feat, axis=0, keepdims=True)                    # (1, CP)

    def mlp(pooled):
        h = jnp.maximum(jnp.dot(pooled, caw1_ref[...],
                                preferred_element_type=jnp.float32), 0.0)
        return jnp.dot(h, caw2_ref[...], preferred_element_type=jnp.float32)

    ca = jax.nn.sigmoid(mlp(avg_c) + mlp(max_c))                    # (1, CP)
    feat = feat * ca

    # --- CBAM spatial attention: 7x7 conv over [mean_c, max_c] as matmuls ---
    ch_avg = jnp.sum(feat, axis=1, keepdims=True) * inv_c           # (N, 1)
    ch_max = jnp.max(feat, axis=1, keepdims=True)                   # (N, 1)
    logits = (jnp.dot(sca_ref[0], ch_avg, preferred_element_type=jnp.float32) +
              jnp.dot(sca_ref[1], ch_max, preferred_element_type=jnp.float32))
    feat = feat * jax.nn.sigmoid(logits)                            # (N, CP)

    # --- Self attention, tiled over query rows ------------------------------
    feat_sc[...] = feat
    k_sc[...] = jnp.dot(feat, wk_ref[...],
                        preferred_element_type=jnp.float32) + bk_ref[...]
    v_sc[...] = jnp.dot(feat, wv_ref[...],
                        preferred_element_type=jnp.float32) + bv_ref[...]
    gamma = gamma_ref[0]
    n_q = n // q_tile

    def q_step(t, carry):
        r0 = pl.multiple_of(t * q_tile, q_tile)
        x_t = feat_sc[pl.ds(r0, q_tile), :]                         # (TQ, CP)
        q_t = jnp.dot(x_t, wq_ref[...],
                      preferred_element_type=jnp.float32) + bq_ref[...]
        e = lax.dot_general(q_t, k_sc[...], (((1,), (1,)), ((), ())),
                            preferred_element_type=jnp.float32)     # (TQ, N)
        e = e - jnp.max(e, axis=-1, keepdims=True)
        p = jnp.exp(e)
        out_t = jnp.dot(p, v_sc[...], preferred_element_type=jnp.float32)
        out_t = out_t / jnp.sum(p, axis=-1, keepdims=True)
        o_ref[0, pl.ds(r0, q_tile), :] = gamma * out_t + x_t
        return carry

    lax.fori_loop(0, n_q, q_step, 0)


def tail_fused(y2, idn, s2, b2, caw1p, caw2p, s_cat,
               wqp, wkp, wvp, bqp, bkp, bvp, gamma, *, real_c):
    B, N, CP = y2.shape
    CQ = wqp.shape[1]
    HP = caw1p.shape[1]
    q_tile = 64 if N % 64 == 0 else N
    kern = functools.partial(_tail_kernel, inv_c=1.0 / real_c, q_tile=q_tile)
    return pl.pallas_call(
        kern,
        out_shape=jax.ShapeDtypeStruct((B, N, CP), jnp.float32),
        grid=(B,),
        in_specs=[pl.BlockSpec((1, N, CP), lambda b: (b, 0, 0)),
                  pl.BlockSpec((1, N, CP), lambda b: (b, 0, 0)),
                  pl.BlockSpec((1, CP), lambda b: (0, 0)),
                  pl.BlockSpec((1, CP), lambda b: (0, 0)),
                  pl.BlockSpec((CP, HP), lambda b: (0, 0)),
                  pl.BlockSpec((HP, CP), lambda b: (0, 0)),
                  pl.BlockSpec((2, N, N), lambda b: (0, 0, 0)),
                  pl.BlockSpec((CP, CQ), lambda b: (0, 0)),
                  pl.BlockSpec((CP, CQ), lambda b: (0, 0)),
                  pl.BlockSpec((CP, CP), lambda b: (0, 0)),
                  pl.BlockSpec((1, CQ), lambda b: (0, 0)),
                  pl.BlockSpec((1, CQ), lambda b: (0, 0)),
                  pl.BlockSpec((1, CP), lambda b: (0, 0)),
                  pl.BlockSpec(memory_space=pltpu.MemorySpace.SMEM)],
        out_specs=pl.BlockSpec((1, N, CP), lambda b: (b, 0, 0)),
        scratch_shapes=[pltpu.VMEM((N, CP), jnp.float32),
                        pltpu.VMEM((N, CQ), jnp.float32),
                        pltpu.VMEM((N, CP), jnp.float32)],
        compiler_params=pltpu.CompilerParams(
            dimension_semantics=("parallel",)),
    )(y2, idn, s2, b2, caw1p, caw2p, s_cat,
      wqp, wkp, wvp, bqp, bkp, bvp, gamma)


# ----------------------------------------------------------------------------
# JAX-side glue: im2col, weight folding / zero padding, BN statistic finalize,
# dense matrix form of the 7x7 spatial-attention conv.
# ----------------------------------------------------------------------------
def _im2col(x_nhwc, K):
    """stride-1 'same' KxK conv columns: (B,H,W,C) -> (B*H*W, ceil(K*K*C,128))."""
    B, H, W, C = x_nhwc.shape
    p = (K - 1) // 2
    xp = jnp.pad(x_nhwc, ((0, 0), (p, p), (p, p), (0, 0)))
    cols = jnp.concatenate(
        [xp[:, kh:kh + H, kw:kw + W, :] for kh in range(K) for kw in range(K)],
        axis=-1).reshape(B * H * W, K * K * C)
    KP = _ceil_to(K * K * C, LANE)
    return jnp.pad(cols, ((0, 0), (0, KP - K * K * C)))


def _fold_conv_w(w, cp):
    """(K,K,Cin,Cout) -> (ceil(K*K*Cin,128), cp), zero padded."""
    K, _, Cin, Cout = w.shape
    KP = _ceil_to(K * K * Cin, LANE)
    wcol = w.reshape(K * K * Cin, Cout)
    return jnp.pad(wcol, ((0, KP - K * K * Cin), (0, cp - Cout)))


def _bn_fold(stats, count, gamma_p, beta_p, eps=1e-5):
    """Finalize batch-norm scale/bias from per-tile partial sums (training-mode
    batch statistics, biased variance, as in PyTorch's forward)."""
    total = jnp.sum(stats[:, 0, :], axis=0)
    total_sq = jnp.sum(stats[:, 1, :], axis=0)
    mean = total / count
    var = jnp.maximum(total_sq / count - mean * mean, 0.0)
    scale = gamma_p / jnp.sqrt(var + eps)
    bias = beta_p - mean * scale
    return scale.reshape(1, -1), bias.reshape(1, -1)


def _spatial_conv_matrices(w_sa, H, W):
    """Dense (2, N, N) matrices so the 7x7 SpatialAttention conv becomes
    logits = S[0] @ mean_map + S[1] @ max_map on the flattened spatial maps."""
    K = w_sa.shape[0]
    P = (K - 1) // 2
    N = H * W
    sh = (np.arange(H)[:, None, None, None] +
          np.arange(K)[None, None, :, None] - P)
    sw = (np.arange(W)[None, :, None, None] +
          np.arange(K)[None, None, None, :] - P)
    valid = (sh >= 0) & (sh < H) & (sw >= 0) & (sw < W)       # (H,W,K,K)
    src = np.where(valid, sh * W + sw, 0).ravel()
    dst = np.broadcast_to(np.arange(N).reshape(H, W, 1, 1), valid.shape).ravel()
    valid_f = jnp.asarray(valid, jnp.float32)
    s_a = jnp.zeros((N, N), jnp.float32).at[dst, src].add(
        (w_sa[None, None, :, :, 0] * valid_f).ravel())
    s_m = jnp.zeros((N, N), jnp.float32).at[dst, src].add(
        (w_sa[None, None, :, :, 1] * valid_f).ravel())
    return jnp.stack([s_a, s_m], axis=0)


# ----------------------------------------------------------------------------
# BasicBlock forward (stride=1, downsample=None as instantiated here).
# ----------------------------------------------------------------------------
def basic_block_forward(x_nchw, p):
    B, Cin, H, W = x_nchw.shape
    x = jnp.transpose(x_nchw, (0, 2, 3, 1)).astype(jnp.float32)     # -> NHWC
    C = p["conv1_w"].shape[-1]
    assert Cin == C, "stride=1 / no-downsample block requires Cin == Cout"
    CP = _ceil_to(C, LANE)
    N = H * W
    M = B * N
    tile_m = 128 if M % 128 == 0 else M

    def padded_vec(v, width):
        return jnp.zeros((width,), jnp.float32).at[:v.shape[0]].set(v)

    # conv1 -> BN1 stats -> BN1 + ReLU (lane-dense, channel padded to 128)
    y1, st1 = conv_matmul_stats(_im2col(x, 3),
                                _fold_conv_w(p["conv1_w"], CP), tile_m)
    s1, o1 = _bn_fold(st1, M, padded_vec(p["bn1_gamma"], CP),
                      padded_vec(p["bn1_beta"], CP))
    a1 = bn_relu(y1, s1, o1, tile_m)                                # (M, CP)

    # conv2 -> BN2 stats
    a1_img = a1.reshape(B, H, W, CP)[:, :, :, :C]
    y2, st2 = conv_matmul_stats(_im2col(a1_img, 3),
                                _fold_conv_w(p["conv2_w"], CP), tile_m)
    s2, o2 = _bn_fold(st2, M, padded_vec(p["bn2_gamma"], CP),
                      padded_vec(p["bn2_beta"], CP))

    # fused tail: BN2 + residual + ReLU + CBAM + SelfAttention
    idn = jnp.pad(x, ((0, 0), (0, 0), (0, 0), (0, CP - C))).reshape(B, N, CP)
    y2r = y2.reshape(B, N, CP)

    hidden = p["ca_w1"].shape[0]
    HP = _ceil_to(hidden, LANE)
    caw1p = jnp.zeros((CP, HP), jnp.float32).at[:C, :hidden].set(p["ca_w1"].T)
    caw2p = jnp.zeros((HP, CP), jnp.float32).at[:hidden, :C].set(p["ca_w2"].T)
    s_cat = _spatial_conv_matrices(p["sa_w"], H, W)                 # (2, N, N)

    C8 = p["wq"].shape[1]
    CQ = _ceil_to(C8, LANE)
    wqp = jnp.zeros((CP, CQ), jnp.float32).at[:C, :C8].set(p["wq"])
    wkp = jnp.zeros((CP, CQ), jnp.float32).at[:C, :C8].set(p["wk"])
    wvp = jnp.zeros((CP, CP), jnp.float32).at[:C, :C].set(p["wv"])
    bqp = jnp.zeros((1, CQ), jnp.float32).at[0, :C8].set(p["bq"])
    bkp = jnp.zeros((1, CQ), jnp.float32).at[0, :C8].set(p["bk"])
    bvp = jnp.zeros((1, CP), jnp.float32).at[0, :C].set(p["bv"])

    out = tail_fused(y2r, idn, s2, o2, caw1p, caw2p, s_cat,
                     wqp, wkp, wvp, bqp, bkp, bvp,
                     p["gamma"].astype(jnp.float32), real_c=C)
    out = out[:, :, :C].reshape(B, H, W, C)
    return jnp.transpose(out, (0, 3, 1, 2))                         # -> NCHW


def init_params(key, cin, cout, ratio=16, K_sa=7):
    ks = jax.random.split(key, 12)
    f32 = jnp.float32
    hidden = max(cout // ratio, 1)
    c8 = max(cout // 8, 1)
    return {
        "conv1_w": 0.1 * jax.random.normal(ks[0], (3, 3, cin, cout), f32),
        "conv2_w": 0.1 * jax.random.normal(ks[1], (3, 3, cout, cout), f32),
        "bn1_gamma": jnp.ones((cout,), f32),
        "bn1_beta": jnp.zeros((cout,), f32),
        "bn2_gamma": jnp.ones((cout,), f32),
        "bn2_beta": jnp.zeros((cout,), f32),
        # ChannelAttention: fc1 (hidden, C), fc2 (C, hidden), no bias.
        "ca_w1": 0.1 * jax.random.normal(ks[2], (hidden, cout), f32),
        "ca_w2": 0.1 * jax.random.normal(ks[3], (cout, hidden), f32),
        # SpatialAttention: 7x7 conv over [avg, max] channels, no bias.
        "sa_w": 0.1 * jax.random.normal(ks[4], (K_sa, K_sa, 2), f32),
        # SelfAttention 1x1 convs, stored pre-transposed as (Cin, Cout).
        "wq": 0.1 * jax.random.normal(ks[5], (cout, c8), f32),
        "wk": 0.1 * jax.random.normal(ks[6], (cout, c8), f32),
        "wv": 0.1 * jax.random.normal(ks[7], (cout, cout), f32),
        "bq": 0.1 * jax.random.normal(ks[8], (c8,), f32),
        "bk": 0.1 * jax.random.normal(ks[9], (c8,), f32),
        "bv": 0.1 * jax.random.normal(ks[10], (cout,), f32),
        "gamma": jnp.zeros((1,), f32),   # matches nn.Parameter(torch.zeros(1))
    }


if __name__ == "__main__":
    key = jax.random.PRNGKey(0)
    kx, kp = jax.random.split(key)
    B, C, H, W = 2, 16, 16, 16            # in_channels = out_channels = 16, stride=1
    x = jax.random.normal(kx, (B, C, H, W), jnp.float32)
    params = init_params(kp, C, C)

    fwd = jax.jit(lambda xx: basic_block_forward(xx, params))
    y = jax.block_until_ready(fwd(x))
    assert y.shape == (B, C, H, W) and y.dtype == jnp.float32
    assert bool(jnp.all(jnp.isfinite(y)))
    print("KERNEL_OK")
</pallas_src>

<mosaic_0001>
module attributes {stable_mosaic.version = 11 : i64} {
  func.func @_conv_stats_kernel(%arg0: i32, %arg1: memref<128x256xf32, #tpu.memory_space<vmem>>, %arg2: memref<256x128xf32, #tpu.memory_space<vmem>>, %arg3: memref<128x128xf32, #tpu.memory_space<vmem>>, %arg4: memref<1x8x128xf32, #tpu.memory_space<vmem>>) attributes {dimension_semantics = [#tpu.dimension_semantics<parallel>], iteration_bounds = array<i64: 4>, scalar_prefetch = 0 : i64, scratch_operands = 0 : i64, tpu.core_type = #tpu.core_type<tc>, window_params = [{transform_indices = @transform_0, window_bounds = array<i64: 128, 256>}, {pipeline_mode = #tpu.pipeline_mode<synchronous>, transform_indices = @transform_1, window_bounds = array<i64: 256, 128>}, {transform_indices = @transform_2, window_bounds = array<i64: 128, 128>}, {transform_indices = @transform_3, window_bounds = array<i64: 1, 8, 128>}]} {
    %c0 = arith.constant 0 : index
    %c0_0 = arith.constant 0 : index
    %0 = vector.load %arg1[%c0, %c0_0] : memref<128x256xf32, #tpu.memory_space<vmem>>, vector<128x256xf32>
    %c0_1 = arith.constant 0 : index
    %c0_2 = arith.constant 0 : index
    %1 = vector.load %arg2[%c0_1, %c0_2] : memref<256x128xf32, #tpu.memory_space<vmem>>, vector<256x128xf32>
    %cst = arith.constant dense<0.000000e+00> : vector<128x128xf32>
    %2 = tpu.matmul %0, %1, %cst {dimension_numbers = #tpu.dot_dimension_numbers<[1], [0], [0], [1], [0, 0, 1, 1], [], []>} : vector<128x256xf32>, vector<256x128xf32>, vector<128x128xf32> -> vector<128x128xf32>
    %c0_3 = arith.constant 0 : index
    %c0_4 = arith.constant 0 : index
    %3 = vector.load %arg3[%c0_3, %c0_4] : memref<128x128xf32, #tpu.memory_space<vmem>>, vector<128x128xf32>
    tpu.vector_store %arg3[%c0_3, %c0_4], %2 {strides = array<i32>} : memref<128x128xf32, #tpu.memory_space<vmem>>, vector<128x128xf32>,
    %cst_5 = arith.constant dense<0.000000e+00> : vector<128xf32>
    %4 = vector.multi_reduction <add>, %2, %cst_5 [0] : vector<128x128xf32> to vector<128xf32>
    %5 = vector.shape_cast %4 : vector<128xf32> to vector<1x128xf32>
    %6 = arith.mulf %2, %2 : vector<128x128xf32>
    %cst_6 = arith.constant dense<0.000000e+00> : vector<128xf32>
    %7 = vector.multi_reduction <add>, %6, %cst_6 [0] : vector<128x128xf32> to vector<128xf32>
    %8 = vector.shape_cast %7 : vector<128xf32> to vector<1x128xf32>
    %cst_7 = arith.constant 0.000000e+00 : f32
    %9 = vector.broadcast %cst_7 : f32 to vector<6x128xf32>
    %10 = tpu.concatenate %5, %8, %9 in 0 : vector<1x128xf32>, vector<1x128xf32>, vector<6x128xf32> -> vector<8x128xf32>
    %11 = vector.shape_cast %10 : vector<8x128xf32> to vector<1x8x128xf32>
    %c0_8 = arith.constant 0 : index
    %c0_9 = arith.constant 0 : index
    %c0_10 = arith.constant 0 : index
    %12 = vector.load %arg4[%c0_8, %c0_9, %c0_10] : memref<1x8x128xf32, #tpu.memory_space<vmem>>, vector<1x8x128xf32>
    tpu.vector_store %arg4[%c0_8, %c0_9, %c0_10], %11 {strides = array<i32>} : memref<1x8x128xf32, #tpu.memory_space<vmem>>, vector<1x8x128xf32>,
    return
  }
  func.func @transform_0(%arg0: i32) -> (i32, i32) {
    %c0_i32 = arith.constant 0 : i32
    %c0_i32_0 = arith.constant 0 : i32
    return %arg0, %c0_i32 : i32, i32
  }
  func.func @transform_1(%arg0: i32) -> (i32, i32) {
    %c0_i32 = arith.constant 0 : i32
    %c0_i32_0 = arith.constant 0 : i32
    %c0_i32_1 = arith.constant 0 : i32
    return %c0_i32, %c0_i32_0 : i32, i32
  }
  func.func @transform_2(%arg0: i32) -> (i32, i32) {
    %c0_i32 = arith.constant 0 : i32
    %c0_i32_0 = arith.constant 0 : i32
    return %arg0, %c0_i32 : i32, i32
  }
  func.func @transform_3(%arg0: i32) -> (i32, i32, i32) {
    %c0_i32 = arith.constant 0 : i32
    %c0_i32_0 = arith.constant 0 : i32
    %c0_i32_1 = arith.constant 0 : i32
    return %arg0, %c0_i32, %c0_i32_0 : i32, i32, i32
  }
}

module attributes {stable_mosaic.version = 11 : i64} {
  func.func @_bn_relu_kernel(%arg0: i32, %arg1: memref<128x128xf32, #tpu.memory_space<vmem>>, %arg2: memref<1x128xf32, #tpu.memory_space<vmem>>, %arg3: memref<1x128xf32, #tpu.memory_space<vmem>>, %arg4: memref<128x128xf32, #tpu.memory_space<vmem>>) attributes {dimension_semantics = [#tpu.dimension_semantics<parallel>], iteration_bounds = array<i64: 4>, scalar_prefetch = 0 : i64, scratch_operands = 0 : i64, tpu.core_type = #tpu.core_type<tc>, window_params = [{transform_indices = @transform_0, window_bounds = array<i64: 128, 128>}, {pipeline_mode = #tpu.pipeline_mode<synchronous>, transform_indices = @transform_1, window_bounds = array<i64: 1, 128>}, {pipeline_mode = #tpu.pipeline_mode<synchronous>, transform_indices = @transform_2, window_bounds = array<i64: 1, 128>}, {transform_indices = @transform_3, window_bounds = array<i64: 128, 128>}]} {
    %c0 = arith.constant 0 : index
    %c0_0 = arith.constant 0 : index
    %0 = vector.load %arg1[%c0, %c0_0] : memref<128x128xf32, #tpu.memory_space<vmem>>, vector<128x128xf32>
    %c0_1 = arith.constant 0 : index
    %c0_2 = arith.constant 0 : index
    %1 = vector.load %arg2[%c0_1, %c0_2] : memref<1x128xf32, #tpu.memory_space<vmem>>, vector<1x128xf32>
    %2 = vector.broadcast %1 : vector<1x128xf32> to vector<128x128xf32>
    %3 = arith.mulf %0, %2 : vector<128x128xf32>
    %c0_3 = arith.constant 0 : index
    %c0_4 = arith.constant 0 : index
    %4 = vector.load %arg3[%c0_3, %c0_4] : memref<1x128xf32, #tpu.memory_space<vmem>>, vector<1x128xf32>
    %5 = vector.broadcast %4 : vector<1x128xf32> to vector<128x128xf32>
    %6 = arith.addf %3, %5 : vector<128x128xf32>
    %cst = arith.constant 0.000000e+00 : f32
    %7 = vector.broadcast %cst : f32 to vector<128x128xf32>
    %8 = arith.maximumf %6, %7 : vector<128x128xf32>
    %c0_5 = arith.constant 0 : index
    %c0_6 = arith.constant 0 : index
    %9 = vector.load %arg4[%c0_5, %c0_6] : memref<128x128xf32, #tpu.memory_space<vmem>>, vector<128x128xf32>
    tpu.vector_store %arg4[%c0_5, %c0_6], %8 {strides = array<i32>} : memref<128x128xf32, #tpu.memory_space<vmem>>, vector<128x128xf32>,
    return
  }
  func.func @transform_0(%arg0: i32) -> (i32, i32) {
    %c0_i32 = arith.constant 0 : i32
    %c0_i32_0 = arith.constant 0 : i32
    return %arg0, %c0_i32 : i32, i32
  }
  func.func @transform_1(%arg0: i32) -> (i32, i32) {
    %c0_i32 = arith.constant 0 : i32
    %c0_i32_0 = arith.constant 0 : i32
    %c0_i32_1 = arith.constant 0 : i32
    return %c0_i32, %c0_i32_0 : i32, i32
  }
  func.func @transform_2(%arg0: i32) -> (i32, i32) {
    %c0_i32 = arith.constant 0 : i32
    %c0_i32_0 = arith.constant 0 : i32
    %c0_i32_1 = arith.constant 0 : i32
    return %c0_i32, %c0_i32_0 : i32, i32
  }
  func.func @transform_3(%arg0: i32) -> (i32, i32) {
    %c0_i32 = arith.constant 0 : i32
    %c0_i32_0 = arith.constant 0 : i32
    return %arg0, %c0_i32 : i32, i32
  }
}

module attributes {stable_mosaic.version = 11 : i64} {
  func.func @_tail_kernel(%arg0: i32, %arg1: memref<1x256x128xf32, #tpu.memory_space<vmem>>, %arg2: memref<1x256x128xf32, #tpu.memory_space<vmem>>, %arg3: memref<1x128xf32, #tpu.memory_space<vmem>>, %arg4: memref<1x128xf32, #tpu.memory_space<vmem>>, %arg5: memref<128x128xf32, #tpu.memory_space<vmem>>, %arg6: memref<128x128xf32, #tpu.memory_space<vmem>>, %arg7: memref<2x256x256xf32, #tpu.memory_space<vmem>>, %arg8: memref<128x128xf32, #tpu.memory_space<vmem>>, %arg9: memref<128x128xf32, #tpu.memory_space<vmem>>, %arg10: memref<128x128xf32, #tpu.memory_space<vmem>>, %arg11: memref<1x128xf32, #tpu.memory_space<vmem>>, %arg12: memref<1x128xf32, #tpu.memory_space<vmem>>, %arg13: memref<1x128xf32, #tpu.memory_space<vmem>>, %arg14: memref<1xf32, #tpu.memory_space<smem>>, %arg15: memref<1x256x128xf32, #tpu.memory_space<vmem>>, %arg16: memref<256x128xf32, #tpu.memory_space<vmem>>, %arg17: memref<256x128xf32, #tpu.memory_space<vmem>>, %arg18: memref<256x128xf32, #tpu.memory_space<vmem>>) attributes {dimension_semantics = [#tpu.dimension_semantics<parallel>], iteration_bounds = array<i64: 2>, scalar_prefetch = 0 : i64, scratch_operands = 3 : i64, tpu.core_type = #tpu.core_type<tc>, window_params = [{transform_indices = @transform_0, window_bounds = array<i64: 1, 256, 128>}, {transform_indices = @transform_1, window_bounds = array<i64: 1, 256, 128>}, {pipeline_mode = #tpu.pipeline_mode<synchronous>, transform_indices = @transform_2, window_bounds = array<i64: 1, 128>}, {pipeline_mode = #tpu.pipeline_mode<synchronous>, transform_indices = @transform_3, window_bounds = array<i64: 1, 128>}, {pipeline_mode = #tpu.pipeline_mode<synchronous>, transform_indices = @transform_4, window_bounds = array<i64: 128, 128>}, {pipeline_mode = #tpu.pipeline_mode<synchronous>, transform_indices = @transform_5, window_bounds = array<i64: 128, 128>}, {pipeline_mode = #tpu.pipeline_mode<synchronous>, transform_indices = @transform_6, window_bounds = array<i64: 2, 256, 256>}, {pipeline_mode = #tpu.pipeline_mode<synchronous>, transform_indices = @transform_7, window_bounds = array<i64: 128, 128>}, {pipeline_mode = #tpu.pipeline_mode<synchronous>, transform_indices = @transform_8, window_bounds = array<i64: 128, 128>}, {pipeline_mode = #tpu.pipeline_mode<synchronous>, transform_indices = @transform_9, window_bounds = array<i64: 128, 128>}, {pipeline_mode = #tpu.pipeline_mode<synchronous>, transform_indices = @transform_10, window_bounds = array<i64: 1, 128>}, {pipeline_mode = #tpu.pipeline_mode<synchronous>, transform_indices = @transform_11, window_bounds = array<i64: 1, 128>}, {pipeline_mode = #tpu.pipeline_mode<synchronous>, transform_indices = @transform_12, window_bounds = array<i64: 1, 128>}, {transform_indices = @transform_13, window_bounds = array<i64: 1>}, {transform_indices = @transform_14, window_bounds = array<i64: 1, 256, 128>}]} {
    %c0 = arith.constant 0 : index
    %c0_0 = arith.constant 0 : index
    %c0_1 = arith.constant 0 : index
    %0 = vector.load %arg1[%c0, %c0_0, %c0_1] : memref<1x256x128xf32, #tpu.memory_space<vmem>>, vector<1x256x128xf32>
    %1 = vector.shape_cast %0 : vector<1x256x128xf32> to vector<256x128xf32>
    %c0_2 = arith.constant 0 : index
    %c0_3 = arith.constant 0 : index
    %2 = vector.load %arg3[%c0_2, %c0_3] : memref<1x128xf32, #tpu.memory_space<vmem>>, vector<1x128xf32>
    %3 = vector.broadcast %2 : vector<1x128xf32> to vector<256x128xf32>
    %4 = arith.mulf %1, %3 : vector<256x128xf32>
    %c0_4 = arith.constant 0 : index
    %c0_5 = arith.constant 0 : index
    %5 = vector.load %arg4[%c0_4, %c0_5] : memref<1x128xf32, #tpu.memory_space<vmem>>, vector<1x128xf32>
    %6 = vector.broadcast %5 : vector<1x128xf32> to vector<256x128xf32>
    %7 = arith.addf %4, %6 : vector<256x128xf32>
    %c0_6 = arith.constant 0 : index
    %c0_7 = arith.constant 0 : index
    %c0_8 = arith.constant 0 : index
    %8 = vector.load %arg2[%c0_6, %c0_7, %c0_8] : memref<1x256x128xf32, #tpu.memory_space<vmem>>, vector<1x256x128xf32>
    %9 = vector.shape_cast %8 : vector<1x256x128xf32> to vector<256x128xf32>
    %10 = arith.addf %7, %9 : vector<256x128xf32>
    %cst = arith.constant 0.000000e+00 : f32
    %11 = vector.broadcast %cst : f32 to vector<256x128xf32>
    %12 = arith.maximumf %10, %11 : vector<256x128xf32>
    %cst_9 = arith.constant dense<0.000000e+00> : vector<128xf32>
    %13 = vector.multi_reduction <add>, %12, %cst_9 [0] : vector<256x128xf32> to vector<128xf32>
    %14 = vector.shape_cast %13 : vector<128xf32> to vector<1x128xf32>
    %cst_10 = arith.constant 3.906250e-03 : f32
    %15 = vector.broadcast %cst_10 : f32 to vector<1x128xf32>
    %16 = arith.mulf %14, %15 : vector<1x128xf32>
    %cst_11 = arith.constant dense<0xFF800000> : vector<128xf32>
    %17 = vector.multi_reduction <maximumf>, %12, %cst_11 [0] : vector<256x128xf32> to vector<128xf32>
    %18 = vector.shape_cast %17 : vector<128xf32> to vector<1x128xf32>
    %c0_12 = arith.constant 0 : index
    %c0_13 = arith.constant 0 : index
    %19 = vector.load %arg5[%c0_12, %c0_13] : memref<128x128xf32, #tpu.memory_space<vmem>>, vector<128x128xf32>
    %cst_14 = arith.constant dense<0.000000e+00> : vector<1x128xf32>
    %20 = tpu.matmul %16, %19, %cst_14 {dimension_numbers = #tpu.dot_dimension_numbers<[1], [0], [0], [1], [0, 0, 1, 1], [], []>} : vector<1x128xf32>, vector<128x128xf32>, vector<1x128xf32> -> vector<1x128xf32>
    %cst_15 = arith.constant 0.000000e+00 : f32
    %21 = vector.broadcast %cst_15 : f32 to vector<1x128xf32>
    %22 = arith.maximumf %20, %21 : vector<1x128xf32>
    %c0_16 = arith.constant 0 : index
    %c0_17 = arith.constant 0 : index
    %23 = vector.load %arg6[%c0_16, %c0_17] : memref<128x128xf32, #tpu.memory_space<vmem>>, vector<128x128xf32>
    %cst_18 = arith.constant dense<0.000000e+00> : vector<1x128xf32>
    %24 = tpu.matmul %22, %23, %cst_18 {dimension_numbers = #tpu.dot_dimension_numbers<[1], [0], [0], [1], [0, 0, 1, 1], [], []>} : vector<1x128xf32>, vector<128x128xf32>, vector<1x128xf32> -> vector<1x128xf32>
    %c0_19 = arith.constant 0 : index
    %c0_20 = arith.constant 0 : index
    %25 = vector.load %arg5[%c0_19, %c0_20] : memref<128x128xf32, #tpu.memory_space<vmem>>, vector<128x128xf32>
    %cst_21 = arith.constant dense<0.000000e+00> : vector<1x128xf32>
    %26 = tpu.matmul %18, %25, %cst_21 {dimension_numbers = #tpu.dot_dimension_numbers<[1], [0], [0], [1], [0, 0, 1, 1], [], []>} : vector<1x128xf32>, vector<128x128xf32>, vector<1x128xf32> -> vector<1x128xf32>
    %cst_22 = arith.constant 0.000000e+00 : f32
    %27 = vector.broadcast %cst_22 : f32 to vector<1x128xf32>
    %28 = arith.maximumf %26, %27 : vector<1x128xf32>
    %c0_23 = arith.constant 0 : index
    %c0_24 = arith.constant 0 : index
    %29 = vector.load %arg6[%c0_23, %c0_24] : memref<128x128xf32, #tpu.memory_space<vmem>>, vector<128x128xf32>
    %cst_25 = arith.constant dense<0.000000e+00> : vector<1x128xf32>
    %30 = tpu.matmul %28, %29, %cst_25 {dimension_numbers = #tpu.dot_dimension_numbers<[1], [0], [0], [1], [0, 0, 1, 1], [], []>} : vector<1x128xf32>, vector<128x128xf32>, vector<1x128xf32> -> vector<1x128xf32>
    %31 = arith.addf %24, %30 : vector<1x128xf32>
    %32 = arith.negf %31 : vector<1x128xf32>
    %33 = math.exp %32 : vector<1x128xf32>
    %cst_26 = arith.constant 1.000000e+00 : f32
    %34 = vector.broadcast %cst_26 : f32 to vector<1x128xf32>
    %35 = arith.addf %34, %33 : vector<1x128xf32>
    %36 = arith.divf %34, %35 : vector<1x128xf32>
    %37 = vector.broadcast %36 : vector<1x128xf32> to vector<256x128xf32>
    %38 = arith.mulf %12, %37 : vector<256x128xf32>
    %cst_27 = arith.constant dense<0.000000e+00> : vector<256xf32>
    %39 = vector.multi_reduction <add>, %38, %cst_27 [1] : vector<256x128xf32> to vector<256xf32>
    %40 = vector.shape_cast %39 : vector<256xf32> to vector<256x1xf32>
    %cst_28 = arith.constant 6.250000e-02 : f32
    %41 = vector.broadcast %cst_28 : f32 to vector<256x1xf32>
    %42 = arith.mulf %40, %41 : vector<256x1xf32>
    %cst_29 = arith.constant dense<0xFF800000> : vector<256xf32>
    %43 = vector.multi_reduction <maximumf>, %38, %cst_29 [1] : vector<256x128xf32> to vector<256xf32>
    %44 = vector.shape_cast %43 : vector<256xf32> to vector<256x1xf32>
    %c0_30 = arith.constant 0 : index
    %c0_31 = arith.constant 0 : index
    %c0_32 = arith.constant 0 : index
    %45 = vector.load %arg7[%c0_30, %c0_31, %c0_32] : memref<2x256x256xf32, #tpu.memory_space<vmem>>, vector<1x256x256xf32>
    %46 = vector.shape_cast %45 : vector<1x256x256xf32> to vector<256x256xf32>
    %cst_33 = arith.constant dense<0.000000e+00> : vector<256x1xf32>
    %47 = tpu.matmul %46, %42, %cst_33 {dimension_numbers = #tpu.dot_dimension_numbers<[1], [0], [0], [1], [0, 0, 1, 1], [], []>} : vector<256x256xf32>, vector<256x1xf32>, vector<256x1xf32> -> vector<256x1xf32>
    %c1 = arith.constant 1 : index
    %c0_34 = arith.constant 0 : index
    %c0_35 = arith.constant 0 : index
    %48 = vector.load %arg7[%c1, %c0_34, %c0_35] : memref<2x256x256xf32, #tpu.memory_space<vmem>>, vector<1x256x256xf32>
    %49 = vector.shape_cast %48 : vector<1x256x256xf32> to vector<256x256xf32>
    %cst_36 = arith.constant dense<0.000000e+00> : vector<256x1xf32>
    %50 = tpu.matmul %49, %44, %cst_36 {dimension_numbers = #tpu.dot_dimension_numbers<[1], [0], [0], [1], [0, 0, 1, 1], [], []>} : vector<256x256xf32>, vector<256x1xf32>, vector<256x1xf32> -> vector<256x1xf32>
    %51 = arith.addf %47, %50 : vector<256x1xf32>
    %52 = arith.negf %51 : vector<256x1xf32>
    %53 = math.exp %52 : vector<256x1xf32>
    %cst_37 = arith.constant 1.000000e+00 : f32
    %54 = vector.broadcast %cst_37 : f32 to vector<256x1xf32>
    %55 = arith.addf %54, %53 : vector<256x1xf32>
    %56 = arith.divf %54, %55 : vector<256x1xf32>
    %57 = vector.broadcast %56 : vector<256x1xf32> to vector<256x128xf32>
    %58 = arith.mulf %38, %57 : vector<256x128xf32>
    %c0_38 = arith.constant 0 : index
    %c0_39 = arith.constant 0 : index
    %59 = vector.load %arg16[%c0_38, %c0_39] : memref<256x128xf32, #tpu.memory_space<vmem>>, vector<256x128xf32>
    tpu.vector_store %arg16[%c0_38, %c0_39], %58 {strides = array<i32>} : memref<256x128xf32, #tpu.memory_space<vmem>>, vector<256x128xf32>,
    %c0_40 = arith.constant 0 : index
    %c0_41 = arith.constant 0 : index
    %60 = vector.load %arg9[%c0_40, %c0_41] : memref<128x128xf32, #tpu.memory_space<vmem>>, vector<128x128xf32>
    %cst_42 = arith.constant dense<0.000000e+00> : vector<256x128xf32>
    %61 = tpu.matmul %58, %60, %cst_42 {dimension_numbers = #tpu.dot_dimension_numbers<[1], [0], [0], [1], [0, 0, 1, 1], [], []>} : vector<256x128xf32>, vector<128x128xf32>, vector<256x128xf32> -> vector<256x128xf32>
    %c0_43 = arith.constant 0 : index
    %c0_44 = arith.constant 0 : index
    %62 = vector.load %arg12[%c0_43, %c0_44] : memref<1x128xf32, #tpu.memory_space<vmem>>, vector<1x128xf32>
    %63 = vector.broadcast %62 : vector<1x128xf32> to vector<256x128xf32>
    %64 = arith.addf %61, %63 : vector<256x128xf32>
    %c0_45 = arith.constant 0 : index
    %c0_46 = arith.constant 0 : index
    %65 = vector.load %arg17[%c0_45, %c0_46] : memref<256x128xf32, #tpu.memory_space<vmem>>, vector<256x128xf32>
    tpu.vector_store %arg17[%c0_45, %c0_46], %64 {strides = array<i32>} : memref<256x128xf32, #tpu.memory_space<vmem>>, vector<256x128xf32>,
    %c0_47 = arith.constant 0 : index
    %c0_48 = arith.constant 0 : index
    %66 = vector.load %arg10[%c0_47, %c0_48] : memref<128x128xf32, #tpu.memory_space<vmem>>, vector<128x128xf32>
    %cst_49 = arith.constant dense<0.000000e+00> : vector<256x128xf32>
    %67 = tpu.matmul %58, %66, %cst_49 {dimension_numbers = #tpu.dot_dimension_numbers<[1], [0], [0], [1], [0, 0, 1, 1], [], []>} : vector<256x128xf32>, vector<128x128xf32>, vector<256x128xf32> -> vector<256x128xf32>
    %c0_50 = arith.constant 0 : index
    %c0_51 = arith.constant 0 : index
    %68 = vector.load %arg13[%c0_50, %c0_51] : memref<1x128xf32, #tpu.memory_space<vmem>>, vector<1x128xf32>
    %69 = vector.broadcast %68 : vector<1x128xf32> to vector<256x128xf32>
    %70 = arith.addf %67, %69 : vector<256x128xf32>
    %c0_52 = arith.constant 0 : index
    %c0_53 = arith.constant 0 : index
    %71 = vector.load %arg18[%c0_52, %c0_53] : memref<256x128xf32, #tpu.memory_space<vmem>>, vector<256x128xf32>
    tpu.vector_store %arg18[%c0_52, %c0_53], %70 {strides = array<i32>} : memref<256x128xf32, #tpu.memory_space<vmem>>, vector<256x128xf32>,
    %c0_54 = arith.constant 0 : index
    %72 = memref.load %arg14[%c0_54] : memref<1xf32, #tpu.memory_space<smem>>
    %c0_i32 = arith.constant 0 : i32
    %c4_i32 = arith.constant 4 : i32
    %73 = arith.addi %c0_i32, %c4_i32 : i32
    %c1_i32 = arith.constant 1 : i32
    scf.for %arg19 = %c0_i32 to %73 step %c1_i32  : i32 {
      %c64_i32 = arith.constant 64 : i32
      %74 = arith.muli %arg19, %c64_i32 : i32
      %75 = tpu.assume_multiple %74, 64 : i32
      %76 = arith.index_cast %75 : i32 to index
      %c0_56 = arith.constant 0 : index
      %77 = vector.load %arg16[%76, %c0_56] : memref<256x128xf32, #tpu.memory_space<vmem>>, vector<64x128xf32>
      %c0_57 = arith.constant 0 : index
      %c0_58 = arith.constant 0 : index
      %78 = vector.load %arg8[%c0_57, %c0_58] : memref<128x128xf32, #tpu.memory_space<vmem>>, vector<128x128xf32>
      %cst_59 = arith.constant dense<0.000000e+00> : vector<64x128xf32>
      %79 = tpu.matmul %77, %78, %cst_59 {dimension_numbers = #tpu.dot_dimension_numbers<[1], [0], [0], [1], [0, 0, 1, 1], [], []>} : vector<64x128xf32>, vector<128x128xf32>, vector<64x128xf32> -> vector<64x128xf32>
      %c0_60 = arith.constant 0 : index
      %c0_61 = arith.constant 0 : index
      %80 = vector.load %arg11[%c0_60, %c0_61] : memref<1x128xf32, #tpu.memory_space<vmem>>, vector<1x128xf32>
      %81 = vector.broadcast %80 : vector<1x128xf32> to vector<64x128xf32>
      %82 = arith.addf %79, %81 : vector<64x128xf32>
      %c0_62 = arith.constant 0 : index
      %c0_63 = arith.constant 0 : index
      %83 = vector.load %arg17[%c0_62, %c0_63] : memref<256x128xf32, #tpu.memory_space<vmem>>, vector<256x128xf32>
      %cst_64 = arith.constant dense<0.000000e+00> : vector<64x256xf32>
      %84 = tpu.matmul %82, %83, %cst_64 {dimension_numbers = #tpu.dot_dimension_numbers<[1], [1], [0], [0], [0, 0, 1, 0], [], []>} : vector<64x128xf32>, vector<256x128xf32>, vector<64x256xf32> -> vector<64x256xf32>
      %cst_65 = arith.constant dense<0xFF800000> : vector<64xf32>
      %85 = vector.multi_reduction <maximumf>, %84, %cst_65 [1] : vector<64x256xf32> to vector<64xf32>
      %86 = vector.shape_cast %85 : vector<64xf32> to vector<64x1xf32>
      %87 = vector.broadcast %86 : vector<64x1xf32> to vector<64x256xf32>
      %88 = arith.subf %84, %87 : vector<64x256xf32>
      %89 = math.exp %88 : vector<64x256xf32>
      %c0_66 = arith.constant 0 : index
      %c0_67 = arith.constant 0 : index
      %90 = vector.load %arg18[%c0_66, %c0_67] : memref<256x128xf32, #tpu.memory_space<vmem>>, vector<256x128xf32>
      %cst_68 = arith.constant dense<0.000000e+00> : vector<64x128xf32>
      %91 = tpu.matmul %89, %90, %cst_68 {dimension_numbers = #tpu.dot_dimension_numbers<[1], [0], [0], [1], [0, 0, 1, 1], [], []>} : vector<64x256xf32>, vector<256x128xf32>, vector<64x128xf32> -> vector<64x128xf32>
      %cst_69 = arith.constant dense<0.000000e+00> : vector<64xf32>
      %92 = vector.multi_reduction <add>, %89, %cst_69 [1] : vector<64x256xf32> to vector<64xf32>
      %93 = vector.shape_cast %92 : vector<64xf32> to vector<64x1xf32>
      %94 = vector.broadcast %93 : vector<64x1xf32> to vector<64x128xf32>
      %95 = arith.divf %91, %94 : vector<64x128xf32>
      %96 = vector.broadcast %72 : f32 to vector<64x128xf32>
      %97 = arith.mulf %96, %95 : vector<64x128xf32>
      %98 = arith.addf %97, %77 : vector<64x128xf32>
      %c0_70 = arith.constant 0 : index
      %99 = arith.index_cast %75 : i32 to index
      %c0_71 = arith.constant 0 : index
      %100 = vector.load %arg15[%c0_70, %99, %c0_71] : memref<1x256x128xf32, #tpu.memory_space<vmem>>, vector<1x64x128xf32>
      %101 = vector.shape_cast %100 : vector<1x64x128xf32> to vector<64x128xf32>
      %102 = vector.shape_cast %98 : vector<64x128xf32> to vector<1x64x128xf32>
      tpu.vector_store %arg15[%c0_70, %99, %c0_71], %102 {strides = array<i32>} : memref<1x256x128xf32, #tpu.memory_space<vmem>>, vector<1x64x128xf32>,
    }
    %c4_i32_55 = arith.constant 4 : i32
    return
  }
  func.func @transform_0(%arg0: i32) -> (i32, i32, i32) {
    %c0_i32 = arith.constant 0 : i32
    %c0_i32_0 = arith.constant 0 : i32
    %c0_i32_1 = arith.constant 0 : i32
    return %arg0, %c0_i32, %c0_i32_0 : i32, i32, i32
  }
  func.func @transform_1(%arg0: i32) -> (i32, i32, i32) {
    %c0_i32 = arith.constant 0 : i32
    %c0_i32_0 = arith.constant 0 : i32
    %c0_i32_1 = arith.constant 0 : i32
    return %arg0, %c0_i32, %c0_i32_0 : i32, i32, i32
  }
  func.func @transform_2(%arg0: i32) -> (i32, i32) {
    %c0_i32 = arith.constant 0 : i32
    %c0_i32_0 = arith.constant 0 : i32
    %c0_i32_1 = arith.constant 0 : i32
    return %c0_i32, %c0_i32_0 : i32, i32
  }
  func.func @transform_3(%arg0: i32) -> (i32, i32) {
    %c0_i32 = arith.constant 0 : i32
    %c0_i32_0 = arith.constant 0 : i32
    %c0_i32_1 = arith.constant 0 : i32
    return %c0_i32, %c0_i32_0 : i32, i32
  }
  func.func @transform_4(%arg0: i32) -> (i32, i32) {
    %c0_i32 = arith.constant 0 : i32
    %c0_i32_0 = arith.constant 0 : i32
    %c0_i32_1 = arith.constant 0 : i32
    return %c0_i32, %c0_i32_0 : i32, i32
  }
  func.func @transform_5(%arg0: i32) -> (i32, i32) {
    %c0_i32 = arith.constant 0 : i32
    %c0_i32_0 = arith.constant 0 : i32
    %c0_i32_1 = arith.constant 0 : i32
    return %c0_i32, %c0_i32_0 : i32, i32
  }
  func.func @transform_6(%arg0: i32) -> (i32, i32, i32) {
    %c0_i32 = arith.constant 0 : i32
    %c0_i32_0 = arith.constant 0 : i32
    %c0_i32_1 = arith.constant 0 : i32
    %c0_i32_2 = arith.constant 0 : i32
    return %c0_i32, %c0_i32_0, %c0_i32_1 : i32, i32, i32
  }
  func.func @transform_7(%arg0: i32) -> (i32, i32) {
    %c0_i32 = arith.constant 0 : i32
    %c0_i32_0 = arith.constant 0 : i32
    %c0_i32_1 = arith.constant 0 : i32
    return %c0_i32, %c0_i32_0 : i32, i32
  }
  func.func @transform_8(%arg0: i32) -> (i32, i32) {
    %c0_i32 = arith.constant 0 : i32
    %c0_i32_0 = arith.constant 0 : i32
    %c0_i32_1 = arith.constant 0 : i32
    return %c0_i32, %c0_i32_0 : i32, i32
  }
  func.func @transform_9(%arg0: i32) -> (i32, i32) {
    %c0_i32 = arith.constant 0 : i32
    %c0_i32_0 = arith.constant 0 : i32
    %c0_i32_1 = arith.constant 0 : i32
    return %c0_i32, %c0_i32_0 : i32, i32
  }
  func.func @transform_10(%arg0: i32) -> (i32, i32) {
    %c0_i32 = arith.constant 0 : i32
    %c0_i32_0 = arith.constant 0 : i32
    %c0_i32_1 = arith.constant 0 : i32
    return %c0_i32, %c0_i32_0 : i32, i32
  }
  func.func @transform_11(%arg0: i32) -> (i32, i32) {
    %c0_i32 = arith.constant 0 : i32
    %c0_i32_0 = arith.constant 0 : i32
    %c0_i32_1 = arith.constant 0 : i32
    return %c0_i32, %c0_i32_0 : i32, i32
  }
  func.func @transform_12(%arg0: i32) -> (i32, i32) {
    %c0_i32 = arith.constant 0 : i32
    %c0_i32_0 = arith.constant 0 : i32
    %c0_i32_1 = arith.constant 0 : i32
    return %c0_i32, %c0_i32_0 : i32, i32
  }
  func.func @transform_13(%arg0: i32) -> i32 {
    %c0_i32 = arith.constant 0 : i32
    %c0_i32_0 = arith.constant 0 : i32
    return %c0_i32 : i32
  }
  func.func @transform_14(%arg0: i32) -> (i32, i32, i32) {
    %c0_i32 = arith.constant 0 : i32
    %c0_i32_0 = arith.constant 0 : i32
    %c0_i32_1 = arith.constant 0 : i32
    return %arg0, %c0_i32, %c0_i32_0 : i32, i32, i32
  }
}

</mosaic_0001>

<llo_original>
// kernel: _lambda_.5
$region0: #{_lambda_.5}
  #allocation0 [shape = 'u32[]', space=smem, size = 0x4, offset = 0x4, fixed_abs, tag = 'smem constant byte address 0x4 - core index']
  #allocation1 [shape = 'u32[144,128]{1,0:T(1,128)}', space=vmem, size = 0x12000, scoped, tag = 'internal scratch']
  %s0 = inlined_call_operand.vmem [shape: f32[512,128], index: 0, kind: input, shape index: {}]
  %s1 = inlined_call_operand.vmem [shape: f32[1,128], index: 1, kind: input, shape index: {}]
  %s2 = inlined_call_operand.vmem [shape: f32[1,128], index: 2, kind: input, shape index: {}]
  %s3 = inlined_call_operand.vmem [shape: f32[512,128], index: 3, kind: output, shape index: {}]
  %s4 = sld [smem:[#allocation0]]
  $region45: #{_lambda_.5} parent=0
    _
  %s6 = ssub.s32 1, %s4
  %s7 = scalar_select 0, %s6, %s4
  loop: start=0, step=1, limit=6
  $region2: #{_lambda_.5} parent=0 // loop_pre_header
    _
  $region3: #{_lambda_.5} parent=0 // loop_header
    %s9 = sphi 0, %s13
    %p10 = scmp.ge.s32.totalorder %s9, 6
    %s19 = sphi 0, %s21
    %s22 = sphi 0, %s19
    %s23 = sphi 0, %s22
    %s39 = sphi 0, %s23
    %s43 = sphi 0, %s43
    %s45 = sphi 0, %s43
    %s46 = sphi 0, %s45
    %s60 = sphi 0, %s46
    %s64 = sphi 0, %s64
    %s66 = sphi 0, %s64
    %s67 = sphi 0, %s66
    %s81 = sphi 0, %s67
    %s87 = sphi 0, %s89
    %s90 = sphi 0, %s87
    %s91 = sphi 0, %s90
    %s107 = sphi 0, %s91
  $region4: #{_lambda_.5} parent=0 // loop_header_branch
    %12 = sbr.rel (%p10) target = $region8
  $region5: #{_lambda_.5} parent=0 // loop_body
    %s14 = ssub.s32 %s9, 1
    %s15 = ssub.s32 %s9, 2
    %s16 = sadd.s32 %s9, 1
    %s17 = ssub.s32 %s9, %s16
    %p18 = scmp.eq.s32.totalorder %s17, 0
    %s20 = sadd.s32 %s19, 1
    %s21 = scalar_select %p18, %s19, %s20
    %p24 = pneg %p18
    %p25 = scmp.eq.s32.totalorder %s9, 3
    %p26 = por %p24, %p25
    %p27 = scmp.ne.s32.totalorder %s19, %s22
    %p28 = scmp.eq.s32.totalorder %s9, 0
    %p29 = por %p27, %p28
    %p30 = scmp.ne.s32.totalorder %s19, %s22
    %p31 = scmp.eq.s32.totalorder %s14, 3
    %p32 = por %p30, %p31
    %p33 = scmp.ne.s32.totalorder %s22, %s23
    %p34 = scmp.eq.s32.totalorder %s14, 0
    %p35 = por %p33, %p34
    %p36 = scmp.ne.s32.totalorder %s22, %s23
    %p37 = scmp.eq.s32.totalorder %s15, 3
    %p38 = por %p36, %p37
    %p40 = scmp.ne.s32.totalorder %s23, %s39
    %p41 = scmp.eq.s32.totalorder %s15, 0
    %p42 = por %p40, %p41
    %s44 = sadd.s32 %s43, 1
    %p47 = scmp.eq.s32.totalorder %s9, 3
    %p48 = scmp.ne.s32.totalorder %s43, %s45
    %p49 = scmp.eq.s32.totalorder %s9, 0
    %p50 = por %p48, %p49
    %p51 = scmp.ne.s32.totalorder %s43, %s45
    %p52 = scmp.eq.s32.totalorder %s14, 3
    %p53 = por %p51, %p52
    %p54 = scmp.ne.s32.totalorder %s45, %s46
    %p55 = scmp.eq.s32.totalorder %s14, 0
    %p56 = por %p54, %p55
    %p57 = scmp.ne.s32.totalorder %s45, %s46
    %p58 = scmp.eq.s32.totalorder %s15, 3
    %p59 = por %p57, %p58
    %p61 = scmp.ne.s32.totalorder %s46, %s60
    %p62 = scmp.eq.s32.totalorder %s15, 0
    %p63 = por %p61, %p62
    %s65 = sadd.s32 %s64, 1
    %p68 = scmp.eq.s32.totalorder %s9, 3
    %p69 = scmp.ne.s32.totalorder %s64, %s66
    %p70 = scmp.eq.s32.totalorder %s9, 0
    %p71 = por %p69, %p70
    %p72 = scmp.ne.s32.totalorder %s64, %s66
    %p73 = scmp.eq.s32.totalorder %s14, 3
    %p74 = por %p72, %p73
    %p75 = scmp.ne.s32.totalorder %s66, %s67
    %p76 = scmp.eq.s32.totalorder %s14, 0
    %p77 = por %p75, %p76
    %p78 = scmp.ne.s32.totalorder %s66, %s67
    %p79 = scmp.eq.s32.totalorder %s15, 3
    %p80 = por %p78, %p79
    %p82 = scmp.ne.s32.totalorder %s67, %s81
    %p83 = scmp.eq.s32.totalorder %s15, 0
    %p84 = por %p82, %p83
    %s85 = ssub.s32 %s9, %s16
    %p86 = scmp.eq.s32.totalorder %s85, 0
    %s88 = sadd.s32 %s87, 1
    %s89 = scalar_select %p86, %s87, %s88
    %p92 = pneg %p86
    %p93 = scmp.eq.s32.totalorder %s9, 3
    %p94 = por %p92, %p93
    %p95 = scmp.ne.s32.totalorder %s87, %s90
    %p96 = scmp.eq.s32.totalorder %s9, 0
    %p97 = por %p95, %p96
    %p98 = scmp.ne.s32.totalorder %s87, %s90
    %p99 = scmp.eq.s32.totalorder %s14, 3
    %p100 = por %p98, %p99
    %p101 = scmp.ne.s32.totalorder %s90, %s91
    %p102 = scmp.eq.s32.totalorder %s14, 0
    %p103 = por %p101, %p102
    %p104 = scmp.ne.s32.totalorder %s90, %s91
    %p105 = scmp.eq.s32.totalorder %s15, 3
    %p106 = por %p104, %p105
    %p108 = scmp.ne.s32.totalorder %s91, %s107
    %p109 = scmp.eq.s32.totalorder %s15, 0
    %p110 = por %p108, %p109
    %p111 = scmp.le.s32.totalorder 1, %s9
    %p112 = scmp.lt.s32.totalorder %s9, 5
    %p113 = pnand %p111, %p112
    %p114 = pneg %p113
    // Predicated region
    $region9: #{_lambda_.5} parent=5 // pred_check
      _
    $region10: #{_lambda_.5} parent=5 // pred_check_branch
      %116 = sbr.rel (%p113) target = $region12
    $region11: #{_lambda_.5} parent=5 // pred_region
      %s117 = ssub.s32 %s9, 1
      // Predicated region
      $region13: #{_lambda_.5} parent=11 // pred_check
        %p118 = pneg %p56
      $region14: #{_lambda_.5} parent=11 // pred_check_branch
        %120 = sbr.rel (%p118) target = $region16
      $region15: #{_lambda_.5} parent=11 // pred_region
        _
      $region16: #{_lambda_.5} parent=11 // pred_fallthru
        _
      // Predicated region
      $region17: #{_lambda_.5} parent=11 // pred_check
        %p121 = pneg %p77
      $region18: #{_lambda_.5} parent=11 // pred_check_branch
        %123 = sbr.rel (%p121) target = $region20
      $region19: #{_lambda_.5} parent=11 // pred_region
        _
      $region20: #{_lambda_.5} parent=11 // pred_fallthru
        _
    $region12: #{_lambda_.5} parent=5 // pred_fallthru
      _
    %p124 = scmp.lt.s32.totalorder %s9, 4
    // Predicated region
    $region21: #{_lambda_.5} parent=5 // pred_check
      %p125 = pneg %p124
    $region22: #{_lambda_.5} parent=5 // pred_check_branch
      %127 = sbr.rel (%p125) target = $region24
    $region23: #{_lambda_.5} parent=5 // pred_region
      // Predicated region
      $region25: #{_lambda_.5} parent=23 // pred_check
        %p128 = pneg %p29
      $region26: #{_lambda_.5} parent=23 // pred_check_branch
        %130 = sbr.rel (%p128) target = $region28
      $region27: #{_lambda_.5} parent=23 // pred_region
        %s131 = smul.u32 16, %s9
        %p132 = scmp.lt.s32.totalorder %s131, 63
        %s133 = scalar_select %p132, %s131, 63
        %s134 = smul.addr %s133, 8
        %s135 = scalar_lea.vmem %s0, %s134
        %s136 = smul.u32 16, %s9
      $region28: #{_lambda_.5} parent=23 // pred_fallthru
        _
    $region24: #{_lambda_.5} parent=5 // pred_fallthru
      _
    %p137 = scmp.le.s32.totalorder 1, %s9
    %p138 = scmp.lt.s32.totalorder %s9, 5
    %p139 = pnand %p137, %p138
    %p140 = pneg %p139
    // Predicated region
    $region29: #{_lambda_.5} parent=5 // pred_check
      _
    $region30: #{_lambda_.5} parent=5 // pred_check_branch
      %142 = sbr.rel (%p139) target = $region32
    $region31: #{_lambda_.5} parent=5 // pred_region
      %s143 = ssub.s32 %s9, 1
      %s144 = smul.u32 16, %s14
      %p145 = scmp.lt.s32.totalorder %s144, 63
      %s146 = scalar_select %p145, %s144, 63
      %s147 = smul.addr %s146, 8
      %s148 = scalar_lea.vmem %s0, %s147
      %p149 = pneg %p35
      %p150 = pneg %p32
      %p151 = pneg %p56
      %p152 = pneg %p53
      %p153 = pneg %p77
      %p154 = pneg %p74
      %p155 = pneg %p103
      %p156 = pneg %p100
      %s157 = smul.u32 16, %s14
      %p158 = scmp.lt.s32.totalorder %s157, 63
      %s159 = scalar_select %p158, %s157, 63
      %s160 = smul.addr %s159, 8
      %s161 = scalar_lea.vmem %s3, %s160
      %s162 = smul.u32 16, %s14
      %p163 = scmp.lt.s32.totalorder %s162, 63
      %s164 = scalar_select %p163, %s162, 63
      %s165 = smul.addr %s164, 8
      %s166 = scalar_lea.vmem %s0, %s165
      %s167 = smul.u32 16, %s14
      %s168 = smul.u32 16, %s14
      %p169 = scmp.lt.s32.totalorder %s168, 63
      %s170 = scalar_select %p169, %s168, 63
      %s171 = smul.addr %s170, 8
      %s172 = scalar_lea.vmem %s3, %s171
      %s173 = smul.u32 16, %s14
      %v174 = vld [vmem:[%s166] sm:$0xff]
      %v175 = vld [vmem:[%s166 + $0x8] sm:$0xff]
      %v176 = vld [vmem:[%s166 + $0x10] sm:$0xff]
      %v177 = vld [vmem:[%s166 + $0x18] sm:$0xff]
      %v178 = vld [vmem:[%s166 + $0x20] sm:$0xff]
      %v179 = vld [vmem:[%s166 + $0x28] sm:$0xff]
      %v180 = vld [vmem:[%s166 + $0x30] sm:$0xff]
      %v181 = vld [vmem:[%s166 + $0x38] sm:$0xff]
      %v182 = vld [vmem:[%s166 + $0x40] sm:$0xff]
      %v183 = vld [vmem:[%s166 + $0x48] sm:$0xff]
      %v184 = vld [vmem:[%s166 + $0x50] sm:$0xff]
      %v185 = vld [vmem:[%s166 + $0x58] sm:$0xff]
      %v186 = vld [vmem:[%s166 + $0x60] sm:$0xff]
      %v187 = vld [vmem:[%s166 + $0x68] sm:$0xff]
      %v188 = vld [vmem:[%s166 + $0x70] sm:$0xff]
      %v189 = vld [vmem:[%s166 + $0x78] sm:$0xff]
      %v190 = vld [vmem:[%s1] sm:$0x1]
      %v192 = vlaneseq
      %v193 = vshrl.u32 %v192, 7
      %v194 = vsub.s32 0, %v193
      %v195 = vrot.slane %v190, %v194
      %v197 = vmul.f32 %v174, %v195
      %v198 = vmul.f32 %v175, %v195
      %v199 = vmul.f32 %v176, %v195
      %v200 = vmul.f32 %v177, %v195
      %v201 = vmul.f32 %v178, %v195
      %v202 = vmul.f32 %v179, %v195
      %v203 = vmul.f32 %v180, %v195
      %v204 = vmul.f32 %v181, %v195
      %v205 = vmul.f32 %v182, %v195
      %v206 = vmul.f32 %v183, %v195
      %v207 = vmul.f32 %v184, %v195
      %v208 = vmul.f32 %v185, %v195
      %v209 = vmul.f32 %v186, %v195
      %v210 = vmul.f32 %v187, %v195
      %v211 = vmul.f32 %v188, %v195
      %v212 = vmul.f32 %v189, %v195
      %v213 = vld [vmem:[%s2] sm:$0x1]
      %v215 = vlaneseq
      %v216 = vshrl.u32 %v215, 7
      %v217 = vsub.s32 0, %v216
      %v218 = vrot.slane %v213, %v217
      %v220 = vadd.f32 %v197, %v218
      %v221 = vadd.f32 %v198, %v218
      %v222 = vadd.f32 %v199, %v218
      %v223 = vadd.f32 %v200, %v218
      %v224 = vadd.f32 %v201, %v218
      %v225 = vadd.f32 %v202, %v218
      %v226 = vadd.f32 %v203, %v218
      %v227 = vadd.f32 %v204, %v218
      %v228 = vadd.f32 %v205, %v218
      %v229 = vadd.f32 %v206, %v218
      %v230 = vadd.f32 %v207, %v218
      %v231 = vadd.f32 %v208, %v218
      %v232 = vadd.f32 %v209, %v218
      %v233 = vadd.f32 %v210, %v218
      %v234 = vadd.f32 %v211, %v218
      %v235 = vadd.f32 %v212, %v218
      %v236 = vmax.f32 %v220, 0.0
      %v237 = vmax.f32 %v221, 0.0
      %v238 = vmax.f32 %v222, 0.0
      %v239 = vmax.f32 %v223, 0.0
      %v240 = vmax.f32 %v224, 0.0
      %v241 = vmax.f32 %v225, 0.0
      %v242 = vmax.f32 %v226, 0.0
      %v243 = vmax.f32 %v227, 0.0
      %v244 = vmax.f32 %v228, 0.0
      %v245 = vmax.f32 %v229, 0.0
      %v246 = vmax.f32 %v230, 0.0
      %v247 = vmax.f32 %v231, 0.0
      %v248 = vmax.f32 %v232, 0.0
      %v249 = vmax.f32 %v233, 0.0
      %v250 = vmax.f32 %v234, 0.0
      %v251 = vmax.f32 %v235, 0.0
      %252 = vst [vmem:[%s172] sm:$0xff] %v236
      %253 = vst [vmem:[%s172 + $0x8] sm:$0xff] %v237
      %254 = vst [vmem:[%s172 + $0x10] sm:$0xff] %v238
      %255 = vst [vmem:[%s172 + $0x18] sm:$0xff] %v239
      %256 = vst [vmem:[%s172 + $0x20] sm:$0xff] %v240
      %257 = vst [vmem:[%s172 + $0x28] sm:$0xff] %v241
      %258 = vst [vmem:[%s172 + $0x30] sm:$0xff] %v242
      %259 = vst [vmem:[%s172 + $0x38] sm:$0xff] %v243
      %260 = vst [vmem:[%s172 + $0x40] sm:$0xff] %v244
      %261 = vst [vmem:[%s172 + $0x48] sm:$0xff] %v245
      %262 = vst [vmem:[%s172 + $0x50] sm:$0xff] %v246
      %263 = vst [vmem:[%s172 + $0x58] sm:$0xff] %v247
      %264 = vst [vmem:[%s172 + $0x60] sm:$0xff] %v248
      %265 = vst [vmem:[%s172 + $0x68] sm:$0xff] %v249
      %266 = vst [vmem:[%s172 + $0x70] sm:$0xff] %v250
      %267 = vst [vmem:[%s172 + $0x78] sm:$0xff] %v251
      %s268 = smul.u32 16, %s14
      %p269 = scmp.lt.s32.totalorder %s268, 63
      %s270 = scalar_select %p269, %s268, 63
      %s271 = smul.addr %s270, 8
      %s272 = scalar_lea.vmem %s3, %s271
      // Predicated region
      $region33: #{_lambda_.5} parent=31 // pred_check
        %p273 = pneg %p100
      $region34: #{_lambda_.5} parent=31 // pred_check_branch
        %275 = sbr.rel (%p273) target = $region36
      $region35: #{_lambda_.5} parent=31 // pred_region
        %s276 = smul.u32 16, %s14
      $region36: #{_lambda_.5} parent=31 // pred_fallthru
        _
    $region32: #{_lambda_.5} parent=5 // pred_fallthru
      _
    %p277 = scmp.le.s32.totalorder 2, %s9
    // Predicated region
    $region37: #{_lambda_.5} parent=5 // pred_check
      %p278 = pneg %p277
    $region38: #{_lambda_.5} parent=5 // pred_check_branch
      %280 = sbr.rel (%p278) target = $region40
    $region39: #{_lambda_.5} parent=5 // pred_region
      %s281 = ssub.s32 %s9, 2
      // Predicated region
      $region41: #{_lambda_.5} parent=39 // pred_check
        %p282 = pneg %p106
      $region42: #{_lambda_.5} parent=39 // pred_check_branch
        %284 = sbr.rel (%p282) target = $region44
      $region43: #{_lambda_.5} parent=39 // pred_region
        %s285 = smul.u32 16, %s15
        %p286 = scmp.lt.s32.totalorder %s285, 63
        %s287 = scalar_select %p286, %s285, 63
        %s288 = smul.addr %s287, 8
        %s289 = scalar_lea.vmem %s3, %s288
      $region44: #{_lambda_.5} parent=39 // pred_fallthru
        _
    $region40: #{_lambda_.5} parent=5 // pred_fallthru
      _
  $region6: #{_lambda_.5} parent=0 // loop_footer
    %s13 = sadd.s32 1, %s9
  $region7: #{_lambda_.5} parent=0 // loop_footer_branch
    %8 = sbr.rel target = $region3
  $region8: #{_lambda_.5} parent=0 // loop_exit
    _

// kernel: _lambda_.4
$region0: #{_lambda_.4}
  #allocation0 [shape = 'u32[]', space=smem, size = 0x4, offset = 0x4, fixed_abs, tag = 'smem constant byte address 0x4 - core index']
  #allocation1 [shape = 'u32[144,128]{1,0:T(1,128)}', space=vmem, size = 0x12000, scoped, tag = 'internal scratch']
  %s0 = inlined_call_operand.vmem [shape: f32[512,256], index: 0, kind: input, shape index: {}]
  %s1 = inlined_call_operand.vmem [shape: f32[256,128], index: 1, kind: input, shape index: {}]
  %s2 = inlined_call_operand.vmem [shape: f32[512,128], index: 2, kind: output, shape index: {0}]
  %s3 = inlined_call_operand.vmem [shape: f32[4,8,128], index: 3, kind: output, shape index: {1}]
  %4 = xla_tuple %s2, %s3
  %s5 = sld [smem:[#allocation0]]
  $region49: #{_lambda_.4} parent=0
    _
  %s7 = ssub.s32 1, %s5
  %s8 = scalar_select 0, %s7, %s5
  loop: start=0, step=1, limit=6
  $region2: #{_lambda_.4} parent=0 // loop_pre_header
    _
  $region3: #{_lambda_.4} parent=0 // loop_header
    %s10 = sphi 0, %s14
    %p11 = scmp.ge.s32.totalorder %s10, 6
    %s20 = sphi 0, %s22
    %s23 = sphi 0, %s20
    %s24 = sphi 0, %s23
    %s40 = sphi 0, %s24
    %s44 = sphi 0, %s44
    %s46 = sphi 0, %s44
    %s47 = sphi 0, %s46
    %s61 = sphi 0, %s47
    %s67 = sphi 0, %s69
    %s70 = sphi 0, %s67
    %s71 = sphi 0, %s70
    %s87 = sphi 0, %s71
    %s93 = sphi 0, %s95
    %s96 = sphi 0, %s93
    %s97 = sphi 0, %s96
    %s113 = sphi 0, %s97
  $region4: #{_lambda_.4} parent=0 // loop_header_branch
    %13 = sbr.rel (%p11) target = $region8
  $region5: #{_lambda_.4} parent=0 // loop_body
    %s15 = ssub.s32 %s10, 1
    %s16 = ssub.s32 %s10, 2
    %s17 = sadd.s32 %s10, 1
    %s18 = ssub.s32 %s10, %s17
    %p19 = scmp.eq.s32.totalorder %s18, 0
    %s21 = sadd.s32 %s20, 1
    %s22 = scalar_select %p19, %s20, %s21
    %p25 = pneg %p19
    %p26 = scmp.eq.s32.totalorder %s10, 3
    %p27 = por %p25, %p26
    %p28 = scmp.ne.s32.totalorder %s20, %s23
    %p29 = scmp.eq.s32.totalorder %s10, 0
    %p30 = por %p28, %p29
    %p31 = scmp.ne.s32.totalorder %s20, %s23
    %p32 = scmp.eq.s32.totalorder %s15, 3
    %p33 = por %p31, %p32
    %p34 = scmp.ne.s32.totalorder %s23, %s24
    %p35 = scmp.eq.s32.totalorder %s15, 0
    %p36 = por %p34, %p35
    %p37 = scmp.ne.s32.totalorder %s23, %s24
    %p38 = scmp.eq.s32.totalorder %s16, 3
    %p39 = por %p37, %p38
    %p41 = scmp.ne.s32.totalorder %s24, %s40
    %p42 = scmp.eq.s32.totalorder %s16, 0
    %p43 = por %p41, %p42
    %s45 = sadd.s32 %s44, 1
    %p48 = scmp.eq.s32.totalorder %s10, 3
    %p49 = scmp.ne.s32.totalorder %s44, %s46
    %p50 = scmp.eq.s32.totalorder %s10, 0
    %p51 = por %p49, %p50
    %p52 = scmp.ne.s32.totalorder %s44, %s46
    %p53 = scmp.eq.s32.totalorder %s15, 3
    %p54 = por %p52, %p53
    %p55 = scmp.ne.s32.totalorder %s46, %s47
    %p56 = scmp.eq.s32.totalorder %s15, 0
    %p57 = por %p55, %p56
    %p58 = scmp.ne.s32.totalorder %s46, %s47
    %p59 = scmp.eq.s32.totalorder %s16, 3
    %p60 = por %p58, %p59
    %p62 = scmp.ne.s32.totalorder %s47, %s61
    %p63 = scmp.eq.s32.totalorder %s16, 0
    %p64 = por %p62, %p63
    %s65 = ssub.s32 %s10, %s17
    %p66 = scmp.eq.s32.totalorder %s65, 0
    %s68 = sadd.s32 %s67, 1
    %s69 = scalar_select %p66, %s67, %s68
    %p72 = pneg %p66
    %p73 = scmp.eq.s32.totalorder %s10, 3
    %p74 = por %p72, %p73
    %p75 = scmp.ne.s32.totalorder %s67, %s70
    %p76 = scmp.eq.s32.totalorder %s10, 0
    %p77 = por %p75, %p76
    %p78 = scmp.ne.s32.totalorder %s67, %s70
    %p79 = scmp.eq.s32.totalorder %s15, 3
    %p80 = por %p78, %p79
    %p81 = scmp.ne.s32.totalorder %s70, %s71
    %p82 = scmp.eq.s32.totalorder %s15, 0
    %p83 = por %p81, %p82
    %p84 = scmp.ne.s32.totalorder %s70, %s71
    %p85 = scmp.eq.s32.totalorder %s16, 3
    %p86 = por %p84, %p85
    %p88 = scmp.ne.s32.totalorder %s71, %s87
    %p89 = scmp.eq.s32.totalorder %s16, 0
    %p90 = por %p88, %p89
    %s91 = ssub.s32 %s10, %s17
    %p92 = scmp.eq.s32.totalorder %s91, 0
    %s94 = sadd.s32 %s93, 1
    %s95 = scalar_select %p92, %s93, %s94
    %p98 = pneg %p92
    %p99 = scmp.eq.s32.totalorder %s10, 3
    %p100 = por %p98, %p99
    %p101 = scmp.ne.s32.totalorder %s93, %s96
    %p102 = scmp.eq.s32.totalorder %s10, 0
    %p103 = por %p101, %p102
    %p104 = scmp.ne.s32.totalorder %s93, %s96
    %p105 = scmp.eq.s32.totalorder %s15, 3
    %p106 = por %p104, %p105
    %p107 = scmp.ne.s32.totalorder %s96, %s97
    %p108 = scmp.eq.s32.totalorder %s15, 0
    %p109 = por %p107, %p108
    %p110 = scmp.ne.s32.totalorder %s96, %s97
    %p111 = scmp.eq.s32.totalorder %s16, 3
    %p112 = por %p110, %p111
    %p114 = scmp.ne.s32.totalorder %s97, %s113
    %p115 = scmp.eq.s32.totalorder %s16, 0
    %p116 = por %p114, %p115
    %p117 = scmp.le.s32.totalorder 1, %s10
    %p118 = scmp.lt.s32.totalorder %s10, 5
    %p119 = pnand %p117, %p118
    %p120 = pneg %p119
    // Predicated region
    $region9: #{_lambda_.4} parent=5 // pred_check
      _
    $region10: #{_lambda_.4} parent=5 // pred_check_branch
      %122 = sbr.rel (%p119) target = $region12
    $region11: #{_lambda_.4} parent=5 // pred_region
      %s123 = ssub.s32 %s10, 1
      // Predicated region
      $region13: #{_lambda_.4} parent=11 // pred_check
        %p124 = pneg %p57
      $region14: #{_lambda_.4} parent=11 // pred_check_branch
        %126 = sbr.rel (%p124) target = $region16
      $region15: #{_lambda_.4} parent=11 // pred_region
        _
      $region16: #{_lambda_.4} parent=11 // pred_fallthru
        _
    $region12: #{_lambda_.4} parent=5 // pred_fallthru
      _
    %p127 = scmp.lt.s32.totalorder %s10, 4
    // Predicated region
    $region17: #{_lambda_.4} parent=5 // pred_check
      %p128 = pneg %p127
    $region18: #{_lambda_.4} parent=5 // pred_check_branch
      %130 = sbr.rel (%p128) target = $region20
    $region19: #{_lambda_.4} parent=5 // pred_region
      // Predicated region
      $region21: #{_lambda_.4} parent=19 // pred_check
        %p131 = pneg %p30
      $region22: #{_lambda_.4} parent=19 // pred_check_branch
        %133 = sbr.rel (%p131) target = $region24
      $region23: #{_lambda_.4} parent=19 // pred_region
        %s134 = smul.u32 16, %s10
        %p135 = scmp.lt.s32.totalorder %s134, 63
        %s136 = scalar_select %p135, %s134, 63
        %s137 = smul.addr %s136, 2
        %s138 = smul.addr %s137, 8
        %s139 = scalar_lea.vmem %s0, %s138
        %s140 = smul.u32 16, %s10
      $region24: #{_lambda_.4} parent=19 // pred_fallthru
        _
    $region20: #{_lambda_.4} parent=5 // pred_fallthru
      _
    %p141 = scmp.le.s32.totalorder 1, %s10
    %p142 = scmp.lt.s32.totalorder %s10, 5
    %p143 = pnand %p141, %p142
    %p144 = pneg %p143
    // Predicated region
    $region25: #{_lambda_.4} parent=5 // pred_check
      _
    $region26: #{_lambda_.4} parent=5 // pred_check_branch
      %146 = sbr.rel (%p143) target = $region28
    $region27: #{_lambda_.4} parent=5 // pred_region
      %s147 = ssub.s32 %s10, 1
      %s148 = smul.u32 16, %s15
      %p149 = scmp.lt.s32.totalorder %s148, 63
      %s150 = scalar_select %p149, %s148, 63
      %s151 = smul.addr %s150, 2
      %s152 = smul.addr %s151, 8
      %s153 = scalar_lea.vmem %s0, %s152
      %p154 = pneg %p36
      %p155 = pneg %p33
      %p156 = pneg %p57
      %p157 = pneg %p54
      %p158 = pneg %p83
      %p159 = pneg %p80
      %s160 = smul.u32 16, %s15
      %p161 = scmp.lt.s32.totalorder %s160, 63
      %s162 = scalar_select %p161, %s160, 63
      %s163 = smul.addr %s162, 8
      %s164 = scalar_lea.vmem %s2, %s163
      %p165 = pneg %p109
      %p166 = pneg %p106
      %p167 = scmp.lt.s32.totalorder %s15, 3
      %s168 = scalar_select %p167, %s15, 3
      %s169 = smul.addr %s168, 8
      %s170 = scalar_lea.vmem %s3, %s169
      %s171 = smul.u32 16, %s15
      %p172 = scmp.lt.s32.totalorder %s171, 63
      %s173 = scalar_select %p172, %s171, 63
      %s174 = smul.addr %s173, 2
      %s175 = smul.addr %s174, 8
      %s176 = scalar_lea.vmem %s0, %s175
      %s177 = smul.u32 16, %s15
      %s178 = smul.u32 16, %s15
      %p179 = scmp.lt.s32.totalorder %s178, 63
      %s180 = scalar_select %p179, %s178, 63
      %s181 = smul.addr %s180, 8
      %s182 = scalar_lea.vmem %s2, %s181
      %s183 = smul.u32 16, %s15
      %p184 = scmp.lt.s32.totalorder %s15, 3
      %s185 = scalar_select %p184, %s15, 3
      %s186 = smul.addr %s185, 8
      %s187 = scalar_lea.vmem %s3, %s186
      %v188 = vld [vmem:[%s176] sm:$0xff]
      %v189 = vld [vmem:[%s176 + $0x8] sm:$0xff]
      %v190 = vld [vmem:[%s176 + $0x10] sm:$0xff]
      %v191 = vld [vmem:[%s176 + $0x18] sm:$0xff]
      %v192 = vld [vmem:[%s176 + $0x20] sm:$0xff]
      %v193 = vld [vmem:[%s176 + $0x28] sm:$0xff]
      %v194 = vld [vmem:[%s176 + $0x30] sm:$0xff]
      %v195 = vld [vmem:[%s176 + $0x38] sm:$0xff]
      %v196 = vld [vmem:[%s176 + $0x40] sm:$0xff]
      %v197 = vld [vmem:[%s176 + $0x48] sm:$0xff]
      %v198 = vld [vmem:[%s176 + $0x50] sm:$0xff]
      %v199 = vld [vmem:[%s176 + $0x58] sm:$0xff]
      %v200 = vld [vmem:[%s176 + $0x60] sm:$0xff]
      %v201 = vld [vmem:[%s176 + $0x68] sm:$0xff]
      %v202 = vld [vmem:[%s176 + $0x70] sm:$0xff]
      %v203 = vld [vmem:[%s176 + $0x78] sm:$0xff]
      %v204 = vld [vmem:[%s176 + $0x80] sm:$0xff]
      %v205 = vld [vmem:[%s176 + $0x88] sm:$0xff]
      %v206 = vld [vmem:[%s176 + $0x90] sm:$0xff]
      %v207 = vld [vmem:[%s176 + $0x98] sm:$0xff]
      %v208 = vld [vmem:[%s176 + $0xa0] sm:$0xff]
      %v209 = vld [vmem:[%s176 + $0xa8] sm:$0xff]
      %v210 = vld [vmem:[%s176 + $0xb0] sm:$0xff]
      %v211 = vld [vmem:[%s176 + $0xb8] sm:$0xff]
      %v212 = vld [vmem:[%s176 + $0xc0] sm:$0xff]
      %v213 = vld [vmem:[%s176 + $0xc8] sm:$0xff]
      %v214 = vld [vmem:[%s176 + $0xd0] sm:$0xff]
      %v215 = vld [vmem:[%s176 + $0xd8] sm:$0xff]
      %v216 = vld [vmem:[%s176 + $0xe0] sm:$0xff]
      %v217 = vld [vmem:[%s176 + $0xe8] sm:$0xff]
      %v218 = vld [vmem:[%s176 + $0xf0] sm:$0xff]
      %v219 = vld [vmem:[%s176 + $0xf8] sm:$0xff]
      %v220 = vld [vmem:[%s1] sm:$0xff]
      %v221 = vld [vmem:[%s1 + $0x8] sm:$0xff]
      %v222 = vld [vmem:[%s1 + $0x10] sm:$0xff]
      %v223 = vld [vmem:[%s1 + $0x18] sm:$0xff]
      %v224 = vld [vmem:[%s1 + $0x20] sm:$0xff]
      %v225 = vld [vmem:[%s1 + $0x28] sm:$0xff]
      %v226 = vld [vmem:[%s1 + $0x30] sm:$0xff]
      %v227 = vld [vmem:[%s1 + $0x38] sm:$0xff]
      %v228 = vld [vmem:[%s1 + $0x40] sm:$0xff]
      %v229 = vld [vmem:[%s1 + $0x48] sm:$0xff]
      %v230 = vld [vmem:[%s1 + $0x50] sm:$0xff]
      %v231 = vld [vmem:[%s1 + $0x58] sm:$0xff]
      %v232 = vld [vmem:[%s1 + $0x60] sm:$0xff]
      %v233 = vld [vmem:[%s1 + $0x68] sm:$0xff]
      %v234 = vld [vmem:[%s1 + $0x70] sm:$0xff]
      %v235 = vld [vmem:[%s1 + $0x78] sm:$0xff]
      %v236 = vld [vmem:[%s1 + $0x80] sm:$0xff]
      %v237 = vld [vmem:[%s1 + $0x88] sm:$0xff]
      %v238 = vld [vmem:[%s1 + $0x90] sm:$0xff]
      %v239 = vld [vmem:[%s1 + $0x98] sm:$0xff]
      %v240 = vld [vmem:[%s1 + $0xa0] sm:$0xff]
      %v241 = vld [vmem:[%s1 + $0xa8] sm:$0xff]
      %v242 = vld [vmem:[%s1 + $0xb0] sm:$0xff]
      %v243 = vld [vmem:[%s1 + $0xb8] sm:$0xff]
      %v244 = vld [vmem:[%s1 + $0xc0] sm:$0xff]
      %v245 = vld [vmem:[%s1 + $0xc8] sm:$0xff]
      %v246 = vld [vmem:[%s1 + $0xd0] sm:$0xff]
      %v247 = vld [vmem:[%s1 + $0xd8] sm:$0xff]
      %v248 = vld [vmem:[%s1 + $0xe0] sm:$0xff]
      %v249 = vld [vmem:[%s1 + $0xe8] sm:$0xff]
      %v250 = vld [vmem:[%s1 + $0xf0] sm:$0xff]
      %v251 = vld [vmem:[%s1 + $0xf8] sm:$0xff]
      %252 = vmatprep.subr.mxu0 0.0
      %253 = vmatpush1.msra.mxu0 %v235
      %254 = vmatprep.subr.mxu0 0.0
      %255 = vmatpush1.msra.mxu0 %v234
      %256 = vmatprep.subr.mxu0 0.0
      %257 = vmatpush1.msra.mxu0 %v233
      %258 = vmatprep.subr.mxu0 0.0
      %259 = vmatpush1.msra.mxu0 %v232
      %260 = vmatprep.subr.mxu0 0.0
      %261 = vmatpush1.msra.mxu0 %v231
      %262 = vmatprep.subr.mxu0 0.0
      %263 = vmatpush1.msra.mxu0 %v230
      %264 = vmatprep.subr.mxu0 0.0
      %265 = vmatpush1.msra.mxu0 %v229
      %266 = vmatprep.subr.mxu0 0.0
      %267 = vmatpush1.msra.mxu0 %v228
      %268 = vmatprep.subr.mxu0 0.0
      %269 = vmatpush1.msra.mxu0 %v227
      %270 = vmatprep.subr.mxu0 0.0
      %271 = vmatpush1.msra.mxu0 %v226
      %272 = vmatprep.subr.mxu0 0.0
      %273 = vmatpush1.msra.mxu0 %v225
      %274 = vmatprep.subr.mxu0 0.0
      %275 = vmatpush1.msra.mxu0 %v224
      %276 = vmatprep.subr.mxu0 0.0
      %277 = vmatpush1.msra.mxu0 %v223
      %278 = vmatprep.subr.mxu0 0.0
      %279 = vmatpush1.msra.mxu0 %v222
      %280 = vmatprep.subr.mxu0 0.0
      %281 = vmatpush1.msra.mxu0 %v221
      %282 = vmatprep.subr.mxu0 0.0
      %283 = vmatpush1.msra.mxu0 %v220
      %284 = vmatprep.subr.mxu0 0.0
      %285 = vmatpush2.msra.mxu0 %v251
      %286 = vmatprep.subr.mxu0 0.0
      %287 = vmatpush2.msra.mxu0 %v250
      %288 = vmatprep.subr.mxu0 0.0
      %289 = vmatpush2.msra.mxu0 %v249
      %290 = vmatprep.subr.mxu0 0.0
      %291 = vmatpush2.msra.mxu0 %v248
      %292 = vmatprep.subr.mxu0 0.0
      %293 = vmatpush2.msra.mxu0 %v247
      %294 = vmatprep.subr.mxu0 0.0
      %295 = vmatpush2.msra.mxu0 %v246
      %296 = vmatprep.subr.mxu0 0.0
      %297 = vmatpush2.msra.mxu0 %v245
      %298 = vmatprep.subr.mxu0 0.0
      %299 = vmatpush2.msra.mxu0 %v244
      %300 = vmatprep.subr.mxu0 0.0
      %301 = vmatpush2.msra.mxu0 %v243
      %302 = vmatprep.subr.mxu0 0.0
      %303 = vmatpush2.msra.mxu0 %v242
      %304 = vmatprep.subr.mxu0 0.0
      %305 = vmatpush2.msra.mxu0 %v241
      %306 = vmatprep.subr.mxu0 0.0
      %307 = vmatpush2.msra.mxu0 %v240
      %308 = vmatprep.subr.mxu0 0.0
      %309 = vmatpush2.msra.mxu0 %v239
      %310 = vmatprep.subr.mxu0 0.0
      %311 = vmatpush2.msra.mxu0 %v238
      %312 = vmatprep.subr.mxu0 0.0
      %313 = vmatpush2.msra.mxu0 %v237
      %314 = vmatprep.subr.mxu0 0.0
      %315 = vmatpush2.msra.mxu0 %v236
      %316 = vmatprep.mubr.f32.mxu0 %v189
      %317 = vmatmul.mubr.f32.gmra.mxu0 %v188
      %v318 = vpop.f32.mrf.mxu0
      %v319 = vadd.f32 0.0, %v318
      %v320 = vpop.f32.mrf.mxu0
      %321 = vmatprep.mubr.f32.mxu0 %v191
      %322 = vmatmul.mubr.f32.gmra.mxu0 %v190
      %v323 = vpop.f32.mrf.mxu0
      %v324 = vadd.f32 0.0, %v323
      %v325 = vpop.f32.mrf.mxu0
      %326 = vmatprep.mubr.f32.mxu0 %v193
      %327 = vmatmul.mubr.f32.gmra.mxu0 %v192
      %v328 = vpop.f32.mrf.mxu0
      %v329 = vadd.f32 0.0, %v328
      %v330 = vpop.f32.mrf.mxu0
      %331 = vmatprep.mubr.f32.mxu0 %v195
      %332 = vmatmul.mubr.f32.gmra.mxu0 %v194
      %v333 = vpop.f32.mrf.mxu0
      %v334 = vadd.f32 0.0, %v333
      %v335 = vpop.f32.mrf.mxu0
      %336 = vmatprep.mubr.f32.mxu0 %v197
      %337 = vmatmul.mubr.f32.gmra.mxu0 %v196
      %v338 = vpop.f32.mrf.mxu0
      %v339 = vadd.f32 0.0, %v338
      %v340 = vpop.f32.mrf.mxu0
      %341 = vmatprep.mubr.f32.mxu0 %v199
      %342 = vmatmul.mubr.f32.gmra.mxu0 %v198
      %v343 = vpop.f32.mrf.mxu0
      %v344 = vadd.f32 0.0, %v343
      %v345 = vpop.f32.mrf.mxu0
      %346 = vmatprep.mubr.f32.mxu0 %v201
      %347 = vmatmul.mubr.f32.gmra.mxu0 %v200
      %v348 = vpop.f32.mrf.mxu0
      %v349 = vadd.f32 0.0, %v348
      %v350 = vpop.f32.mrf.mxu0
      %351 = vmatprep.mubr.f32.mxu0 %v203
      %352 = vmatmul.mubr.f32.gmra.mxu0 %v202
      %v353 = vpop.f32.mrf.mxu0
      %v354 = vadd.f32 0.0, %v353
      %v355 = vpop.f32.mrf.mxu0
      %356 = vmatprep.mubr.f32.mxu0 %v205
      %357 = vmatmul.mubr.f32.gmra.mxu0 %v204
      %v358 = vpop.f32.mrf.mxu0
      %v359 = vadd.f32 0.0, %v358
      %v360 = vpop.f32.mrf.mxu0
      %361 = vmatprep.mubr.f32.mxu0 %v207
      %362 = vmatmul.mubr.f32.gmra.mxu0 %v206
      %v363 = vpop.f32.mrf.mxu0
      %v364 = vadd.f32 0.0, %v363
      %v365 = vpop.f32.mrf.mxu0
      %366 = vmatprep.mubr.f32.mxu0 %v209
      %367 = vmatmul.mubr.f32.gmra.mxu0 %v208
      %v368 = vpop.f32.mrf.mxu0
      %v369 = vadd.f32 0.0, %v368
      %v370 = vpop.f32.mrf.mxu0
      %371 = vmatprep.mubr.f32.mxu0 %v211
      %372 = vmatmul.mubr.f32.gmra.mxu0 %v210
      %v373 = vpop.f32.mrf.mxu0
      %v374 = vadd.f32 0.0, %v373
      %v375 = vpop.f32.mrf.mxu0
      %376 = vmatprep.mubr.f32.mxu0 %v213
      %377 = vmatmul.mubr.f32.gmra.mxu0 %v212
      %v378 = vpop.f32.mrf.mxu0
      %v379 = vadd.f32 0.0, %v378
      %v380 = vpop.f32.mrf.mxu0
      %381 = vmatprep.mubr.f32.mxu0 %v215
      %382 = vmatmul.mubr.f32.gmra.mxu0 %v214
      %v383 = vpop.f32.mrf.mxu0
      %v384 = vadd.f32 0.0, %v383
      %v385 = vpop.f32.mrf.mxu0
      %386 = vmatprep.mubr.f32.mxu0 %v217
      %387 = vmatmul.mubr.f32.gmra.mxu0 %v216
      %v388 = vpop.f32.mrf.mxu0
      %v389 = vadd.f32 0.0, %v388
      %v390 = vpop.f32.mrf.mxu0
      %391 = vmatprep.mubr.f32.mxu0 %v219
      %392 = vmatmul.mubr.f32.gmra.mxu0 %v218
      %v393 = vpop.f32.mrf.mxu0
      %v394 = vadd.f32 0.0, %v393
      %v395 = vpop.f32.mrf.mxu0
      %396 = vdwg.mxu0
      %397 = vst [vmem:[%s182] sm:$0xff] %v319
      %398 = vst [vmem:[%s182 + $0x8] sm:$0xff] %v324
      %399 = vst [vmem:[%s182 + $0x10] sm:$0xff] %v329
      %400 = vst [vmem:[%s182 + $0x18] sm:$0xff] %v334
      %401 = vst [vmem:[%s182 + $0x20] sm:$0xff] %v339
      %402 = vst [vmem:[%s182 + $0x28] sm:$0xff] %v344
      %403 = vst [vmem:[%s182 + $0x30] sm:$0xff] %v349
      %404 = vst [vmem:[%s182 + $0x38] sm:$0xff] %v354
      %405 = vst [vmem:[%s182 + $0x40] sm:$0xff] %v359
      %406 = vst [vmem:[%s182 + $0x48] sm:$0xff] %v364
      %407 = vst [vmem:[%s182 + $0x50] sm:$0xff] %v369
      %408 = vst [vmem:[%s182 + $0x58] sm:$0xff] %v374
      %409 = vst [vmem:[%s182 + $0x60] sm:$0xff] %v379
      %410 = vst [vmem:[%s182 + $0x68] sm:$0xff] %v384
      %411 = vst [vmem:[%s182 + $0x70] sm:$0xff] %v389
      %412 = vst [vmem:[%s182 + $0x78] sm:$0xff] %v394
      %v413 = vadd.f32 %v319, %v324
      %v414 = vadd.f32 %v413, %v329
      %v415 = vadd.f32 %v414, %v334
      %v416 = vadd.f32 %v415, %v339
      %v417 = vadd.f32 %v416, %v344
      %v418 = vadd.f32 %v417, %v349
      %v419 = vadd.f32 %v418, %v354
      %v420 = vadd.f32 %v419, %v359
      %v421 = vadd.f32 %v420, %v364
      %v422 = vadd.f32 %v421, %v369
      %v423 = vadd.f32 %v422, %v374
      %v424 = vadd.f32 %v423, %v379
      %v425 = vadd.f32 %v424, %v384
      %v426 = vadd.f32 %v425, %v389
      %v427 = vadd.f32 %v426, %v394
      %v428 = vrot.slane %v427, 4
      %v429 = vadd.f32 %v427, %v428
      %v430 = vrot.slane %v429, 2
      %v431 = vadd.f32 %v429, %v430
      %v432 = vrot.slane %v431, 1
      %v433 = vadd.f32 %v431, %v432
      %v434 = vmul.f32 %v319, %v319
      %v435 = vmul.f32 %v324, %v324
      %v436 = vmul.f32 %v329, %v329
      %v437 = vmul.f32 %v334, %v334
      %v438 = vmul.f32 %v339, %v339
      %v439 = vmul.f32 %v344, %v344
      %v440 = vmul.f32 %v349, %v349
      %v441 = vmul.f32 %v354, %v354
      %v442 = vmul.f32 %v359, %v359
      %v443 = vmul.f32 %v364, %v364
      %v444 = vmul.f32 %v369, %v369
      %v445 = vmul.f32 %v374, %v374
      %v446 = vmul.f32 %v379, %v379
      %v447 = vmul.f32 %v384, %v384
      %v448 = vmul.f32 %v389, %v389
      %v449 = vmul.f32 %v394, %v394
      %v450 = vadd.f32 %v434, %v435
      %v451 = vadd.f32 %v450, %v436
      %v452 = vadd.f32 %v451, %v437
      %v453 = vadd.f32 %v452, %v438
      %v454 = vadd.f32 %v453, %v439
      %v455 = vadd.f32 %v454, %v440
      %v456 = vadd.f32 %v455, %v441
      %v457 = vadd.f32 %v456, %v442
      %v458 = vadd.f32 %v457, %v443
      %v459 = vadd.f32 %v458, %v444
      %v460 = vadd.f32 %v459, %v445
      %v461 = vadd.f32 %v460, %v446
      %v462 = vadd.f32 %v461, %v447
      %v463 = vadd.f32 %v462, %v448
      %v464 = vadd.f32 %v463, %v449
      %v465 = vrot.slane %v464, 4
      %v466 = vadd.f32 %v464, %v465
      %v467 = vrot.slane %v466, 2
      %v468 = vadd.f32 %v466, %v467
      %v469 = vrot.slane %v468, 1
      %v470 = vadd.f32 %v468, %v469
      %vm471 = vcmask 1040384
      %v472 = vsel %vm471, %v433, %v470
      %vm473 = vcmask 1041408
      %v474 = vsel %vm473, %v472, 0.0
      %475 = vst [vmem:[%s187] sm:$0xff] %v474
      %s476 = smul.u32 16, %s15
      %p477 = scmp.lt.s32.totalorder %s476, 63
      %s478 = scalar_select %p477, %s476, 63
      %s479 = smul.addr %s478, 8
      %s480 = scalar_lea.vmem %s2, %s479
      %p481 = scmp.lt.s32.totalorder %s15, 3
      %s482 = scalar_select %p481, %s15, 3
      %s483 = smul.addr %s482, 8
      %s484 = scalar_lea.vmem %s3, %s483
      // Predicated region
      $region29: #{_lambda_.4} parent=27 // pred_check
        %p485 = pneg %p80
      $region30: #{_lambda_.4} parent=27 // pred_check_branch
        %487 = sbr.rel (%p485) target = $region32
      $region31: #{_lambda_.4} parent=27 // pred_region
        %s488 = smul.u32 16, %s15
      $region32: #{_lambda_.4} parent=27 // pred_fallthru
        _
      // Predicated region
      $region33: #{_lambda_.4} parent=27 // pred_check
        %p489 = pneg %p106
      $region34: #{_lambda_.4} parent=27 // pred_check_branch
        %491 = sbr.rel (%p489) target = $region36
      $region35: #{_lambda_.4} parent=27 // pred_region
        _
      $region36: #{_lambda_.4} parent=27 // pred_fallthru
        _
    $region28: #{_lambda_.4} parent=5 // pred_fallthru
      _
    %p492 = scmp.le.s32.totalorder 2, %s10
    // Predicated region
    $region37: #{_lambda_.4} parent=5 // pred_check
      %p493 = pneg %p492
    $region38: #{_lambda_.4} parent=5 // pred_check_branch
      %495 = sbr.rel (%p493) target = $region40
    $region39: #{_lambda_.4} parent=5 // pred_region
      %s496 = ssub.s32 %s10, 2
      // Predicated region
      $region41: #{_lambda_.4} parent=39 // pred_check
        %p497 = pneg %p86
      $region42: #{_lambda_.4} parent=39 // pred_check_branch
        %499 = sbr.rel (%p497) target = $region44
      $region43: #{_lambda_.4} parent=39 // pred_region
        %s500 = smul.u32 16, %s16
        %p501 = scmp.lt.s32.totalorder %s500, 63
        %s502 = scalar_select %p501, %s500, 63
        %s503 = smul.addr %s502, 8
        %s504 = scalar_lea.vmem %s2, %s503
      $region44: #{_lambda_.4} parent=39 // pred_fallthru
        _
      // Predicated region
      $region45: #{_lambda_.4} parent=39 // pred_check
        %p505 = pneg %p112
      $region46: #{_lambda_.4} parent=39 // pred_check_branch
        %507 = sbr.rel (%p505) target = $region48
      $region47: #{_lambda_.4} parent=39 // pred_region
        %p508 = scmp.lt.s32.totalorder %s16, 3
        %s509 = scalar_select %p508, %s16, 3
        %s510 = smul.addr %s509, 8
        %s511 = scalar_lea.vmem %s3, %s510
      $region48: #{_lambda_.4} parent=39 // pred_fallthru
        _
    $region40: #{_lambda_.4} parent=5 // pred_fallthru
      _
  $region6: #{_lambda_.4} parent=0 // loop_footer
    %s14 = sadd.s32 1, %s10
  $region7: #{_lambda_.4} parent=0 // loop_footer_branch
    %9 = sbr.rel target = $region3
  $region8: #{_lambda_.4} parent=0 // loop_exit
    _

// kernel: _lambda_.7
$region0: #{_lambda_.7}
  #allocation0 [shape = 'u32[]', space=smem, size = 0x4, offset = 0x4, fixed_abs, tag = 'smem constant byte address 0x4 - core index']
  #allocation1 [shape = 'u32[144,128]{1,0:T(1,128)}', space=vmem, size = 0x12000, scoped, tag = 'internal scratch']
  #allocation2 [shape = 'f32[256,128]{1,0:T(8,128)}', space=vmem, size = 0x20000, scoped, tag = 'scratch operand']
  #allocation3 [shape = 'f32[256,128]{1,0:T(8,128)}', space=vmem, size = 0x20000, scoped, tag = 'scratch operand']
  #allocation4 [shape = 'f32[256,128]{1,0:T(8,128)}', space=vmem, size = 0x20000, scoped, tag = 'scratch operand']
  #allocation5 [shape = 'f32[1]{0:T(128)S(6)}', space=smem, size = 0x200, scoped, tag = 'scoped memory for _lambda_.7']
  %s0 = inlined_call_operand.vmem [shape: f32[2,256,128], index: 0, kind: input, shape index: {}]
  %s1 = inlined_call_operand.vmem [shape: f32[2,256,128], index: 1, kind: input, shape index: {}]
  %s2 = inlined_call_operand.vmem [shape: f32[1,128], index: 2, kind: input, shape index: {}]
  %s3 = inlined_call_operand.vmem [shape: f32[1,128], index: 3, kind: input, shape index: {}]
  %s4 = inlined_call_operand.vmem [shape: f32[128,128], index: 4, kind: input, shape index: {}]
  %s5 = inlined_call_operand.vmem [shape: f32[128,128], index: 5, kind: input, shape index: {}]
  %s6 = inlined_call_operand.vmem [shape: f32[2,256,256], index: 6, kind: input, shape index: {}]
  %s7 = inlined_call_operand.vmem [shape: f32[128,128], index: 7, kind: input, shape index: {}]
  %s8 = inlined_call_operand.vmem [shape: f32[128,128], index: 8, kind: input, shape index: {}]
  %s9 = inlined_call_operand.vmem [shape: f32[128,128], index: 9, kind: input, shape index: {}]
  %s10 = inlined_call_operand.vmem [shape: f32[1,128], index: 10, kind: input, shape index: {}]
  %s11 = inlined_call_operand.vmem [shape: f32[1,128], index: 11, kind: input, shape index: {}]
  %s12 = inlined_call_operand.vmem [shape: f32[1,128], index: 12, kind: input, shape index: {}]
  %s13 = inlined_call_operand.<no memory space> [shape: f32[1], index: 13, kind: input, shape index: {}]
  %s14 = inlined_call_operand.vmem [shape: f32[2,256,128], index: 14, kind: output, shape index: {}]
  %s15 = sld [smem:[#allocation0]]
  $region96: #{_lambda_.7} parent=0
    _
  %s17 = ssub.s32 1, %s15
  %s18 = scalar_select 0, %s17, %s15
  %19 = sst [smem:[#allocation5]] %s13
  loop: start=0, step=1, limit=4
  $region2: #{_lambda_.7} parent=0 // loop_pre_header
    _
  $region3: #{_lambda_.7} parent=0 // loop_header
    %s21 = sphi 0, %s25
    %p22 = scmp.ge.s32.totalorder %s21, 4
    %s31 = sphi 0, %s33
    %s34 = sphi 0, %s31
    %s35 = sphi 0, %s34
    %s51 = sphi 0, %s35
    %s57 = sphi 0, %s59
    %s60 = sphi 0, %s57
    %s61 = sphi 0, %s60
    %s77 = sphi 0, %s61
    %s81 = sphi 0, %s81
    %s83 = sphi 0, %s81
    %s84 = sphi 0, %s83
    %s98 = sphi 0, %s84
    %s102 = sphi 0, %s102
    %s104 = sphi 0, %s102
    %s105 = sphi 0, %s104
    %s119 = sphi 0, %s105
    %s123 = sphi 0, %s123
    %s125 = sphi 0, %s123
    %s126 = sphi 0, %s125
    %s140 = sphi 0, %s126
    %s144 = sphi 0, %s144
    %s146 = sphi 0, %s144
    %s147 = sphi 0, %s146
    %s161 = sphi 0, %s147
    %s165 = sphi 0, %s165
    %s167 = sphi 0, %s165
    %s168 = sphi 0, %s167
    %s182 = sphi 0, %s168
    %s186 = sphi 0, %s186
    %s188 = sphi 0, %s186
    %s189 = sphi 0, %s188
    %s203 = sphi 0, %s189
    %s207 = sphi 0, %s207
    %s209 = sphi 0, %s207
    %s210 = sphi 0, %s209
    %s224 = sphi 0, %s210
    %s228 = sphi 0, %s228
    %s230 = sphi 0, %s228
    %s231 = sphi 0, %s230
    %s245 = sphi 0, %s231
    %s249 = sphi 0, %s249
    %s251 = sphi 0, %s249
    %s252 = sphi 0, %s251
    %s266 = sphi 0, %s252
    %s270 = sphi 0, %s270
    %s272 = sphi 0, %s270
    %s273 = sphi 0, %s272
    %s287 = sphi 0, %s273
    %s291 = sphi 0, %s291
    %s293 = sphi 0, %s291
    %s294 = sphi 0, %s293
    %s308 = sphi 0, %s294
    %s312 = sphi 0, %s312
    %s314 = sphi 0, %s312
    %s315 = sphi 0, %s314
    %s329 = sphi 0, %s315
    %s335 = sphi 0, %s337
    %s338 = sphi 0, %s335
    %s339 = sphi 0, %s338
    %s355 = sphi 0, %s339
  $region4: #{_lambda_.7} parent=0 // loop_header_branch
    %24 = sbr.rel (%p22) target = $region8
  $region5: #{_lambda_.7} parent=0 // loop_body
    %s26 = ssub.s32 %s21, 1
    %s27 = ssub.s32 %s21, 2
    %s28 = sadd.s32 %s21, 1
    %s29 = ssub.s32 %s21, %s28
    %p30 = scmp.eq.s32.totalorder %s29, 0
    %s32 = sadd.s32 %s31, 1
    %s33 = scalar_select %p30, %s31, %s32
    %p36 = pneg %p30
    %p37 = scmp.eq.s32.totalorder %s21, 1
    %p38 = por %p36, %p37
    %p39 = scmp.ne.s32.totalorder %s31, %s34
    %p40 = scmp.eq.s32.totalorder %s21, 0
    %p41 = por %p39, %p40
    %p42 = scmp.ne.s32.totalorder %s31, %s34
    %p43 = scmp.eq.s32.totalorder %s26, 1
    %p44 = por %p42, %p43
    %p45 = scmp.ne.s32.totalorder %s34, %s35
    %p46 = scmp.eq.s32.totalorder %s26, 0
    %p47 = por %p45, %p46
    %p48 = scmp.ne.s32.totalorder %s34, %s35
    %p49 = scmp.eq.s32.totalorder %s27, 1
    %p50 = por %p48, %p49
    %p52 = scmp.ne.s32.totalorder %s35, %s51
    %p53 = scmp.eq.s32.totalorder %s27, 0
    %p54 = por %p52, %p53
    %s55 = ssub.s32 %s21, %s28
    %p56 = scmp.eq.s32.totalorder %s55, 0
    %s58 = sadd.s32 %s57, 1
    %s59 = scalar_select %p56, %s57, %s58
    %p62 = pneg %p56
    %p63 = scmp.eq.s32.totalorder %s21, 1
    %p64 = por %p62, %p63
    %p65 = scmp.ne.s32.totalorder %s57, %s60
    %p66 = scmp.eq.s32.totalorder %s21, 0
    %p67 = por %p65, %p66
    %p68 = scmp.ne.s32.totalorder %s57, %s60
    %p69 = scmp.eq.s32.totalorder %s26, 1
    %p70 = por %p68, %p69
    %p71 = scmp.ne.s32.totalorder %s60, %s61
    %p72 = scmp.eq.s32.totalorder %s26, 0
    %p73 = por %p71, %p72
    %p74 = scmp.ne.s32.totalorder %s60, %s61
    %p75 = scmp.eq.s32.totalorder %s27, 1
    %p76 = por %p74, %p75
    %p78 = scmp.ne.s32.totalorder %s61, %s77
    %p79 = scmp.eq.s32.totalorder %s27, 0
    %p80 = por %p78, %p79
    %s82 = sadd.s32 %s81, 1
    %p85 = scmp.eq.s32.totalorder %s21, 1
    %p86 = scmp.ne.s32.totalorder %s81, %s83
    %p87 = scmp.eq.s32.totalorder %s21, 0
    %p88 = por %p86, %p87
    %p89 = scmp.ne.s32.totalorder %s81, %s83
    %p90 = scmp.eq.s32.totalorder %s26, 1
    %p91 = por %p89, %p90
    %p92 = scmp.ne.s32.totalorder %s83, %s84
    %p93 = scmp.eq.s32.totalorder %s26, 0
    %p94 = por %p92, %p93
    %p95 = scmp.ne.s32.totalorder %s83, %s84
    %p96 = scmp.eq.s32.totalorder %s27, 1
    %p97 = por %p95, %p96
    %p99 = scmp.ne.s32.totalorder %s84, %s98
    %p100 = scmp.eq.s32.totalorder %s27, 0
    %p101 = por %p99, %p100
    %s103 = sadd.s32 %s102, 1
    %p106 = scmp.eq.s32.totalorder %s21, 1
    %p107 = scmp.ne.s32.totalorder %s102, %s104
    %p108 = scmp.eq.s32.totalorder %s21, 0
    %p109 = por %p107, %p108
    %p110 = scmp.ne.s32.totalorder %s102, %s104
    %p111 = scmp.eq.s32.totalorder %s26, 1
    %p112 = por %p110, %p111
    %p113 = scmp.ne.s32.totalorder %s104, %s105
    %p114 = scmp.eq.s32.totalorder %s26, 0
    %p115 = por %p113, %p114
    %p116 = scmp.ne.s32.totalorder %s104, %s105
    %p117 = scmp.eq.s32.totalorder %s27, 1
    %p118 = por %p116, %p117
    %p120 = scmp.ne.s32.totalorder %s105, %s119
    %p121 = scmp.eq.s32.totalorder %s27, 0
    %p122 = por %p120, %p121
    %s124 = sadd.s32 %s123, 1
    %p127 = scmp.eq.s32.totalorder %s21, 1
    %p128 = scmp.ne.s32.totalorder %s123, %s125
    %p129 = scmp.eq.s32.totalorder %s21, 0
    %p130 = por %p128, %p129
    %p131 = scmp.ne.s32.totalorder %s123, %s125
    %p132 = scmp.eq.s32.totalorder %s26, 1
    %p133 = por %p131, %p132
    %p134 = scmp.ne.s32.totalorder %s125, %s126
    %p135 = scmp.eq.s32.totalorder %s26, 0
    %p136 = por %p134, %p135
    %p137 = scmp.ne.s32.totalorder %s125, %s126
    %p138 = scmp.eq.s32.totalorder %s27, 1
    %p139 = por %p137, %p138
    %p141 = scmp.ne.s32.totalorder %s126, %s140
    %p142 = scmp.eq.s32.totalorder %s27, 0
    %p143 = por %p141, %p142
    %s145 = sadd.s32 %s144, 1
    %p148 = scmp.eq.s32.totalorder %s21, 1
    %p149 = scmp.ne.s32.totalorder %s144, %s146
    %p150 = scmp.eq.s32.totalorder %s21, 0
    %p151 = por %p149, %p150
    %p152 = scmp.ne.s32.totalorder %s144, %s146
    %p153 = scmp.eq.s32.totalorder %s26, 1
    %p154 = por %p152, %p153
    %p155 = scmp.ne.s32.totalorder %s146, %s147
    %p156 = scmp.eq.s32.totalorder %s26, 0
    %p157 = por %p155, %p156
    %p158 = scmp.ne.s32.totalorder %s146, %s147
    %p159 = scmp.eq.s32.totalorder %s27, 1
    %p160 = por %p158, %p159
    %p162 = scmp.ne.s32.totalorder %s147, %s161
    %p163 = scmp.eq.s32.totalorder %s27, 0
    %p164 = por %p162, %p163
    %s166 = sadd.s32 %s165, 1
    %p169 = scmp.eq.s32.totalorder %s21, 1
    %p170 = scmp.ne.s32.totalorder %s165, %s167
    %p171 = scmp.eq.s32.totalorder %s21, 0
    %p172 = por %p170, %p171
    %p173 = scmp.ne.s32.totalorder %s165, %s167
    %p174 = scmp.eq.s32.totalorder %s26, 1
    %p175 = por %p173, %p174
    %p176 = scmp.ne.s32.totalorder %s167, %s168
    %p177 = scmp.eq.s32.totalorder %s26, 0
    %p178 = por %p176, %p177
    %p179 = scmp.ne.s32.totalorder %s167, %s168
    %p180 = scmp.eq.s32.totalorder %s27, 1
    %p181 = por %p179, %p180
    %p183 = scmp.ne.s32.totalorder %s168, %s182
    %p184 = scmp.eq.s32.totalorder %s27, 0
    %p185 = por %p183, %p184
    %s187 = sadd.s32 %s186, 1
    %p190 = scmp.eq.s32.totalorder %s21, 1
    %p191 = scmp.ne.s32.totalorder %s186, %s188
    %p192 = scmp.eq.s32.totalorder %s21, 0
    %p193 = por %p191, %p192
    %p194 = scmp.ne.s32.totalorder %s186, %s188
    %p195 = scmp.eq.s32.totalorder %s26, 1
    %p196 = por %p194, %p195
    %p197 = scmp.ne.s32.totalorder %s188, %s189
    %p198 = scmp.eq.s32.totalorder %s26, 0
    %p199 = por %p197, %p198
    %p200 = scmp.ne.s32.totalorder %s188, %s189
    %p201 = scmp.eq.s32.totalorder %s27, 1
    %p202 = por %p200, %p201
    %p204 = scmp.ne.s32.totalorder %s189, %s203
    %p205 = scmp.eq.s32.totalorder %s27, 0
    %p206 = por %p204, %p205
    %s208 = sadd.s32 %s207, 1
    %p211 = scmp.eq.s32.totalorder %s21, 1
    %p212 = scmp.ne.s32.totalorder %s207, %s209
    %p213 = scmp.eq.s32.totalorder %s21, 0
    %p214 = por %p212, %p213
    %p215 = scmp.ne.s32.totalorder %s207, %s209
    %p216 = scmp.eq.s32.totalorder %s26, 1
    %p217 = por %p215, %p216
    %p218 = scmp.ne.s32.totalorder %s209, %s210
    %p219 = scmp.eq.s32.totalorder %s26, 0
    %p220 = por %p218, %p219
    %p221 = scmp.ne.s32.totalorder %s209, %s210
    %p222 = scmp.eq.s32.totalorder %s27, 1
    %p223 = por %p221, %p222
    %p225 = scmp.ne.s32.totalorder %s210, %s224
    %p226 = scmp.eq.s32.totalorder %s27, 0
    %p227 = por %p225, %p226
    %s229 = sadd.s32 %s228, 1
    %p232 = scmp.eq.s32.totalorder %s21, 1
    %p233 = scmp.ne.s32.totalorder %s228, %s230
    %p234 = scmp.eq.s32.totalorder %s21, 0
    %p235 = por %p233, %p234
    %p236 = scmp.ne.s32.totalorder %s228, %s230
    %p237 = scmp.eq.s32.totalorder %s26, 1
    %p238 = por %p236, %p237
    %p239 = scmp.ne.s32.totalorder %s230, %s231
    %p240 = scmp.eq.s32.totalorder %s26, 0
    %p241 = por %p239, %p240
    %p242 = scmp.ne.s32.totalorder %s230, %s231
    %p243 = scmp.eq.s32.totalorder %s27, 1
    %p244 = por %p242, %p243
    %p246 = scmp.ne.s32.totalorder %s231, %s245
    %p247 = scmp.eq.s32.totalorder %s27, 0
    %p248 = por %p246, %p247
    %s250 = sadd.s32 %s249, 1
    %p253 = scmp.eq.s32.totalorder %s21, 1
    %p254 = scmp.ne.s32.totalorder %s249, %s251
    %p255 = scmp.eq.s32.totalorder %s21, 0
    %p256 = por %p254, %p255
    %p257 = scmp.ne.s32.totalorder %s249, %s251
    %p258 = scmp.eq.s32.totalorder %s26, 1
    %p259 = por %p257, %p258
    %p260 = scmp.ne.s32.totalorder %s251, %s252
    %p261 = scmp.eq.s32.totalorder %s26, 0
    %p262 = por %p260, %p261
    %p263 = scmp.ne.s32.totalorder %s251, %s252
    %p264 = scmp.eq.s32.totalorder %s27, 1
    %p265 = por %p263, %p264
    %p267 = scmp.ne.s32.totalorder %s252, %s266
    %p268 = scmp.eq.s32.totalorder %s27, 0
    %p269 = por %p267, %p268
    %s271 = sadd.s32 %s270, 1
    %p274 = scmp.eq.s32.totalorder %s21, 1
    %p275 = scmp.ne.s32.totalorder %s270, %s272
    %p276 = scmp.eq.s32.totalorder %s21, 0
    %p277 = por %p275, %p276
    %p278 = scmp.ne.s32.totalorder %s270, %s272
    %p279 = scmp.eq.s32.totalorder %s26, 1
    %p280 = por %p278, %p279
    %p281 = scmp.ne.s32.totalorder %s272, %s273
    %p282 = scmp.eq.s32.totalorder %s26, 0
    %p283 = por %p281, %p282
    %p284 = scmp.ne.s32.totalorder %s272, %s273
    %p285 = scmp.eq.s32.totalorder %s27, 1
    %p286 = por %p284, %p285
    %p288 = scmp.ne.s32.totalorder %s273, %s287
    %p289 = scmp.eq.s32.totalorder %s27, 0
    %p290 = por %p288, %p289
    %s292 = sadd.s32 %s291, 1
    %p295 = scmp.eq.s32.totalorder %s21, 1
    %p296 = scmp.ne.s32.totalorder %s291, %s293
    %p297 = scmp.eq.s32.totalorder %s21, 0
    %p298 = por %p296, %p297
    %p299 = scmp.ne.s32.totalorder %s291, %s293
    %p300 = scmp.eq.s32.totalorder %s26, 1
    %p301 = por %p299, %p300
    %p302 = scmp.ne.s32.totalorder %s293, %s294
    %p303 = scmp.eq.s32.totalorder %s26, 0
    %p304 = por %p302, %p303
    %p305 = scmp.ne.s32.totalorder %s293, %s294
    %p306 = scmp.eq.s32.totalorder %s27, 1
    %p307 = por %p305, %p306
    %p309 = scmp.ne.s32.totalorder %s294, %s308
    %p310 = scmp.eq.s32.totalorder %s27, 0
    %p311 = por %p309, %p310
    %s313 = sadd.s32 %s312, 1
    %p316 = scmp.eq.s32.totalorder %s21, 1
    %p317 = scmp.ne.s32.totalorder %s312, %s314
    %p318 = scmp.eq.s32.totalorder %s21, 0
    %p319 = por %p317, %p318
    %p320 = scmp.ne.s32.totalorder %s312, %s314
    %p321 = scmp.eq.s32.totalorder %s26, 1
    %p322 = por %p320, %p321
    %p323 = scmp.ne.s32.totalorder %s314, %s315
    %p324 = scmp.eq.s32.totalorder %s26, 0
    %p325 = por %p323, %p324
    %p326 = scmp.ne.s32.totalorder %s314, %s315
    %p327 = scmp.eq.s32.totalorder %s27, 1
    %p328 = por %p326, %p327
    %p330 = scmp.ne.s32.totalorder %s315, %s329
    %p331 = scmp.eq.s32.totalorder %s27, 0
    %p332 = por %p330, %p331
    %s333 = ssub.s32 %s21, %s28
    %p334 = scmp.eq.s32.totalorder %s333, 0
    %s336 = sadd.s32 %s335, 1
    %s337 = scalar_select %p334, %s335, %s336
    %p340 = pneg %p334
    %p341 = scmp.eq.s32.totalorder %s21, 1
    %p342 = por %p340, %p341
    %p343 = scmp.ne.s32.totalorder %s335, %s338
    %p344 = scmp.eq.s32.totalorder %s21, 0
    %p345 = por %p343, %p344
    %p346 = scmp.ne.s32.totalorder %s335, %s338
    %p347 = scmp.eq.s32.totalorder %s26, 1
    %p348 = por %p346, %p347
    %p349 = scmp.ne.s32.totalorder %s338, %s339
    %p350 = scmp.eq.s32.totalorder %s26, 0
    %p351 = por %p349, %p350
    %p352 = scmp.ne.s32.totalorder %s338, %s339
    %p353 = scmp.eq.s32.totalorder %s27, 1
    %p354 = por %p352, %p353
    %p356 = scmp.ne.s32.totalorder %s339, %s355
    %p357 = scmp.eq.s32.totalorder %s27, 0
    %p358 = por %p356, %p357
    %p359 = scmp.le.s32.totalorder 1, %s21
    %p360 = scmp.lt.s32.totalorder %s21, 3
    %p361 = pnand %p359, %p360
    %p362 = pneg %p361
    // Predicated region
    $region9: #{_lambda_.7} parent=5 // pred_check
      _
    $region10: #{_lambda_.7} parent=5 // pred_check_branch
      %364 = sbr.rel (%p361) target = $region12
    $region11: #{_lambda_.7} parent=5 // pred_region
      %s365 = ssub.s32 %s21, 1
      // Predicated region
      $region13: #{_lambda_.7} parent=11 // pred_check
        %p366 = pneg %p94
      $region14: #{_lambda_.7} parent=11 // pred_check_branch
        %368 = sbr.rel (%p366) target = $region16
      $region15: #{_lambda_.7} parent=11 // pred_region
        _
      $region16: #{_lambda_.7} parent=11 // pred_fallthru
        _
      // Predicated region
      $region17: #{_lambda_.7} parent=11 // pred_check
        %p369 = pneg %p115
      $region18: #{_lambda_.7} parent=11 // pred_check_branch
        %371 = sbr.rel (%p369) target = $region20
      $region19: #{_lambda_.7} parent=11 // pred_region
        _
      $region20: #{_lambda_.7} parent=11 // pred_fallthru
        _
      // Predicated region
      $region21: #{_lambda_.7} parent=11 // pred_check
        %p372 = pneg %p136
      $region22: #{_lambda_.7} parent=11 // pred_check_branch
        %374 = sbr.rel (%p372) target = $region24
      $region23: #{_lambda_.7} parent=11 // pred_region
        _
      $region24: #{_lambda_.7} parent=11 // pred_fallthru
        _
      // Predicated region
      $region25: #{_lambda_.7} parent=11 // pred_check
        %p375 = pneg %p157
      $region26: #{_lambda_.7} parent=11 // pred_check_branch
        %377 = sbr.rel (%p375) target = $region28
      $region27: #{_lambda_.7} parent=11 // pred_region
        _
      $region28: #{_lambda_.7} parent=11 // pred_fallthru
        _
      // Predicated region
      $region29: #{_lambda_.7} parent=11 // pred_check
        %p378 = pneg %p178
      $region30: #{_lambda_.7} parent=11 // pred_check_branch
        %380 = sbr.rel (%p378) target = $region32
      $region31: #{_lambda_.7} parent=11 // pred_region
        _
      $region32: #{_lambda_.7} parent=11 // pred_fallthru
        _
      // Predicated region
      $region33: #{_lambda_.7} parent=11 // pred_check
        %p381 = pneg %p199
      $region34: #{_lambda_.7} parent=11 // pred_check_branch
        %383 = sbr.rel (%p381) target = $region36
      $region35: #{_lambda_.7} parent=11 // pred_region
        _
      $region36: #{_lambda_.7} parent=11 // pred_fallthru
        _
      // Predicated region
      $region37: #{_lambda_.7} parent=11 // pred_check
        %p384 = pneg %p220
      $region38: #{_lambda_.7} parent=11 // pred_check_branch
        %386 = sbr.rel (%p384) target = $region40
      $region39: #{_lambda_.7} parent=11 // pred_region
        _
      $region40: #{_lambda_.7} parent=11 // pred_fallthru
        _
      // Predicated region
      $region41: #{_lambda_.7} parent=11 // pred_check
        %p387 = pneg %p241
      $region42: #{_lambda_.7} parent=11 // pred_check_branch
        %389 = sbr.rel (%p387) target = $region44
      $region43: #{_lambda_.7} parent=11 // pred_region
        _
      $region44: #{_lambda_.7} parent=11 // pred_fallthru
        _
      // Predicated region
      $region45: #{_lambda_.7} parent=11 // pred_check
        %p390 = pneg %p262
      $region46: #{_lambda_.7} parent=11 // pred_check_branch
        %392 = sbr.rel (%p390) target = $region48
      $region47: #{_lambda_.7} parent=11 // pred_region
        _
      $region48: #{_lambda_.7} parent=11 // pred_fallthru
        _
      // Predicated region
      $region49: #{_lambda_.7} parent=11 // pred_check
        %p393 = pneg %p283
      $region50: #{_lambda_.7} parent=11 // pred_check_branch
        %395 = sbr.rel (%p393) target = $region52
      $region51: #{_lambda_.7} parent=11 // pred_region
        _
      $region52: #{_lambda_.7} parent=11 // pred_fallthru
        _
      // Predicated region
      $region53: #{_lambda_.7} parent=11 // pred_check
        %p396 = pneg %p304
      $region54: #{_lambda_.7} parent=11 // pred_check_branch
        %398 = sbr.rel (%p396) target = $region56
      $region55: #{_lambda_.7} parent=11 // pred_region
        _
      $region56: #{_lambda_.7} parent=11 // pred_fallthru
        _
      // Predicated region
      $region57: #{_lambda_.7} parent=11 // pred_check
        %p399 = pneg %p325
      $region58: #{_lambda_.7} parent=11 // pred_check_branch
        %401 = sbr.rel (%p399) target = $region60
      $region59: #{_lambda_.7} parent=11 // pred_region
        _
      $region60: #{_lambda_.7} parent=11 // pred_fallthru
        _
    $region12: #{_lambda_.7} parent=5 // pred_fallthru
      _
    %p402 = scmp.lt.s32.totalorder %s21, 2
    // Predicated region
    $region61: #{_lambda_.7} parent=5 // pred_check
      %p403 = pneg %p402
    $region62: #{_lambda_.7} parent=5 // pred_check_branch
      %405 = sbr.rel (%p403) target = $region64
    $region63: #{_lambda_.7} parent=5 // pred_region
      // Predicated region
      $region65: #{_lambda_.7} parent=63 // pred_check
        %p406 = pneg %p41
      $region66: #{_lambda_.7} parent=63 // pred_check_branch
        %408 = sbr.rel (%p406) target = $region68
      $region67: #{_lambda_.7} parent=63 // pred_region
        %p409 = scmp.lt.s32.totalorder %s21, 1
        %s410 = scalar_select %p409, %s21, 1
        %s411 = smul.addr %s410, 32
        %s412 = smul.addr %s411, 8
        %s413 = scalar_lea.vmem %s0, %s412
      $region68: #{_lambda_.7} parent=63 // pred_fallthru
        _
      // Predicated region
      $region69: #{_lambda_.7} parent=63 // pred_check
        %p414 = pneg %p67
      $region70: #{_lambda_.7} parent=63 // pred_check_branch
        %416 = sbr.rel (%p414) target = $region72
      $region71: #{_lambda_.7} parent=63 // pred_region
        %p417 = scmp.lt.s32.totalorder %s21, 1
        %s418 = scalar_select %p417, %s21, 1
        %s419 = smul.addr %s418, 32
        %s420 = smul.addr %s419, 8
        %s421 = scalar_lea.vmem %s1, %s420
      $region72: #{_lambda_.7} parent=63 // pred_fallthru
        _
    $region64: #{_lambda_.7} parent=5 // pred_fallthru
      _
    %p422 = scmp.le.s32.totalorder 1, %s21
    %p423 = scmp.lt.s32.totalorder %s21, 3
    %p424 = pnand %p422, %p423
    %p425 = pneg %p424
    // Predicated region
    $region73: #{_lambda_.7} parent=5 // pred_check
      _
    $region74: #{_lambda_.7} parent=5 // pred_check_branch
      %427 = sbr.rel (%p424) target = $region76
    $region75: #{_lambda_.7} parent=5 // pred_region
      %s428 = ssub.s32 %s21, 1
      %p429 = scmp.lt.s32.totalorder %s26, 1
      %s430 = scalar_select %p429, %s26, 1
      %s431 = smul.addr %s430, 32
      %s432 = smul.addr %s431, 8
      %s433 = scalar_lea.vmem %s0, %s432
      %p434 = pneg %p47
      %p435 = pneg %p44
      %p436 = scmp.lt.s32.totalorder %s26, 1
      %s437 = scalar_select %p436, %s26, 1
      %s438 = smul.addr %s437, 32
      %s439 = smul.addr %s438, 8
      %s440 = scalar_lea.vmem %s1, %s439
      %p441 = pneg %p73
      %p442 = pneg %p70
      %p443 = pneg %p94
      %p444 = pneg %p91
      %p445 = pneg %p115
      %p446 = pneg %p112
      %p447 = pneg %p136
      %p448 = pneg %p133
      %p449 = pneg %p157
      %p450 = pneg %p154
      %p451 = pneg %p178
      %p452 = pneg %p175
      %p453 = pneg %p199
      %p454 = pneg %p196
      %p455 = pneg %p220
      %p456 = pneg %p217
      %p457 = pneg %p241
      %p458 = pneg %p238
      %p459 = pneg %p262
      %p460 = pneg %p259
      %p461 = pneg %p283
      %p462 = pneg %p280
      %p463 = pneg %p304
      %p464 = pneg %p301
      %p465 = pneg %p325
      %p466 = pneg %p322
      %p467 = pneg %p351
      %p468 = pneg %p348
      %p469 = scmp.lt.s32.totalorder %s26, 1
      %s470 = scalar_select %p469, %s26, 1
      %s471 = smul.addr %s470, 32
      %s472 = smul.addr %s471, 8
      %s473 = scalar_lea.vmem %s14, %s472
      %p474 = scmp.lt.s32.totalorder %s26, 1
      %s475 = scalar_select %p474, %s26, 1
      %s476 = smul.addr %s475, 32
      %s477 = smul.addr %s476, 8
      %s478 = scalar_lea.vmem %s0, %s477
      %p479 = scmp.lt.s32.totalorder %s26, 1
      %s480 = scalar_select %p479, %s26, 1
      %s481 = smul.addr %s480, 32
      %s482 = smul.addr %s481, 8
      %s483 = scalar_lea.vmem %s1, %s482
      %p484 = scmp.lt.s32.totalorder %s26, 1
      %s485 = scalar_select %p484, %s26, 1
      %s486 = smul.addr %s485, 32
      %s487 = smul.addr %s486, 8
      %s488 = scalar_lea.vmem %s14, %s487
      %v489 = vld [vmem:[%s478] sm:$0xff]
      %v490 = vld [vmem:[%s478 + $0x8] sm:$0xff]
      %v491 = vld [vmem:[%s478 + $0x10] sm:$0xff]
      %v492 = vld [vmem:[%s478 + $0x18] sm:$0xff]
      %v493 = vld [vmem:[%s478 + $0x20] sm:$0xff]
      %v494 = vld [vmem:[%s478 + $0x28] sm:$0xff]
      %v495 = vld [vmem:[%s478 + $0x30] sm:$0xff]
      %v496 = vld [vmem:[%s478 + $0x38] sm:$0xff]
      %v497 = vld [vmem:[%s478 + $0x40] sm:$0xff]
      %v498 = vld [vmem:[%s478 + $0x48] sm:$0xff]
      %v499 = vld [vmem:[%s478 + $0x50] sm:$0xff]
      %v500 = vld [vmem:[%s478 + $0x58] sm:$0xff]
      %v501 = vld [vmem:[%s478 + $0x60] sm:$0xff]
      %v502 = vld [vmem:[%s478 + $0x68] sm:$0xff]
      %v503 = vld [vmem:[%s478 + $0x70] sm:$0xff]
      %v504 = vld [vmem:[%s478 + $0x78] sm:$0xff]
      %v505 = vld [vmem:[%s478 + $0x80] sm:$0xff]
      %v506 = vld [vmem:[%s478 + $0x88] sm:$0xff]
      %v507 = vld [vmem:[%s478 + $0x90] sm:$0xff]
      %v508 = vld [vmem:[%s478 + $0x98] sm:$0xff]
      %v509 = vld [vmem:[%s478 + $0xa0] sm:$0xff]
      %v510 = vld [vmem:[%s478 + $0xa8] sm:$0xff]
      %v511 = vld [vmem:[%s478 + $0xb0] sm:$0xff]
      %v512 = vld [vmem:[%s478 + $0xb8] sm:$0xff]
      %v513 = vld [vmem:[%s478 + $0xc0] sm:$0xff]
      %v514 = vld [vmem:[%s478 + $0xc8] sm:$0xff]
      %v515 = vld [vmem:[%s478 + $0xd0] sm:$0xff]
      %v516 = vld [vmem:[%s478 + $0xd8] sm:$0xff]
      %v517 = vld [vmem:[%s478 + $0xe0] sm:$0xff]
      %v518 = vld [vmem:[%s478 + $0xe8] sm:$0xff]
      %v519 = vld [vmem:[%s478 + $0xf0] sm:$0xff]
      %v520 = vld [vmem:[%s478 + $0xf8] sm:$0xff]
      %v521 = vld [vmem:[%s2] sm:$0x1]
      %v523 = vlaneseq
      %v524 = vshrl.u32 %v523, 7
      %v525 = vsub.s32 0, %v524
      %v526 = vrot.slane %v521, %v525
      %v528 = vmul.f32 %v489, %v526
      %v529 = vmul.f32 %v490, %v526
      %v530 = vmul.f32 %v491, %v526
      %v531 = vmul.f32 %v492, %v526
      %v532 = vmul.f32 %v493, %v526
      %v533 = vmul.f32 %v494, %v526
      %v534 = vmul.f32 %v495, %v526
      %v535 = vmul.f32 %v496, %v526
      %v536 = vmul.f32 %v497, %v526
      %v537 = vmul.f32 %v498, %v526
      %v538 = vmul.f32 %v499, %v526
      %v539 = vmul.f32 %v500, %v526
      %v540 = vmul.f32 %v501, %v526
      %v541 = vmul.f32 %v502, %v526
      %v542 = vmul.f32 %v503, %v526
      %v543 = vmul.f32 %v504, %v526
      %v544 = vmul.f32 %v505, %v526
      %v545 = vmul.f32 %v506, %v526
      %v546 = vmul.f32 %v507, %v526
      %v547 = vmul.f32 %v508, %v526
      %v548 = vmul.f32 %v509, %v526
      %v549 = vmul.f32 %v510, %v526
      %v550 = vmul.f32 %v511, %v526
      %v551 = vmul.f32 %v512, %v526
      %v552 = vmul.f32 %v513, %v526
      %v553 = vmul.f32 %v514, %v526
      %v554 = vmul.f32 %v515, %v526
      %v555 = vmul.f32 %v516, %v526
      %v556 = vmul.f32 %v517, %v526
      %v557 = vmul.f32 %v518, %v526
      %v558 = vmul.f32 %v519, %v526
      %v559 = vmul.f32 %v520, %v526
      %v560 = vld [vmem:[%s3] sm:$0x1]
      %v562 = vlaneseq
      %v563 = vshrl.u32 %v562, 7
      %v564 = vsub.s32 0, %v563
      %v565 = vrot.slane %v560, %v564
      %v567 = vadd.f32 %v528, %v565
      %v568 = vadd.f32 %v529, %v565
      %v569 = vadd.f32 %v530, %v565
      %v570 = vadd.f32 %v531, %v565
      %v571 = vadd.f32 %v532, %v565
      %v572 = vadd.f32 %v533, %v565
      %v573 = vadd.f32 %v534, %v565
      %v574 = vadd.f32 %v535, %v565
      %v575 = vadd.f32 %v536, %v565
      %v576 = vadd.f32 %v537, %v565
      %v577 = vadd.f32 %v538, %v565
      %v578 = vadd.f32 %v539, %v565
      %v579 = vadd.f32 %v540, %v565
      %v580 = vadd.f32 %v541, %v565
      %v581 = vadd.f32 %v542, %v565
      %v582 = vadd.f32 %v543, %v565
      %v583 = vadd.f32 %v544, %v565
      %v584 = vadd.f32 %v545, %v565
      %v585 = vadd.f32 %v546, %v565
      %v586 = vadd.f32 %v547, %v565
      %v587 = vadd.f32 %v548, %v565
      %v588 = vadd.f32 %v549, %v565
      %v589 = vadd.f32 %v550, %v565
      %v590 = vadd.f32 %v551, %v565
      %v591 = vadd.f32 %v552, %v565
      %v592 = vadd.f32 %v553, %v565
      %v593 = vadd.f32 %v554, %v565
      %v594 = vadd.f32 %v555, %v565
      %v595 = vadd.f32 %v556, %v565
      %v596 = vadd.f32 %v557, %v565
      %v597 = vadd.f32 %v558, %v565
      %v598 = vadd.f32 %v559, %v565
      %v599 = vld [vmem:[%s483] sm:$0xff]
      %v600 = vld [vmem:[%s483 + $0x8] sm:$0xff]
      %v601 = vld [vmem:[%s483 + $0x10] sm:$0xff]
      %v602 = vld [vmem:[%s483 + $0x18] sm:$0xff]
      %v603 = vld [vmem:[%s483 + $0x20] sm:$0xff]
      %v604 = vld [vmem:[%s483 + $0x28] sm:$0xff]
      %v605 = vld [vmem:[%s483 + $0x30] sm:$0xff]
      %v606 = vld [vmem:[%s483 + $0x38] sm:$0xff]
      %v607 = vld [vmem:[%s483 + $0x40] sm:$0xff]
      %v608 = vld [vmem:[%s483 + $0x48] sm:$0xff]
      %v609 = vld [vmem:[%s483 + $0x50] sm:$0xff]
      %v610 = vld [vmem:[%s483 + $0x58] sm:$0xff]
      %v611 = vld [vmem:[%s483 + $0x60] sm:$0xff]
      %v612 = vld [vmem:[%s483 + $0x68] sm:$0xff]
      %v613 = vld [vmem:[%s483 + $0x70] sm:$0xff]
      %v614 = vld [vmem:[%s483 + $0x78] sm:$0xff]
      %v615 = vld [vmem:[%s483 + $0x80] sm:$0xff]
      %v616 = vld [vmem:[%s483 + $0x88] sm:$0xff]
      %v617 = vld [vmem:[%s483 + $0x90] sm:$0xff]
      %v618 = vld [vmem:[%s483 + $0x98] sm:$0xff]
      %v619 = vld [vmem:[%s483 + $0xa0] sm:$0xff]
      %v620 = vld [vmem:[%s483 + $0xa8] sm:$0xff]
      %v621 = vld [vmem:[%s483 + $0xb0] sm:$0xff]
      %v622 = vld [vmem:[%s483 + $0xb8] sm:$0xff]
      %v623 = vld [vmem:[%s483 + $0xc0] sm:$0xff]
      %v624 = vld [vmem:[%s483 + $0xc8] sm:$0xff]
      %v625 = vld [vmem:[%s483 + $0xd0] sm:$0xff]
      %v626 = vld [vmem:[%s483 + $0xd8] sm:$0xff]
      %v627 = vld [vmem:[%s483 + $0xe0] sm:$0xff]
      %v628 = vld [vmem:[%s483 + $0xe8] sm:$0xff]
      %v629 = vld [vmem:[%s483 + $0xf0] sm:$0xff]
      %v630 = vld [vmem:[%s483 + $0xf8] sm:$0xff]
      %v631 = vadd.f32 %v567, %v599
      %v632 = vadd.f32 %v568, %v600
      %v633 = vadd.f32 %v569, %v601
      %v634 = vadd.f32 %v570, %v602
      %v635 = vadd.f32 %v571, %v603
      %v636 = vadd.f32 %v572, %v604
      %v637 = vadd.f32 %v573, %v605
      %v638 = vadd.f32 %v574, %v606
      %v639 = vadd.f32 %v575, %v607
      %v640 = vadd.f32 %v576, %v608
      %v641 = vadd.f32 %v577, %v609
      %v642 = vadd.f32 %v578, %v610
      %v643 = vadd.f32 %v579, %v611
      %v644 = vadd.f32 %v580, %v612
      %v645 = vadd.f32 %v581, %v613
      %v646 = vadd.f32 %v582, %v614
      %v647 = vadd.f32 %v583, %v615
      %v648 = vadd.f32 %v584, %v616
      %v649 = vadd.f32 %v585, %v617
      %v650 = vadd.f32 %v586, %v618
      %v651 = vadd.f32 %v587, %v619
      %v652 = vadd.f32 %v588, %v620
      %v653 = vadd.f32 %v589, %v621
      %v654 = vadd.f32 %v590, %v622
      %v655 = vadd.f32 %v591, %v623
      %v656 = vadd.f32 %v592, %v624
      %v657 = vadd.f32 %v593, %v625
      %v658 = vadd.f32 %v594, %v626
      %v659 = vadd.f32 %v595, %v627
      %v660 = vadd.f32 %v596, %v628
      %v661 = vadd.f32 %v597, %v629
      %v662 = vadd.f32 %v598, %v630
      %v663 = vmax.f32 %v631, 0.0
      %v664 = vmax.f32 %v632, 0.0
      %v665 = vmax.f32 %v633, 0.0
      %v666 = vmax.f32 %v634, 0.0
      %v667 = vmax.f32 %v635, 0.0
      %v668 = vmax.f32 %v636, 0.0
      %v669 = vmax.f32 %v637, 0.0
      %v670 = vmax.f32 %v638, 0.0
      %v671 = vmax.f32 %v639, 0.0
      %v672 = vmax.f32 %v640, 0.0
      %v673 = vmax.f32 %v641, 0.0
      %v674 = vmax.f32 %v642, 0.0
      %v675 = vmax.f32 %v643, 0.0
      %v676 = vmax.f32 %v644, 0.0
      %v677 = vmax.f32 %v645, 0.0
      %v678 = vmax.f32 %v646, 0.0
      %v679 = vmax.f32 %v647, 0.0
      %v680 = vmax.f32 %v648, 0.0
      %v681 = vmax.f32 %v649, 0.0
      %v682 = vmax.f32 %v650, 0.0
      %v683 = vmax.f32 %v651, 0.0
      %v684 = vmax.f32 %v652, 0.0
      %v685 = vmax.f32 %v653, 0.0
      %v686 = vmax.f32 %v654, 0.0
      %v687 = vmax.f32 %v655, 0.0
      %v688 = vmax.f32 %v656, 0.0
      %v689 = vmax.f32 %v657, 0.0
      %v690 = vmax.f32 %v658, 0.0
      %v691 = vmax.f32 %v659, 0.0
      %v692 = vmax.f32 %v660, 0.0
      %v693 = vmax.f32 %v661, 0.0
      %v694 = vmax.f32 %v662, 0.0
      %v695 = vadd.f32 %v663, %v664
      %v696 = vadd.f32 %v695, %v665
      %v697 = vadd.f32 %v696, %v666
      %v698 = vadd.f32 %v697, %v667
      %v699 = vadd.f32 %v698, %v668
      %v700 = vadd.f32 %v699, %v669
      %v701 = vadd.f32 %v700, %v670
      %v702 = vadd.f32 %v701, %v671
      %v703 = vadd.f32 %v702, %v672
      %v704 = vadd.f32 %v703, %v673
      %v705 = vadd.f32 %v704, %v674
      %v706 = vadd.f32 %v705, %v675
      %v707 = vadd.f32 %v706, %v676
      %v708 = vadd.f32 %v707, %v677
      %v709 = vadd.f32 %v708, %v678
      %v710 = vadd.f32 %v709, %v679
      %v711 = vadd.f32 %v710, %v680
      %v712 = vadd.f32 %v711, %v681
      %v713 = vadd.f32 %v712, %v682
      %v714 = vadd.f32 %v713, %v683
      %v715 = vadd.f32 %v714, %v684
      %v716 = vadd.f32 %v715, %v685
      %v717 = vadd.f32 %v716, %v686
      %v718 = vadd.f32 %v717, %v687
      %v719 = vadd.f32 %v718, %v688
      %v720 = vadd.f32 %v719, %v689
      %v721 = vadd.f32 %v720, %v690
      %v722 = vadd.f32 %v721, %v691
      %v723 = vadd.f32 %v722, %v692
      %v724 = vadd.f32 %v723, %v693
      %v725 = vadd.f32 %v724, %v694
      %v726 = vrot.slane %v725, 4
      %v727 = vadd.f32 %v725, %v726
      %v728 = vrot.slane %v727, 2
      %v729 = vadd.f32 %v727, %v728
      %v730 = vrot.slane %v729, 1
      %v731 = vadd.f32 %v729, %v730
      %v732 = vmul.f32 %v731, 0.00390625
      %v733 = vmax.f32 %v663, %v667
      %v734 = vmax.f32 %v664, %v668
      %v735 = vmax.f32 %v665, %v669
      %v736 = vmax.f32 %v666, %v670
      %v737 = vmax.f32 %v733, %v671
      %v738 = vmax.f32 %v734, %v672
      %v739 = vmax.f32 %v735, %v673
      %v740 = vmax.f32 %v736, %v674
      %v741 = vmax.f32 %v737, %v675
      %v742 = vmax.f32 %v738, %v676
      %v743 = vmax.f32 %v739, %v677
      %v744 = vmax.f32 %v740, %v678
      %v745 = vmax.f32 %v741, %v679
      %v746 = vmax.f32 %v742, %v680
      %v747 = vmax.f32 %v743, %v681
      %v748 = vmax.f32 %v744, %v682
      %v749 = vmax.f32 %v745, %v683
      %v750 = vmax.f32 %v746, %v684
      %v751 = vmax.f32 %v747, %v685
      %v752 = vmax.f32 %v748, %v686
      %v753 = vmax.f32 %v749, %v687
      %v754 = vmax.f32 %v750, %v688
      %v755 = vmax.f32 %v751, %v689
      %v756 = vmax.f32 %v752, %v690
      %v757 = vmax.f32 %v753, %v691
      %v758 = vmax.f32 %v754, %v692
      %v759 = vmax.f32 %v755, %v693
      %v760 = vmax.f32 %v756, %v694
      %v761 = vmax.f32 %v757, %v758
      %v762 = vmax.f32 %v759, %v760
      %v763 = vmax.f32 %v761, %v762
      %v764 = vrot.slane %v763, 4
      %v765 = vmax.f32 %v763, %v764
      %v766 = vrot.slane %v765, 2
      %v767 = vmax.f32 %v765, %v766
      %v768 = vrot.slane %v767, 1
      %v769 = vmax.f32 %v767, %v768
      %v770 = vld [vmem:[%s4] sm:$0xff]
      %v771 = vld [vmem:[%s4 + $0x8] sm:$0xff]
      %v772 = vld [vmem:[%s4 + $0x10] sm:$0xff]
      %v773 = vld [vmem:[%s4 + $0x18] sm:$0xff]
      %v774 = vld [vmem:[%s4 + $0x20] sm:$0xff]
      %v775 = vld [vmem:[%s4 + $0x28] sm:$0xff]
      %v776 = vld [vmem:[%s4 + $0x30] sm:$0xff]
      %v777 = vld [vmem:[%s4 + $0x38] sm:$0xff]
      %v778 = vld [vmem:[%s4 + $0x40] sm:$0xff]
      %v779 = vld [vmem:[%s4 + $0x48] sm:$0xff]
      %v780 = vld [vmem:[%s4 + $0x50] sm:$0xff]
      %v781 = vld [vmem:[%s4 + $0x58] sm:$0xff]
      %v782 = vld [vmem:[%s4 + $0x60] sm:$0xff]
      %v783 = vld [vmem:[%s4 + $0x68] sm:$0xff]
      %v784 = vld [vmem:[%s4 + $0x70] sm:$0xff]
      %v785 = vld [vmem:[%s4 + $0x78] sm:$0xff]
      %786 = vmatprep.subr.mxu0 0.0
      %787 = vmatpush1.msra.mxu0 %v785
      %788 = vmatprep.subr.mxu0 0.0
      %789 = vmatpush1.msra.mxu0 %v784
      %790 = vmatprep.subr.mxu0 0.0
      %791 = vmatpush1.msra.mxu0 %v783
      %792 = vmatprep.subr.mxu0 0.0
      %793 = vmatpush1.msra.mxu0 %v782
      %794 = vmatprep.subr.mxu0 0.0
      %795 = vmatpush1.msra.mxu0 %v781
      %796 = vmatprep.subr.mxu0 0.0
      %797 = vmatpush1.msra.mxu0 %v780
      %798 = vmatprep.subr.mxu0 0.0
      %799 = vmatpush1.msra.mxu0 %v779
      %800 = vmatprep.subr.mxu0 0.0
      %801 = vmatpush1.msra.mxu0 %v778
      %802 = vmatprep.subr.mxu0 0.0
      %803 = vmatpush1.msra.mxu0 %v777
      %804 = vmatprep.subr.mxu0 0.0
      %805 = vmatpush1.msra.mxu0 %v776
      %806 = vmatprep.subr.mxu0 0.0
      %807 = vmatpush1.msra.mxu0 %v775
      %808 = vmatprep.subr.mxu0 0.0
      %809 = vmatpush1.msra.mxu0 %v774
      %810 = vmatprep.subr.mxu0 0.0
      %811 = vmatpush1.msra.mxu0 %v773
      %812 = vmatprep.subr.mxu0 0.0
      %813 = vmatpush1.msra.mxu0 %v772
      %814 = vmatprep.subr.mxu0 0.0
      %815 = vmatpush1.msra.mxu0 %v771
      %816 = vmatprep.subr.mxu0 0.0
      %817 = vmatpush1.msra.mxu0 %v770
      %818 = vmatprep.subr.mxu0 0.0
      %819 = vmatpush2.msra.mxu0 0.0
      %820 = vmatprep.subr.mxu0 0.0
      %821 = vmatpush2.msra.mxu0 0.0
      %822 = vmatprep.subr.mxu0 0.0
      %823 = vmatpush2.msra.mxu0 0.0
      %824 = vmatprep.subr.mxu0 0.0
      %825 = vmatpush2.msra.mxu0 0.0
      %826 = vmatprep.subr.mxu0 0.0
      %827 = vmatpush2.msra.mxu0 0.0
      %828 = vmatprep.subr.mxu0 0.0
      %829 = vmatpush2.msra.mxu0 0.0
      %830 = vmatprep.subr.mxu0 0.0
      %831 = vmatpush2.msra.mxu0 0.0
      %832 = vmatprep.subr.mxu0 0.0
      %833 = vmatpush2.msra.mxu0 0.0
      %834 = vmatprep.subr.mxu0 0.0
      %835 = vmatpush2.msra.mxu0 0.0
      %836 = vmatprep.subr.mxu0 0.0
      %837 = vmatpush2.msra.mxu0 0.0
      %838 = vmatprep.subr.mxu0 0.0
      %839 = vmatpush2.msra.mxu0 0.0
      %840 = vmatprep.subr.mxu0 0.0
      %841 = vmatpush2.msra.mxu0 0.0
      %842 = vmatprep.subr.mxu0 0.0
      %843 = vmatpush2.msra.mxu0 0.0
      %844 = vmatprep.subr.mxu0 0.0
      %845 = vmatpush2.msra.mxu0 0.0
      %846 = vmatprep.subr.mxu0 0.0
      %847 = vmatpush2.msra.mxu0 0.0
      %848 = vmatprep.subr.mxu0 0.0
      %849 = vmatpush2.msra.mxu0 0.0
      %850 = vmatprep.mubr.f32.mxu0 0.0
      %851 = vmatmul.mubr.f32.gmra.mxu0 %v732
      %v852 = vpop.f32.mrf.mxu0
      %v853 = vadd.f32 0.0, %v852
      %v854 = vpop.f32.mrf.mxu0
      %855 = vdwg.mxu0
      %v856 = vmax.f32 %v853, 0.0
      %v857 = vld [vmem:[%s5] sm:$0xff]
      %v858 = vld [vmem:[%s5 + $0x8] sm:$0xff]
      %v859 = vld [vmem:[%s5 + $0x10] sm:$0xff]
      %v860 = vld [vmem:[%s5 + $0x18] sm:$0xff]
      %v861 = vld [vmem:[%s5 + $0x20] sm:$0xff]
      %v862 = vld [vmem:[%s5 + $0x28] sm:$0xff]
      %v863 = vld [vmem:[%s5 + $0x30] sm:$0xff]
      %v864 = vld [vmem:[%s5 + $0x38] sm:$0xff]
      %v865 = vld [vmem:[%s5 + $0x40] sm:$0xff]
      %v866 = vld [vmem:[%s5 + $0x48] sm:$0xff]
      %v867 = vld [vmem:[%s5 + $0x50] sm:$0xff]
      %v868 = vld [vmem:[%s5 + $0x58] sm:$0xff]
      %v869 = vld [vmem:[%s5 + $0x60] sm:$0xff]
      %v870 = vld [vmem:[%s5 + $0x68] sm:$0xff]
      %v871 = vld [vmem:[%s5 + $0x70] sm:$0xff]
      %v872 = vld [vmem:[%s5 + $0x78] sm:$0xff]
      %873 = vmatprep.subr.mxu0 0.0
      %874 = vmatpush1.msra.mxu0 %v785
      %875 = vmatprep.subr.mxu0 0.0
      %876 = vmatpush1.msra.mxu0 %v784
      %877 = vmatprep.subr.mxu0 0.0
      %878 = vmatpush1.msra.mxu0 %v783
      %879 = vmatprep.subr.mxu0 0.0
      %880 = vmatpush1.msra.mxu0 %v782
      %881 = vmatprep.subr.mxu0 0.0
      %882 = vmatpush1.msra.mxu0 %v781
      %883 = vmatprep.subr.mxu0 0.0
      %884 = vmatpush1.msra.mxu0 %v780
      %885 = vmatprep.subr.mxu0 0.0
      %886 = vmatpush1.msra.mxu0 %v779
      %887 = vmatprep.subr.mxu0 0.0
      %888 = vmatpush1.msra.mxu0 %v778
      %889 = vmatprep.subr.mxu0 0.0
      %890 = vmatpush1.msra.mxu0 %v777
      %891 = vmatprep.subr.mxu0 0.0
      %892 = vmatpush1.msra.mxu0 %v776
      %893 = vmatprep.subr.mxu0 0.0
      %894 = vmatpush1.msra.mxu0 %v775
      %895 = vmatprep.subr.mxu0 0.0
      %896 = vmatpush1.msra.mxu0 %v774
      %897 = vmatprep.subr.mxu0 0.0
      %898 = vmatpush1.msra.mxu0 %v773
      %899 = vmatprep.subr.mxu0 0.0
      %900 = vmatpush1.msra.mxu0 %v772
      %901 = vmatprep.subr.mxu0 0.0
      %902 = vmatpush1.msra.mxu0 %v771
      %903 = vmatprep.subr.mxu0 0.0
      %904 = vmatpush1.msra.mxu0 %v770
      %905 = vmatprep.subr.mxu0 0.0
      %906 = vmatpush2.msra.mxu0 0.0
      %907 = vmatprep.subr.mxu0 0.0
      %908 = vmatpush2.msra.mxu0 0.0
      %909 = vmatprep.subr.mxu0 0.0
      %910 = vmatpush2.msra.mxu0 0.0
      %911 = vmatprep.subr.mxu0 0.0
      %912 = vmatpush2.msra.mxu0 0.0
      %913 = vmatprep.subr.mxu0 0.0
      %914 = vmatpush2.msra.mxu0 0.0
      %915 = vmatprep.subr.mxu0 0.0
      %916 = vmatpush2.msra.mxu0 0.0
      %917 = vmatprep.subr.mxu0 0.0
      %918 = vmatpush2.msra.mxu0 0.0
      %919 = vmatprep.subr.mxu0 0.0
      %920 = vmatpush2.msra.mxu0 0.0
      %921 = vmatprep.subr.mxu0 0.0
      %922 = vmatpush2.msra.mxu0 0.0
      %923 = vmatprep.subr.mxu0 0.0
      %924 = vmatpush2.msra.mxu0 0.0
      %925 = vmatprep.subr.mxu0 0.0
      %926 = vmatpush2.msra.mxu0 0.0
      %927 = vmatprep.subr.mxu0 0.0
      %928 = vmatpush2.msra.mxu0 0.0
      %929 = vmatprep.subr.mxu0 0.0
      %930 = vmatpush2.msra.mxu0 0.0
      %931 = vmatprep.subr.mxu0 0.0
      %932 = vmatpush2.msra.mxu0 0.0
      %933 = vmatprep.subr.mxu0 0.0
      %934 = vmatpush2.msra.mxu0 0.0
      %935 = vmatprep.subr.mxu0 0.0
      %936 = vmatpush2.msra.mxu0 0.0
      %937 = vmatprep.mubr.f32.mxu0 0.0
      %938 = vmatmul.mubr.f32.gmra.mxu0 %v769
      %v939 = vpop.f32.mrf.mxu0
      %v940 = vadd.f32 0.0, %v939
      %v941 = vpop.f32.mrf.mxu0
      %942 = vdwg.mxu0
      %v943 = vmax.f32 %v940, 0.0
      %944 = vmatprep.subr.mxu0 0.0
      %945 = vmatpush1.msra.mxu0 %v872
      %946 = vmatprep.subr.mxu0 0.0
      %947 = vmatpush1.msra.mxu0 %v871
      %948 = vmatprep.subr.mxu0 0.0
      %949 = vmatpush1.msra.mxu0 %v870
      %950 = vmatprep.subr.mxu0 0.0
      %951 = vmatpush1.msra.mxu0 %v869
      %952 = vmatprep.subr.mxu0 0.0
      %953 = vmatpush1.msra.mxu0 %v868
      %954 = vmatprep.subr.mxu0 0.0
      %955 = vmatpush1.msra.mxu0 %v867
      %956 = vmatprep.subr.mxu0 0.0
      %957 = vmatpush1.msra.mxu0 %v866
      %958 = vmatprep.subr.mxu0 0.0
      %959 = vmatpush1.msra.mxu0 %v865
      %960 = vmatprep.subr.mxu0 0.0
      %961 = vmatpush1.msra.mxu0 %v864
      %962 = vmatprep.subr.mxu0 0.0
      %963 = vmatpush1.msra.mxu0 %v863
      %964 = vmatprep.subr.mxu0 0.0
      %965 = vmatpush1.msra.mxu0 %v862
      %966 = vmatprep.subr.mxu0 0.0
      %967 = vmatpush1.msra.mxu0 %v861
      %968 = vmatprep.subr.mxu0 0.0
      %969 = vmatpush1.msra.mxu0 %v860
      %970 = vmatprep.subr.mxu0 0.0
      %971 = vmatpush1.msra.mxu0 %v859
      %972 = vmatprep.subr.mxu0 0.0
      %973 = vmatpush1.msra.mxu0 %v858
      %974 = vmatprep.subr.mxu0 0.0
      %975 = vmatpush1.msra.mxu0 %v857
      %976 = vmatprep.subr.mxu0 0.0
      %977 = vmatpush2.msra.mxu0 0.0
      %978 = vmatprep.subr.mxu0 0.0
      %979 = vmatpush2.msra.mxu0 0.0
      %980 = vmatprep.subr.mxu0 0.0
      %981 = vmatpush2.msra.mxu0 0.0
      %982 = vmatprep.subr.mxu0 0.0
      %983 = vmatpush2.msra.mxu0 0.0
      %984 = vmatprep.subr.mxu0 0.0
      %985 = vmatpush2.msra.mxu0 0.0
      %986 = vmatprep.subr.mxu0 0.0
      %987 = vmatpush2.msra.mxu0 0.0
      %988 = vmatprep.subr.mxu0 0.0
      %989 = vmatpush2.msra.mxu0 0.0
      %990 = vmatprep.subr.mxu0 0.0
      %991 = vmatpush2.msra.mxu0 0.0
      %992 = vmatprep.subr.mxu0 0.0
      %993 = vmatpush2.msra.mxu0 0.0
      %994 = vmatprep.subr.mxu0 0.0
      %995 = vmatpush2.msra.mxu0 0.0
      %996 = vmatprep.subr.mxu0 0.0
      %997 = vmatpush2.msra.mxu0 0.0
      %998 = vmatprep.subr.mxu0 0.0
      %999 = vmatpush2.msra.mxu0 0.0
      %1000 = vmatprep.subr.mxu0 0.0
      %1001 = vmatpush2.msra.mxu0 0.0
      %1002 = vmatprep.subr.mxu0 0.0
      %1003 = vmatpush2.msra.mxu0 0.0
      %1004 = vmatprep.subr.mxu0 0.0
      %1005 = vmatpush2.msra.mxu0 0.0
      %1006 = vmatprep.subr.mxu0 0.0
      %1007 = vmatpush2.msra.mxu0 0.0
      %1008 = vmatprep.mubr.f32.mxu0 0.0
      %1009 = vmatmul.mubr.f32.gmra.mxu0 %v943
      %v1010 = vpop.f32.mrf.mxu0
      %v1011 = vadd.f32 0.0, %v1010
      %v1012 = vpop.f32.mrf.mxu0
      %1013 = vdwg.mxu0
      %1014 = vmatprep.subr.mxu0 0.0
      %1015 = vmatpush1.msra.mxu0 %v872
      %1016 = vmatprep.subr.mxu0 0.0
      %1017 = vmatpush1.msra.mxu0 %v871
      %1018 = vmatprep.subr.mxu0 0.0
      %1019 = vmatpush1.msra.mxu0 %v870
      %1020 = vmatprep.subr.mxu0 0.0
      %1021 = vmatpush1.msra.mxu0 %v869
      %1022 = vmatprep.subr.mxu0 0.0
      %1023 = vmatpush1.msra.mxu0 %v868
      %1024 = vmatprep.subr.mxu0 0.0
      %1025 = vmatpush1.msra.mxu0 %v867
      %1026 = vmatprep.subr.mxu0 0.0
      %1027 = vmatpush1.msra.mxu0 %v866
      %1028 = vmatprep.subr.mxu0 0.0
      %1029 = vmatpush1.msra.mxu0 %v865
      %1030 = vmatprep.subr.mxu0 0.0
      %1031 = vmatpush1.msra.mxu0 %v864
      %1032 = vmatprep.subr.mxu0 0.0
      %1033 = vmatpush1.msra.mxu0 %v863
      %1034 = vmatprep.subr.mxu0 0.0
      %1035 = vmatpush1.msra.mxu0 %v862
      %1036 = vmatprep.subr.mxu0 0.0
      %1037 = vmatpush1.msra.mxu0 %v861
      %1038 = vmatprep.subr.mxu0 0.0
      %1039 = vmatpush1.msra.mxu0 %v860
      %1040 = vmatprep.subr.mxu0 0.0
      %1041 = vmatpush1.msra.mxu0 %v859
      %1042 = vmatprep.subr.mxu0 0.0
      %1043 = vmatpush1.msra.mxu0 %v858
      %1044 = vmatprep.subr.mxu0 0.0
      %1045 = vmatpush1.msra.mxu0 %v857
      %1046 = vmatprep.subr.mxu0 0.0
      %1047 = vmatpush2.msra.mxu0 0.0
      %1048 = vmatprep.subr.mxu0 0.0
      %1049 = vmatpush2.msra.mxu0 0.0
      %1050 = vmatprep.subr.mxu0 0.0
      %1051 = vmatpush2.msra.mxu0 0.0
      %1052 = vmatprep.subr.mxu0 0.0
      %1053 = vmatpush2.msra.mxu0 0.0
      %1054 = vmatprep.subr.mxu0 0.0
      %1055 = vmatpush2.msra.mxu0 0.0
      %1056 = vmatprep.subr.mxu0 0.0
      %1057 = vmatpush2.msra.mxu0 0.0
      %1058 = vmatprep.subr.mxu0 0.0
      %1059 = vmatpush2.msra.mxu0 0.0
      %1060 = vmatprep.subr.mxu0 0.0
      %1061 = vmatpush2.msra.mxu0 0.0
      %1062 = vmatprep.subr.mxu0 0.0
      %1063 = vmatpush2.msra.mxu0 0.0
      %1064 = vmatprep.subr.mxu0 0.0
      %1065 = vmatpush2.msra.mxu0 0.0
      %1066 = vmatprep.subr.mxu0 0.0
      %1067 = vmatpush2.msra.mxu0 0.0
      %1068 = vmatprep.subr.mxu0 0.0
      %1069 = vmatpush2.msra.mxu0 0.0
      %1070 = vmatprep.subr.mxu0 0.0
      %1071 = vmatpush2.msra.mxu0 0.0
      %1072 = vmatprep.subr.mxu0 0.0
      %1073 = vmatpush2.msra.mxu0 0.0
      %1074 = vmatprep.subr.mxu0 0.0
      %1075 = vmatpush2.msra.mxu0 0.0
      %1076 = vmatprep.subr.mxu0 0.0
      %1077 = vmatpush2.msra.mxu0 0.0
      %1078 = vmatprep.mubr.f32.mxu0 0.0
      %1079 = vmatmul.mubr.f32.gmra.mxu0 %v856
      %v1080 = vpop.f32.mrf.mxu0
      %v1081 = vadd.f32 %v1011, %v1080
      %v1082 = vpop.f32.mrf.mxu0
      %1083 = vdwg.mxu0
      %v1084 = vxor.u32 %v1081, 2147483648
      %v1085 = vmul.f32 %v1084, 1.442695
      %v1086 = vpow.pop %v1085
      %v1087 = vadd.f32 %v1086, 1.0
      %v1088 = vrcp.pop %v1087
      %v1089 = vmul.f32 1.0, %v1088
      %v1090 = vlaneseq
      %v1091 = vshrl.u32 %v1090, 7
      %v1092 = vsub.s32 0, %v1091
      %v1093 = vrot.slane %v1089, %v1092
      %v1094 = vmul.f32 %v663, %v1093
      %v1095 = vmul.f32 %v664, %v1093
      %v1096 = vmul.f32 %v665, %v1093
      %v1097 = vmul.f32 %v666, %v1093
      %v1098 = vmul.f32 %v667, %v1093
      %v1099 = vmul.f32 %v668, %v1093
      %v1100 = vmul.f32 %v669, %v1093
      %v1101 = vmul.f32 %v670, %v1093
      %v1102 = vmul.f32 %v671, %v1093
      %v1103 = vmul.f32 %v672, %v1093
      %v1104 = vmul.f32 %v673, %v1093
      %v1105 = vmul.f32 %v674, %v1093
      %v1106 = vmul.f32 %v675, %v1093
      %v1107 = vmul.f32 %v676, %v1093
      %v1108 = vmul.f32 %v677, %v1093
      %v1109 = vmul.f32 %v678, %v1093
      %v1110 = vmul.f32 %v679, %v1093
      %v1111 = vmul.f32 %v680, %v1093
      %v1112 = vmul.f32 %v681, %v1093
      %v1113 = vmul.f32 %v682, %v1093
      %v1114 = vmul.f32 %v683, %v1093
      %v1115 = vmul.f32 %v684, %v1093
      %v1116 = vmul.f32 %v685, %v1093
      %v1117 = vmul.f32 %v686, %v1093
      %v1118 = vmul.f32 %v687, %v1093
      %v1119 = vmul.f32 %v688, %v1093
      %v1120 = vmul.f32 %v689, %v1093
      %v1121 = vmul.f32 %v690, %v1093
      %v1122 = vmul.f32 %v691, %v1093
      %v1123 = vmul.f32 %v692, %v1093
      %v1124 = vmul.f32 %v693, %v1093
      %v1125 = vmul.f32 %v694, %v1093
      %1126 = vadd.xlane.f32.xlu0 %v1094
      %v1127 = vpop.xlane.xlu0 %1126
      %1128 = vadd.xlane.f32.xlu0 %v1095
      %v1129 = vpop.xlane.xlu0 %1128
      %1130 = vadd.xlane.f32.xlu0 %v1096
      %v1131 = vpop.xlane.xlu0 %1130
      %1132 = vadd.xlane.f32.xlu0 %v1097
      %v1133 = vpop.xlane.xlu0 %1132
      %1134 = vadd.xlane.f32.xlu0 %v1098
      %v1135 = vpop.xlane.xlu0 %1134
      %1136 = vadd.xlane.f32.xlu0 %v1099
      %v1137 = vpop.xlane.xlu0 %1136
      %1138 = vadd.xlane.f32.xlu0 %v1100
      %v1139 = vpop.xlane.xlu0 %1138
      %1140 = vadd.xlane.f32.xlu0 %v1101
      %v1141 = vpop.xlane.xlu0 %1140
      %1142 = vadd.xlane.f32.xlu0 %v1102
      %v1143 = vpop.xlane.xlu0 %1142
      %1144 = vadd.xlane.f32.xlu0 %v1103
      %v1145 = vpop.xlane.xlu0 %1144
      %1146 = vadd.xlane.f32.xlu0 %v1104
      %v1147 = vpop.xlane.xlu0 %1146
      %1148 = vadd.xlane.f32.xlu0 %v1105
      %v1149 = vpop.xlane.xlu0 %1148
      %1150 = vadd.xlane.f32.xlu0 %v1106
      %v1151 = vpop.xlane.xlu0 %1150
      %1152 = vadd.xlane.f32.xlu0 %v1107
      %v1153 = vpop.xlane.xlu0 %1152
      %1154 = vadd.xlane.f32.xlu0 %v1108
      %v1155 = vpop.xlane.xlu0 %1154
      %1156 = vadd.xlane.f32.xlu0 %v1109
      %v1157 = vpop.xlane.xlu0 %1156
      %1158 = vadd.xlane.f32.xlu0 %v1110
      %v1159 = vpop.xlane.xlu0 %1158
      %1160 = vadd.xlane.f32.xlu0 %v1111
      %v1161 = vpop.xlane.xlu0 %1160
      %1162 = vadd.xlane.f32.xlu0 %v1112
      %v1163 = vpop.xlane.xlu0 %1162
      %1164 = vadd.xlane.f32.xlu0 %v1113
      %v1165 = vpop.xlane.xlu0 %1164
      %1166 = vadd.xlane.f32.xlu0 %v1114
      %v1167 = vpop.xlane.xlu0 %1166
      %1168 = vadd.xlane.f32.xlu0 %v1115
      %v1169 = vpop.xlane.xlu0 %1168
      %1170 = vadd.xlane.f32.xlu0 %v1116
      %v1171 = vpop.xlane.xlu0 %1170
      %1172 = vadd.xlane.f32.xlu0 %v1117
      %v1173 = vpop.xlane.xlu0 %1172
      %1174 = vadd.xlane.f32.xlu0 %v1118
      %v1175 = vpop.xlane.xlu0 %1174
      %1176 = vadd.xlane.f32.xlu0 %v1119
      %v1177 = vpop.xlane.xlu0 %1176
      %1178 = vadd.xlane.f32.xlu0 %v1120
      %v1179 = vpop.xlane.xlu0 %1178
      %1180 = vadd.xlane.f32.xlu0 %v1121
      %v1181 = vpop.xlane.xlu0 %1180
      %1182 = vadd.xlane.f32.xlu0 %v1122
      %v1183 = vpop.xlane.xlu0 %1182
      %1184 = vadd.xlane.f32.xlu0 %v1123
      %v1185 = vpop.xlane.xlu0 %1184
      %1186 = vadd.xlane.f32.xlu0 %v1124
      %v1187 = vpop.xlane.xlu0 %1186
      %1188 = vadd.xlane.f32.xlu0 %v1125
      %v1189 = vpop.xlane.xlu0 %1188
      %v1190 = vmul.f32 %v1127, 0.0625
      %v1191 = vmul.f32 %v1129, 0.0625
      %v1192 = vmul.f32 %v1131, 0.0625
      %v1193 = vmul.f32 %v1133, 0.0625
      %v1194 = vmul.f32 %v1135, 0.0625
      %v1195 = vmul.f32 %v1137, 0.0625
      %v1196 = vmul.f32 %v1139, 0.0625
      %v1197 = vmul.f32 %v1141, 0.0625
      %v1198 = vmul.f32 %v1143, 0.0625
      %v1199 = vmul.f32 %v1145, 0.0625
      %v1200 = vmul.f32 %v1147, 0.0625
      %v1201 = vmul.f32 %v1149, 0.0625
      %v1202 = vmul.f32 %v1151, 0.0625
      %v1203 = vmul.f32 %v1153, 0.0625
      %v1204 = vmul.f32 %v1155, 0.0625
      %v1205 = vmul.f32 %v1157, 0.0625
      %v1206 = vmul.f32 %v1159, 0.0625
      %v1207 = vmul.f32 %v1161, 0.0625
      %v1208 = vmul.f32 %v1163, 0.0625
      %v1209 = vmul.f32 %v1165, 0.0625
      %v1210 = vmul.f32 %v1167, 0.0625
      %v1211 = vmul.f32 %v1169, 0.0625
      %v1212 = vmul.f32 %v1171, 0.0625
      %v1213 = vmul.f32 %v1173, 0.0625
      %v1214 = vmul.f32 %v1175, 0.0625
      %v1215 = vmul.f32 %v1177, 0.0625
      %v1216 = vmul.f32 %v1179, 0.0625
      %v1217 = vmul.f32 %v1181, 0.0625
      %v1218 = vmul.f32 %v1183, 0.0625
      %v1219 = vmul.f32 %v1185, 0.0625
      %v1220 = vmul.f32 %v1187, 0.0625
      %v1221 = vmul.f32 %v1189, 0.0625
      %1222 = vmax.xlane.f32.xlu0 %v1094
      %v1223 = vpop.xlane.xlu0 %1222
      %1224 = vmax.xlane.f32.xlu0 %v1095
      %v1225 = vpop.xlane.xlu0 %1224
      %1226 = vmax.xlane.f32.xlu0 %v1096
      %v1227 = vpop.xlane.xlu0 %1226
      %1228 = vmax.xlane.f32.xlu0 %v1097
      %v1229 = vpop.xlane.xlu0 %1228
      %1230 = vmax.xlane.f32.xlu0 %v1098
      %v1231 = vpop.xlane.xlu0 %1230
      %1232 = vmax.xlane.f32.xlu0 %v1099
      %v1233 = vpop.xlane.xlu0 %1232
      %1234 = vmax.xlane.f32.xlu0 %v1100
      %v1235 = vpop.xlane.xlu0 %1234
      %1236 = vmax.xlane.f32.xlu0 %v1101
      %v1237 = vpop.xlane.xlu0 %1236
      %1238 = vmax.xlane.f32.xlu0 %v1102
      %v1239 = vpop.xlane.xlu0 %1238
      %1240 = vmax.xlane.f32.xlu0 %v1103
      %v1241 = vpop.xlane.xlu0 %1240
      %1242 = vmax.xlane.f32.xlu0 %v1104
      %v1243 = vpop.xlane.xlu0 %1242
      %1244 = vmax.xlane.f32.xlu0 %v1105
      %v1245 = vpop.xlane.xlu0 %1244
      %1246 = vmax.xlane.f32.xlu0 %v1106
      %v1247 = vpop.xlane.xlu0 %1246
      %1248 = vmax.xlane.f32.xlu0 %v1107
      %v1249 = vpop.xlane.xlu0 %1248
      %1250 = vmax.xlane.f32.xlu0 %v1108
      %v1251 = vpop.xlane.xlu0 %1250
      %1252 = vmax.xlane.f32.xlu0 %v1109
      %v1253 = vpop.xlane.xlu0 %1252
      %1254 = vmax.xlane.f32.xlu0 %v1110
      %v1255 = vpop.xlane.xlu0 %1254
      %1256 = vmax.xlane.f32.xlu0 %v1111
      %v1257 = vpop.xlane.xlu0 %1256
      %1258 = vmax.xlane.f32.xlu0 %v1112
      %v1259 = vpop.xlane.xlu0 %1258
      %1260 = vmax.xlane.f32.xlu0 %v1113
      %v1261 = vpop.xlane.xlu0 %1260
      %1262 = vmax.xlane.f32.xlu0 %v1114
      %v1263 = vpop.xlane.xlu0 %1262
      %1264 = vmax.xlane.f32.xlu0 %v1115
      %v1265 = vpop.xlane.xlu0 %1264
      %1266 = vmax.xlane.f32.xlu0 %v1116
      %v1267 = vpop.xlane.xlu0 %1266
      %1268 = vmax.xlane.f32.xlu0 %v1117
      %v1269 = vpop.xlane.xlu0 %1268
      %1270 = vmax.xlane.f32.xlu0 %v1118
      %v1271 = vpop.xlane.xlu0 %1270
      %1272 = vmax.xlane.f32.xlu0 %v1119
      %v1273 = vpop.xlane.xlu0 %1272
      %1274 = vmax.xlane.f32.xlu0 %v1120
      %v1275 = vpop.xlane.xlu0 %1274
      %1276 = vmax.xlane.f32.xlu0 %v1121
      %v1277 = vpop.xlane.xlu0 %1276
      %1278 = vmax.xlane.f32.xlu0 %v1122
      %v1279 = vpop.xlane.xlu0 %1278
      %1280 = vmax.xlane.f32.xlu0 %v1123
      %v1281 = vpop.xlane.xlu0 %1280
      %1282 = vmax.xlane.f32.xlu0 %v1124
      %v1283 = vpop.xlane.xlu0 %1282
      %1284 = vmax.xlane.f32.xlu0 %v1125
      %v1285 = vpop.xlane.xlu0 %1284
      %v1286 = vld [vmem:[%s6] sm:$0xff]
      %v1287 = vld [vmem:[%s6 + $0x8] sm:$0xff]
      %v1288 = vld [vmem:[%s6 + $0x10] sm:$0xff]
      %v1289 = vld [vmem:[%s6 + $0x18] sm:$0xff]
      %v1290 = vld [vmem:[%s6 + $0x20] sm:$0xff]
      %v1291 = vld [vmem:[%s6 + $0x28] sm:$0xff]
      %v1292 = vld [vmem:[%s6 + $0x30] sm:$0xff]
      %v1293 = vld [vmem:[%s6 + $0x38] sm:$0xff]
      %v1294 = vld [vmem:[%s6 + $0x40] sm:$0xff]
      %v1295 = vld [vmem:[%s6 + $0x48] sm:$0xff]
      %v1296 = vld [vmem:[%s6 + $0x50] sm:$0xff]
      %v1297 = vld [vmem:[%s6 + $0x58] sm:$0xff]
      %v1298 = vld [vmem:[%s6 + $0x60] sm:$0xff]
      %v1299 = vld [vmem:[%s6 + $0x68] sm:$0xff]
      %v1300 = vld [vmem:[%s6 + $0x70] sm:$0xff]
      %v1301 = vld [vmem:[%s6 + $0x78] sm:$0xff]
      %v1302 = vld [vmem:[%s6 + $0x80] sm:$0xff]
      %v1303 = vld [vmem:[%s6 + $0x88] sm:$0xff]
      %v1304 = vld [vmem:[%s6 + $0x90] sm:$0xff]
      %v1305 = vld [vmem:[%s6 + $0x98] sm:$0xff]
      %v1306 = vld [vmem:[%s6 + $0xa0] sm:$0xff]
      %v1307 = vld [vmem:[%s6 + $0xa8] sm:$0xff]
      %v1308 = vld [vmem:[%s6 + $0xb0] sm:$0xff]
      %v1309 = vld [vmem:[%s6 + $0xb8] sm:$0xff]
      %v1310 = vld [vmem:[%s6 + $0xc0] sm:$0xff]
      %v1311 = vld [vmem:[%s6 + $0xc8] sm:$0xff]
      %v1312 = vld [vmem:[%s6 + $0xd0] sm:$0xff]
      %v1313 = vld [vmem:[%s6 + $0xd8] sm:$0xff]
      %v1314 = vld [vmem:[%s6 + $0xe0] sm:$0xff]
      %v1315 = vld [vmem:[%s6 + $0xe8] sm:$0xff]
      %v1316 = vld [vmem:[%s6 + $0xf0] sm:$0xff]
      %v1317 = vld [vmem:[%s6 + $0xf8] sm:$0xff]
      %v1318 = vld [vmem:[%s6 + $0x100] sm:$0xff]
      %v1319 = vld [vmem:[%s6 + $0x108] sm:$0xff]
      %v1320 = vld [vmem:[%s6 + $0x110] sm:$0xff]
      %v1321 = vld [vmem:[%s6 + $0x118] sm:$0xff]
      %v1322 = vld [vmem:[%s6 + $0x120] sm:$0xff]
      %v1323 = vld [vmem:[%s6 + $0x128] sm:$0xff]
      %v1324 = vld [vmem:[%s6 + $0x130] sm:$0xff]
      %v1325 = vld [vmem:[%s6 + $0x138] sm:$0xff]
      %v1326 = vld [vmem:[%s6 + $0x140] sm:$0xff]
      %v1327 = vld [vmem:[%s6 + $0x148] sm:$0xff]
      %v1328 = vld [vmem:[%s6 + $0x150] sm:$0xff]
      %v1329 = vld [vmem:[%s6 + $0x158] sm:$0xff]
      %v1330 = vld [vmem:[%s6 + $0x160] sm:$0xff]
      %v1331 = vld [vmem:[%s6 + $0x168] sm:$0xff]
      %v1332 = vld [vmem:[%s6 + $0x170] sm:$0xff]
      %v1333 = vld [vmem:[%s6 + $0x178] sm:$0xff]
      %v1334 = vld [vmem:[%s6 + $0x180] sm:$0xff]
      %v1335 = vld [vmem:[%s6 + $0x188] sm:$0xff]
      %v1336 = vld [vmem:[%s6 + $0x190] sm:$0xff]
      %v1337 = vld [vmem:[%s6 + $0x198] sm:$0xff]
      %v1338 = vld [vmem:[%s6 + $0x1a0] sm:$0xff]
      %v1339 = vld [vmem:[%s6 + $0x1a8] sm:$0xff]
      %v1340 = vld [vmem:[%s6 + $0x1b0] sm:$0xff]
      %v1341 = vld [vmem:[%s6 + $0x1b8] sm:$0xff]
      %v1342 = vld [vmem:[%s6 + $0x1c0] sm:$0xff]
      %v1343 = vld [vmem:[%s6 + $0x1c8] sm:$0xff]
      %v1344 = vld [vmem:[%s6 + $0x1d0] sm:$0xff]
      %v1345 = vld [vmem:[%s6 + $0x1d8] sm:$0xff]
      %v1346 = vld [vmem:[%s6 + $0x1e0] sm:$0xff]
      %v1347 = vld [vmem:[%s6 + $0x1e8] sm:$0xff]
      %v1348 = vld [vmem:[%s6 + $0x1f0] sm:$0xff]
      %v1349 = vld [vmem:[%s6 + $0x1f8] sm:$0xff]
      %s1350 = scalar_lea.vmem %s6, 512
      %v1351 = vld [vmem:[%s1350] sm:$0xff]
      %v1352 = vld [vmem:[%s1350 + $0x8] sm:$0xff]
      %v1353 = vld [vmem:[%s1350 + $0x10] sm:$0xff]
      %v1354 = vld [vmem:[%s1350 + $0x18] sm:$0xff]
      %v1355 = vld [vmem:[%s1350 + $0x20] sm:$0xff]
      %v1356 = vld [vmem:[%s1350 + $0x28] sm:$0xff]
      %v1357 = vld [vmem:[%s1350 + $0x30] sm:$0xff]
      %v1358 = vld [vmem:[%s1350 + $0x38] sm:$0xff]
      %v1359 = vld [vmem:[%s1350 + $0x40] sm:$0xff]
      %v1360 = vld [vmem:[%s1350 + $0x48] sm:$0xff]
      %v1361 = vld [vmem:[%s1350 + $0x50] sm:$0xff]
      %v1362 = vld [vmem:[%s1350 + $0x58] sm:$0xff]
      %v1363 = vld [vmem:[%s1350 + $0x60] sm:$0xff]
      %v1364 = vld [vmem:[%s1350 + $0x68] sm:$0xff]
      %v1365 = vld [vmem:[%s1350 + $0x70] sm:$0xff]
      %v1366 = vld [vmem:[%s1350 + $0x78] sm:$0xff]
      %v1367 = vld [vmem:[%s1350 + $0x80] sm:$0xff]
      %v1368 = vld [vmem:[%s1350 + $0x88] sm:$0xff]
      %v1369 = vld [vmem:[%s1350 + $0x90] sm:$0xff]
      %v1370 = vld [vmem:[%s1350 + $0x98] sm:$0xff]
      %v1371 = vld [vmem:[%s1350 + $0xa0] sm:$0xff]
      %v1372 = vld [vmem:[%s1350 + $0xa8] sm:$0xff]
      %v1373 = vld [vmem:[%s1350 + $0xb0] sm:$0xff]
      %v1374 = vld [vmem:[%s1350 + $0xb8] sm:$0xff]
      %v1375 = vld [vmem:[%s1350 + $0xc0] sm:$0xff]
      %v1376 = vld [vmem:[%s1350 + $0xc8] sm:$0xff]
      %v1377 = vld [vmem:[%s1350 + $0xd0] sm:$0xff]
      %v1378 = vld [vmem:[%s1350 + $0xd8] sm:$0xff]
      %v1379 = vld [vmem:[%s1350 + $0xe0] sm:$0xff]
      %v1380 = vld [vmem:[%s1350 + $0xe8] sm:$0xff]
      %v1381 = vld [vmem:[%s1350 + $0xf0] sm:$0xff]
      %v1382 = vld [vmem:[%s1350 + $0xf8] sm:$0xff]
      %v1383 = vld [vmem:[%s1350 + $0x100] sm:$0xff]
      %v1384 = vld [vmem:[%s1350 + $0x108] sm:$0xff]
      %v1385 = vld [vmem:[%s1350 + $0x110] sm:$0xff]
      %v1386 = vld [vmem:[%s1350 + $0x118] sm:$0xff]
      %v1387 = vld [vmem:[%s1350 + $0x120] sm:$0xff]
      %v1388 = vld [vmem:[%s1350 + $0x128] sm:$0xff]
      %v1389 = vld [vmem:[%s1350 + $0x130] sm:$0xff]
      %v1390 = vld [vmem:[%s1350 + $0x138] sm:$0xff]
      %v1391 = vld [vmem:[%s1350 + $0x140] sm:$0xff]
      %v1392 = vld [vmem:[%s1350 + $0x148] sm:$0xff]
      %v1393 = vld [vmem:[%s1350 + $0x150] sm:$0xff]
      %v1394 = vld [vmem:[%s1350 + $0x158] sm:$0xff]
      %v1395 = vld [vmem:[%s1350 + $0x160] sm:$0xff]
      %v1396 = vld [vmem:[%s1350 + $0x168] sm:$0xff]
      %v1397 = vld [vmem:[%s1350 + $0x170] sm:$0xff]
      %v1398 = vld [vmem:[%s1350 + $0x178] sm:$0xff]
      %v1399 = vld [vmem:[%s1350 + $0x180] sm:$0xff]
      %v1400 = vld [vmem:[%s1350 + $0x188] sm:$0xff]
      %v1401 = vld [vmem:[%s1350 + $0x190] sm:$0xff]
      %v1402 = vld [vmem:[%s1350 + $0x198] sm:$0xff]
      %v1403 = vld [vmem:[%s1350 + $0x1a0] sm:$0xff]
      %v1404 = vld [vmem:[%s1350 + $0x1a8] sm:$0xff]
      %v1405 = vld [vmem:[%s1350 + $0x1b0] sm:$0xff]
      %v1406 = vld [vmem:[%s1350 + $0x1b8] sm:$0xff]
      %v1407 = vld [vmem:[%s1350 + $0x1c0] sm:$0xff]
      %v1408 = vld [vmem:[%s1350 + $0x1c8] sm:$0xff]
      %v1409 = vld [vmem:[%s1350 + $0x1d0] sm:$0xff]
      %v1410 = vld [vmem:[%s1350 + $0x1d8] sm:$0xff]
      %v1411 = vld [vmem:[%s1350 + $0x1e0] sm:$0xff]
      %v1412 = vld [vmem:[%s1350 + $0x1e8] sm:$0xff]
      %v1413 = vld [vmem:[%s1350 + $0x1f0] sm:$0xff]
      %v1414 = vld [vmem:[%s1350 + $0x1f8] sm:$0xff]
      %1415 = vmatprep.subr.mxu0 0.0
      %1416 = vmatpush1.msra.mxu0 %v1253
      %1417 = vmatprep.subr.mxu0 0.0
      %1418 = vmatpush1.msra.mxu0 %v1251
      %1419 = vmatprep.subr.mxu0 0.0
      %1420 = vmatpush1.msra.mxu0 %v1249
      %1421 = vmatprep.subr.mxu0 0.0
      %1422 = vmatpush1.msra.mxu0 %v1247
      %1423 = vmatprep.subr.mxu0 0.0
      %1424 = vmatpush1.msra.mxu0 %v1245
      %1425 = vmatprep.subr.mxu0 0.0
      %1426 = vmatpush1.msra.mxu0 %v1243
      %1427 = vmatprep.subr.mxu0 0.0
      %1428 = vmatpush1.msra.mxu0 %v1241
      %1429 = vmatprep.subr.mxu0 0.0
      %1430 = vmatpush1.msra.mxu0 %v1239
      %1431 = vmatprep.subr.mxu0 0.0
      %1432 = vmatpush1.msra.mxu0 %v1237
      %1433 = vmatprep.subr.mxu0 0.0
      %1434 = vmatpush1.msra.mxu0 %v1235
      %1435 = vmatprep.subr.mxu0 0.0
      %1436 = vmatpush1.msra.mxu0 %v1233
      %1437 = vmatprep.subr.mxu0 0.0
      %1438 = vmatpush1.msra.mxu0 %v1231
      %1439 = vmatprep.subr.mxu0 0.0
      %1440 = vmatpush1.msra.mxu0 %v1229
      %1441 = vmatprep.subr.mxu0 0.0
      %1442 = vmatpush1.msra.mxu0 %v1227
      %1443 = vmatprep.subr.mxu0 0.0
      %1444 = vmatpush1.msra.mxu0 %v1225
      %1445 = vmatprep.subr.mxu0 0.0
      %1446 = vmatpush1.msra.mxu0 %v1223
      %1447 = vmatprep.subr.mxu0 0.0
      %1448 = vmatpush2.msra.mxu0 %v1285
      %1449 = vmatprep.subr.mxu0 0.0
      %1450 = vmatpush2.msra.mxu0 %v1283
      %1451 = vmatprep.subr.mxu0 0.0
      %1452 = vmatpush2.msra.mxu0 %v1281
      %1453 = vmatprep.subr.mxu0 0.0
      %1454 = vmatpush2.msra.mxu0 %v1279
      %1455 = vmatprep.subr.mxu0 0.0
      %1456 = vmatpush2.msra.mxu0 %v1277
      %1457 = vmatprep.subr.mxu0 0.0
      %1458 = vmatpush2.msra.mxu0 %v1275
      %1459 = vmatprep.subr.mxu0 0.0
      %1460 = vmatpush2.msra.mxu0 %v1273
      %1461 = vmatprep.subr.mxu0 0.0
      %1462 = vmatpush2.msra.mxu0 %v1271
      %1463 = vmatprep.subr.mxu0 0.0
      %1464 = vmatpush2.msra.mxu0 %v1269
      %1465 = vmatprep.subr.mxu0 0.0
      %1466 = vmatpush2.msra.mxu0 %v1267
      %1467 = vmatprep.subr.mxu0 0.0
      %1468 = vmatpush2.msra.mxu0 %v1265
      %1469 = vmatprep.subr.mxu0 0.0
      %1470 = vmatpush2.msra.mxu0 %v1263
      %1471 = vmatprep.subr.mxu0 0.0
      %1472 = vmatpush2.msra.mxu0 %v1261
      %1473 = vmatprep.subr.mxu0 0.0
      %1474 = vmatpush2.msra.mxu0 %v1259
      %1475 = vmatprep.subr.mxu0 0.0
      %1476 = vmatpush2.msra.mxu0 %v1257
      %1477 = vmatprep.subr.mxu0 0.0
      %1478 = vmatpush2.msra.mxu0 %v1255
      %1479 = vmatprep.mubr.f32.mxu0 %v1352
      %1480 = vmatmul.mubr.f32.gmra.mxu0 %v1351
      %v1481 = vpop.f32.mrf.mxu0
      %v1482 = vadd.f32 0.0, %v1481
      %v1483 = vpop.f32.mrf.mxu0
      %1484 = vmatprep.mubr.f32.mxu0 %v1354
      %1485 = vmatmul.mubr.f32.gmra.mxu0 %v1353
      %v1486 = vpop.f32.mrf.mxu0
      %v1487 = vadd.f32 0.0, %v1486
      %v1488 = vpop.f32.mrf.mxu0
      %1489 = vmatprep.mubr.f32.mxu0 %v1356
      %1490 = vmatmul.mubr.f32.gmra.mxu0 %v1355
      %v1491 = vpop.f32.mrf.mxu0
      %v1492 = vadd.f32 0.0, %v1491
      %v1493 = vpop.f32.mrf.mxu0
      %1494 = vmatprep.mubr.f32.mxu0 %v1358
      %1495 = vmatmul.mubr.f32.gmra.mxu0 %v1357
      %v1496 = vpop.f32.mrf.mxu0
      %v1497 = vadd.f32 0.0, %v1496
      %v1498 = vpop.f32.mrf.mxu0
      %1499 = vmatprep.mubr.f32.mxu0 %v1360
      %1500 = vmatmul.mubr.f32.gmra.mxu0 %v1359
      %v1501 = vpop.f32.mrf.mxu0
      %v1502 = vadd.f32 0.0, %v1501
      %v1503 = vpop.f32.mrf.mxu0
      %1504 = vmatprep.mubr.f32.mxu0 %v1362
      %1505 = vmatmul.mubr.f32.gmra.mxu0 %v1361
      %v1506 = vpop.f32.mrf.mxu0
      %v1507 = vadd.f32 0.0, %v1506
      %v1508 = vpop.f32.mrf.mxu0
      %1509 = vmatprep.mubr.f32.mxu0 %v1364
      %1510 = vmatmul.mubr.f32.gmra.mxu0 %v1363
      %v1511 = vpop.f32.mrf.mxu0
      %v1512 = vadd.f32 0.0, %v1511
      %v1513 = vpop.f32.mrf.mxu0
      %1514 = vmatprep.mubr.f32.mxu0 %v1366
      %1515 = vmatmul.mubr.f32.gmra.mxu0 %v1365
      %v1516 = vpop.f32.mrf.mxu0
      %v1517 = vadd.f32 0.0, %v1516
      %v1518 = vpop.f32.mrf.mxu0
      %1519 = vmatprep.mubr.f32.mxu0 %v1368
      %1520 = vmatmul.mubr.f32.gmra.mxu0 %v1367
      %v1521 = vpop.f32.mrf.mxu0
      %v1522 = vadd.f32 0.0, %v1521
      %v1523 = vpop.f32.mrf.mxu0
      %1524 = vmatprep.mubr.f32.mxu0 %v1370
      %1525 = vmatmul.mubr.f32.gmra.mxu0 %v1369
      %v1526 = vpop.f32.mrf.mxu0
      %v1527 = vadd.f32 0.0, %v1526
      %v1528 = vpop.f32.mrf.mxu0
      %1529 = vmatprep.mubr.f32.mxu0 %v1372
      %1530 = vmatmul.mubr.f32.gmra.mxu0 %v1371
      %v1531 = vpop.f32.mrf.mxu0
      %v1532 = vadd.f32 0.0, %v1531
      %v1533 = vpop.f32.mrf.mxu0
      %1534 = vmatprep.mubr.f32.mxu0 %v1374
      %1535 = vmatmul.mubr.f32.gmra.mxu0 %v1373
      %v1536 = vpop.f32.mrf.mxu0
      %v1537 = vadd.f32 0.0, %v1536
      %v1538 = vpop.f32.mrf.mxu0
      %1539 = vmatprep.mubr.f32.mxu0 %v1376
      %1540 = vmatmul.mubr.f32.gmra.mxu0 %v1375
      %v1541 = vpop.f32.mrf.mxu0
      %v1542 = vadd.f32 0.0, %v1541
      %v1543 = vpop.f32.mrf.mxu0
      %1544 = vmatprep.mubr.f32.mxu0 %v1378
      %1545 = vmatmul.mubr.f32.gmra.mxu0 %v1377
      %v1546 = vpop.f32.mrf.mxu0
      %v1547 = vadd.f32 0.0, %v1546
      %v1548 = vpop.f32.mrf.mxu0
      %1549 = vmatprep.mubr.f32.mxu0 %v1380
      %1550 = vmatmul.mubr.f32.gmra.mxu0 %v1379
      %v1551 = vpop.f32.mrf.mxu0
      %v1552 = vadd.f32 0.0, %v1551
      %v1553 = vpop.f32.mrf.mxu0
      %1554 = vmatprep.mubr.f32.mxu0 %v1382
      %1555 = vmatmul.mubr.f32.gmra.mxu0 %v1381
      %v1556 = vpop.f32.mrf.mxu0
      %v1557 = vadd.f32 0.0, %v1556
      %v1558 = vpop.f32.mrf.mxu0
      %1559 = vmatprep.mubr.f32.mxu0 %v1384
      %1560 = vmatmul.mubr.f32.gmra.mxu0 %v1383
      %v1561 = vpop.f32.mrf.mxu0
      %v1562 = vadd.f32 0.0, %v1561
      %v1563 = vpop.f32.mrf.mxu0
      %1564 = vmatprep.mubr.f32.mxu0 %v1386
      %1565 = vmatmul.mubr.f32.gmra.mxu0 %v1385
      %v1566 = vpop.f32.mrf.mxu0
      %v1567 = vadd.f32 0.0, %v1566
      %v1568 = vpop.f32.mrf.mxu0
      %1569 = vmatprep.mubr.f32.mxu0 %v1388
      %1570 = vmatmul.mubr.f32.gmra.mxu0 %v1387
      %v1571 = vpop.f32.mrf.mxu0
      %v1572 = vadd.f32 0.0, %v1571
      %v1573 = vpop.f32.mrf.mxu0
      %1574 = vmatprep.mubr.f32.mxu0 %v1390
      %1575 = vmatmul.mubr.f32.gmra.mxu0 %v1389
      %v1576 = vpop.f32.mrf.mxu0
      %v1577 = vadd.f32 0.0, %v1576
      %v1578 = vpop.f32.mrf.mxu0
      %1579 = vmatprep.mubr.f32.mxu0 %v1392
      %1580 = vmatmul.mubr.f32.gmra.mxu0 %v1391
      %v1581 = vpop.f32.mrf.mxu0
      %v1582 = vadd.f32 0.0, %v1581
      %v1583 = vpop.f32.mrf.mxu0
      %1584 = vmatprep.mubr.f32.mxu0 %v1394
      %1585 = vmatmul.mubr.f32.gmra.mxu0 %v1393
      %v1586 = vpop.f32.mrf.mxu0
      %v1587 = vadd.f32 0.0, %v1586
      %v1588 = vpop.f32.mrf.mxu0
      %1589 = vmatprep.mubr.f32.mxu0 %v1396
      %1590 = vmatmul.mubr.f32.gmra.mxu0 %v1395
      %v1591 = vpop.f32.mrf.mxu0
      %v1592 = vadd.f32 0.0, %v1591
      %v1593 = vpop.f32.mrf.mxu0
      %1594 = vmatprep.mubr.f32.mxu0 %v1398
      %1595 = vmatmul.mubr.f32.gmra.mxu0 %v1397
      %v1596 = vpop.f32.mrf.mxu0
      %v1597 = vadd.f32 0.0, %v1596
      %v1598 = vpop.f32.mrf.mxu0
      %1599 = vmatprep.mubr.f32.mxu0 %v1400
      %1600 = vmatmul.mubr.f32.gmra.mxu0 %v1399
      %v1601 = vpop.f32.mrf.mxu0
      %v1602 = vadd.f32 0.0, %v1601
      %v1603 = vpop.f32.mrf.mxu0
      %1604 = vmatprep.mubr.f32.mxu0 %v1402
      %1605 = vmatmul.mubr.f32.gmra.mxu0 %v1401
      %v1606 = vpop.f32.mrf.mxu0
      %v1607 = vadd.f32 0.0, %v1606
      %v1608 = vpop.f32.mrf.mxu0
      %1609 = vmatprep.mubr.f32.mxu0 %v1404
      %1610 = vmatmul.mubr.f32.gmra.mxu0 %v1403
      %v1611 = vpop.f32.mrf.mxu0
      %v1612 = vadd.f32 0.0, %v1611
      %v1613 = vpop.f32.mrf.mxu0
      %1614 = vmatprep.mubr.f32.mxu0 %v1406
      %1615 = vmatmul.mubr.f32.gmra.mxu0 %v1405
      %v1616 = vpop.f32.mrf.mxu0
      %v1617 = vadd.f32 0.0, %v1616
      %v1618 = vpop.f32.mrf.mxu0
      %1619 = vmatprep.mubr.f32.mxu0 %v1408
      %1620 = vmatmul.mubr.f32.gmra.mxu0 %v1407
      %v1621 = vpop.f32.mrf.mxu0
      %v1622 = vadd.f32 0.0, %v1621
      %v1623 = vpop.f32.mrf.mxu0
      %1624 = vmatprep.mubr.f32.mxu0 %v1410
      %1625 = vmatmul.mubr.f32.gmra.mxu0 %v1409
      %v1626 = vpop.f32.mrf.mxu0
      %v1627 = vadd.f32 0.0, %v1626
      %v1628 = vpop.f32.mrf.mxu0
      %1629 = vmatprep.mubr.f32.mxu0 %v1412
      %1630 = vmatmul.mubr.f32.gmra.mxu0 %v1411
      %v1631 = vpop.f32.mrf.mxu0
      %v1632 = vadd.f32 0.0, %v1631
      %v1633 = vpop.f32.mrf.mxu0
      %1634 = vmatprep.mubr.f32.mxu0 %v1414
      %1635 = vmatmul.mubr.f32.gmra.mxu0 %v1413
      %v1636 = vpop.f32.mrf.mxu0
      %v1637 = vadd.f32 0.0, %v1636
      %v1638 = vpop.f32.mrf.mxu0
      %1639 = vdwg.mxu0
      %1640 = vmatprep.subr.mxu0 0.0
      %1641 = vmatpush1.msra.mxu0 %v1205
      %1642 = vmatprep.subr.mxu0 0.0
      %1643 = vmatpush1.msra.mxu0 %v1204
      %1644 = vmatprep.subr.mxu0 0.0
      %1645 = vmatpush1.msra.mxu0 %v1203
      %1646 = vmatprep.subr.mxu0 0.0
      %1647 = vmatpush1.msra.mxu0 %v1202
      %1648 = vmatprep.subr.mxu0 0.0
      %1649 = vmatpush1.msra.mxu0 %v1201
      %1650 = vmatprep.subr.mxu0 0.0
      %1651 = vmatpush1.msra.mxu0 %v1200
      %1652 = vmatprep.subr.mxu0 0.0
      %1653 = vmatpush1.msra.mxu0 %v1199
      %1654 = vmatprep.subr.mxu0 0.0
      %1655 = vmatpush1.msra.mxu0 %v1198
      %1656 = vmatprep.subr.mxu0 0.0
      %1657 = vmatpush1.msra.mxu0 %v1197
      %1658 = vmatprep.subr.mxu0 0.0
      %1659 = vmatpush1.msra.mxu0 %v1196
      %1660 = vmatprep.subr.mxu0 0.0
      %1661 = vmatpush1.msra.mxu0 %v1195
      %1662 = vmatprep.subr.mxu0 0.0
      %1663 = vmatpush1.msra.mxu0 %v1194
      %1664 = vmatprep.subr.mxu0 0.0
      %1665 = vmatpush1.msra.mxu0 %v1193
      %1666 = vmatprep.subr.mxu0 0.0
      %1667 = vmatpush1.msra.mxu0 %v1192
      %1668 = vmatprep.subr.mxu0 0.0
      %1669 = vmatpush1.msra.mxu0 %v1191
      %1670 = vmatprep.subr.mxu0 0.0
      %1671 = vmatpush1.msra.mxu0 %v1190
      %1672 = vmatprep.subr.mxu0 0.0
      %1673 = vmatpush2.msra.mxu0 %v1221
      %1674 = vmatprep.subr.mxu0 0.0
      %1675 = vmatpush2.msra.mxu0 %v1220
      %1676 = vmatprep.subr.mxu0 0.0
      %1677 = vmatpush2.msra.mxu0 %v1219
      %1678 = vmatprep.subr.mxu0 0.0
      %1679 = vmatpush2.msra.mxu0 %v1218
      %1680 = vmatprep.subr.mxu0 0.0
      %1681 = vmatpush2.msra.mxu0 %v1217
      %1682 = vmatprep.subr.mxu0 0.0
      %1683 = vmatpush2.msra.mxu0 %v1216
      %1684 = vmatprep.subr.mxu0 0.0
      %1685 = vmatpush2.msra.mxu0 %v1215
      %1686 = vmatprep.subr.mxu0 0.0
      %1687 = vmatpush2.msra.mxu0 %v1214
      %1688 = vmatprep.subr.mxu0 0.0
      %1689 = vmatpush2.msra.mxu0 %v1213
      %1690 = vmatprep.subr.mxu0 0.0
      %1691 = vmatpush2.msra.mxu0 %v1212
      %1692 = vmatprep.subr.mxu0 0.0
      %1693 = vmatpush2.msra.mxu0 %v1211
      %1694 = vmatprep.subr.mxu0 0.0
      %1695 = vmatpush2.msra.mxu0 %v1210
      %1696 = vmatprep.subr.mxu0 0.0
      %1697 = vmatpush2.msra.mxu0 %v1209
      %1698 = vmatprep.subr.mxu0 0.0
      %1699 = vmatpush2.msra.mxu0 %v1208
      %1700 = vmatprep.subr.mxu0 0.0
      %1701 = vmatpush2.msra.mxu0 %v1207
      %1702 = vmatprep.subr.mxu0 0.0
      %1703 = vmatpush2.msra.mxu0 %v1206
      %1704 = vmatprep.mubr.f32.mxu0 %v1287
      %1705 = vmatmul.mubr.f32.gmra.mxu0 %v1286
      %v1706 = vpop.f32.mrf.mxu0
      %v1707 = vadd.f32 %v1482, %v1706
      %v1708 = vpop.f32.mrf.mxu0
      %1709 = vmatprep.mubr.f32.mxu0 %v1289
      %1710 = vmatmul.mubr.f32.gmra.mxu0 %v1288
      %v1711 = vpop.f32.mrf.mxu0
      %v1712 = vadd.f32 %v1487, %v1711
      %v1713 = vpop.f32.mrf.mxu0
      %1714 = vmatprep.mubr.f32.mxu0 %v1291
      %1715 = vmatmul.mubr.f32.gmra.mxu0 %v1290
      %v1716 = vpop.f32.mrf.mxu0
      %v1717 = vadd.f32 %v1492, %v1716
      %v1718 = vpop.f32.mrf.mxu0
      %1719 = vmatprep.mubr.f32.mxu0 %v1293
      %1720 = vmatmul.mubr.f32.gmra.mxu0 %v1292
      %v1721 = vpop.f32.mrf.mxu0
      %v1722 = vadd.f32 %v1497, %v1721
      %v1723 = vpop.f32.mrf.mxu0
      %1724 = vmatprep.mubr.f32.mxu0 %v1295
      %1725 = vmatmul.mubr.f32.gmra.mxu0 %v1294
      %v1726 = vpop.f32.mrf.mxu0
      %v1727 = vadd.f32 %v1502, %v1726
      %v1728 = vpop.f32.mrf.mxu0
      %1729 = vmatprep.mubr.f32.mxu0 %v1297
      %1730 = vmatmul.mubr.f32.gmra.mxu0 %v1296
      %v1731 = vpop.f32.mrf.mxu0
      %v1732 = vadd.f32 %v1507, %v1731
      %v1733 = vpop.f32.mrf.mxu0
      %1734 = vmatprep.mubr.f32.mxu0 %v1299
      %1735 = vmatmul.mubr.f32.gmra.mxu0 %v1298
      %v1736 = vpop.f32.mrf.mxu0
      %v1737 = vadd.f32 %v1512, %v1736
      %v1738 = vpop.f32.mrf.mxu0
      %1739 = vmatprep.mubr.f32.mxu0 %v1301
      %1740 = vmatmul.mubr.f32.gmra.mxu0 %v1300
      %v1741 = vpop.f32.mrf.mxu0
      %v1742 = vadd.f32 %v1517, %v1741
      %v1743 = vpop.f32.mrf.mxu0
      %1744 = vmatprep.mubr.f32.mxu0 %v1303
      %1745 = vmatmul.mubr.f32.gmra.mxu0 %v1302
      %v1746 = vpop.f32.mrf.mxu0
      %v1747 = vadd.f32 %v1522, %v1746
      %v1748 = vpop.f32.mrf.mxu0
      %1749 = vmatprep.mubr.f32.mxu0 %v1305
      %1750 = vmatmul.mubr.f32.gmra.mxu0 %v1304
      %v1751 = vpop.f32.mrf.mxu0
      %v1752 = vadd.f32 %v1527, %v1751
      %v1753 = vpop.f32.mrf.mxu0
      %1754 = vmatprep.mubr.f32.mxu0 %v1307
      %1755 = vmatmul.mubr.f32.gmra.mxu0 %v1306
      %v1756 = vpop.f32.mrf.mxu0
      %v1757 = vadd.f32 %v1532, %v1756
      %v1758 = vpop.f32.mrf.mxu0
      %1759 = vmatprep.mubr.f32.mxu0 %v1309
      %1760 = vmatmul.mubr.f32.gmra.mxu0 %v1308
      %v1761 = vpop.f32.mrf.mxu0
      %v1762 = vadd.f32 %v1537, %v1761
      %v1763 = vpop.f32.mrf.mxu0
      %1764 = vmatprep.mubr.f32.mxu0 %v1311
      %1765 = vmatmul.mubr.f32.gmra.mxu0 %v1310
      %v1766 = vpop.f32.mrf.mxu0
      %v1767 = vadd.f32 %v1542, %v1766
      %v1768 = vpop.f32.mrf.mxu0
      %1769 = vmatprep.mubr.f32.mxu0 %v1313
      %1770 = vmatmul.mubr.f32.gmra.mxu0 %v1312
      %v1771 = vpop.f32.mrf.mxu0
      %v1772 = vadd.f32 %v1547, %v1771
      %v1773 = vpop.f32.mrf.mxu0
      %1774 = vmatprep.mubr.f32.mxu0 %v1315
      %1775 = vmatmul.mubr.f32.gmra.mxu0 %v1314
      %v1776 = vpop.f32.mrf.mxu0
      %v1777 = vadd.f32 %v1552, %v1776
      %v1778 = vpop.f32.mrf.mxu0
      %1779 = vmatprep.mubr.f32.mxu0 %v1317
      %1780 = vmatmul.mubr.f32.gmra.mxu0 %v1316
      %v1781 = vpop.f32.mrf.mxu0
      %v1782 = vadd.f32 %v1557, %v1781
      %v1783 = vpop.f32.mrf.mxu0
      %1784 = vmatprep.mubr.f32.mxu0 %v1319
      %1785 = vmatmul.mubr.f32.gmra.mxu0 %v1318
      %v1786 = vpop.f32.mrf.mxu0
      %v1787 = vadd.f32 %v1562, %v1786
      %v1788 = vpop.f32.mrf.mxu0
      %1789 = vmatprep.mubr.f32.mxu0 %v1321
      %1790 = vmatmul.mubr.f32.gmra.mxu0 %v1320
      %v1791 = vpop.f32.mrf.mxu0
      %v1792 = vadd.f32 %v1567, %v1791
      %v1793 = vpop.f32.mrf.mxu0
      %1794 = vmatprep.mubr.f32.mxu0 %v1323
      %1795 = vmatmul.mubr.f32.gmra.mxu0 %v1322
      %v1796 = vpop.f32.mrf.mxu0
      %v1797 = vadd.f32 %v1572, %v1796
      %v1798 = vpop.f32.mrf.mxu0
      %1799 = vmatprep.mubr.f32.mxu0 %v1325
      %1800 = vmatmul.mubr.f32.gmra.mxu0 %v1324
      %v1801 = vpop.f32.mrf.mxu0
      %v1802 = vadd.f32 %v1577, %v1801
      %v1803 = vpop.f32.mrf.mxu0
      %1804 = vmatprep.mubr.f32.mxu0 %v1327
      %1805 = vmatmul.mubr.f32.gmra.mxu0 %v1326
      %v1806 = vpop.f32.mrf.mxu0
      %v1807 = vadd.f32 %v1582, %v1806
      %v1808 = vpop.f32.mrf.mxu0
      %1809 = vmatprep.mubr.f32.mxu0 %v1329
      %1810 = vmatmul.mubr.f32.gmra.mxu0 %v1328
      %v1811 = vpop.f32.mrf.mxu0
      %v1812 = vadd.f32 %v1587, %v1811
      %v1813 = vpop.f32.mrf.mxu0
      %1814 = vmatprep.mubr.f32.mxu0 %v1331
      %1815 = vmatmul.mubr.f32.gmra.mxu0 %v1330
      %v1816 = vpop.f32.mrf.mxu0
      %v1817 = vadd.f32 %v1592, %v1816
      %v1818 = vpop.f32.mrf.mxu0
      %1819 = vmatprep.mubr.f32.mxu0 %v1333
      %1820 = vmatmul.mubr.f32.gmra.mxu0 %v1332
      %v1821 = vpop.f32.mrf.mxu0
      %v1822 = vadd.f32 %v1597, %v1821
      %v1823 = vpop.f32.mrf.mxu0
      %1824 = vmatprep.mubr.f32.mxu0 %v1335
      %1825 = vmatmul.mubr.f32.gmra.mxu0 %v1334
      %v1826 = vpop.f32.mrf.mxu0
      %v1827 = vadd.f32 %v1602, %v1826
      %v1828 = vpop.f32.mrf.mxu0
      %1829 = vmatprep.mubr.f32.mxu0 %v1337
      %1830 = vmatmul.mubr.f32.gmra.mxu0 %v1336
      %v1831 = vpop.f32.mrf.mxu0
      %v1832 = vadd.f32 %v1607, %v1831
      %v1833 = vpop.f32.mrf.mxu0
      %1834 = vmatprep.mubr.f32.mxu0 %v1339
      %1835 = vmatmul.mubr.f32.gmra.mxu0 %v1338
      %v1836 = vpop.f32.mrf.mxu0
      %v1837 = vadd.f32 %v1612, %v1836
      %v1838 = vpop.f32.mrf.mxu0
      %1839 = vmatprep.mubr.f32.mxu0 %v1341
      %1840 = vmatmul.mubr.f32.gmra.mxu0 %v1340
      %v1841 = vpop.f32.mrf.mxu0
      %v1842 = vadd.f32 %v1617, %v1841
      %v1843 = vpop.f32.mrf.mxu0
      %1844 = vmatprep.mubr.f32.mxu0 %v1343
      %1845 = vmatmul.mubr.f32.gmra.mxu0 %v1342
      %v1846 = vpop.f32.mrf.mxu0
      %v1847 = vadd.f32 %v1622, %v1846
      %v1848 = vpop.f32.mrf.mxu0
      %1849 = vmatprep.mubr.f32.mxu0 %v1345
      %1850 = vmatmul.mubr.f32.gmra.mxu0 %v1344
      %v1851 = vpop.f32.mrf.mxu0
      %v1852 = vadd.f32 %v1627, %v1851
      %v1853 = vpop.f32.mrf.mxu0
      %1854 = vmatprep.mubr.f32.mxu0 %v1347
      %1855 = vmatmul.mubr.f32.gmra.mxu0 %v1346
      %v1856 = vpop.f32.mrf.mxu0
      %v1857 = vadd.f32 %v1632, %v1856
      %v1858 = vpop.f32.mrf.mxu0
      %1859 = vmatprep.mubr.f32.mxu0 %v1349
      %1860 = vmatmul.mubr.f32.gmra.mxu0 %v1348
      %v1861 = vpop.f32.mrf.mxu0
      %v1862 = vadd.f32 %v1637, %v1861
      %v1863 = vpop.f32.mrf.mxu0
      %1864 = vdwg.mxu0
      %v1865 = vxor.u32 %v1707, 2147483648
      %v1866 = vxor.u32 %v1712, 2147483648
      %v1867 = vxor.u32 %v1717, 2147483648
      %v1868 = vxor.u32 %v1722, 2147483648
      %v1869 = vxor.u32 %v1727, 2147483648
      %v1870 = vxor.u32 %v1732, 2147483648
      %v1871 = vxor.u32 %v1737, 2147483648
      %v1872 = vxor.u32 %v1742, 2147483648
      %v1873 = vxor.u32 %v1747, 2147483648
      %v1874 = vxor.u32 %v1752, 2147483648
      %v1875 = vxor.u32 %v1757, 2147483648
      %v1876 = vxor.u32 %v1762, 2147483648
      %v1877 = vxor.u32 %v1767, 2147483648
      %v1878 = vxor.u32 %v1772, 2147483648
      %v1879 = vxor.u32 %v1777, 2147483648
      %v1880 = vxor.u32 %v1782, 2147483648
      %v1881 = vxor.u32 %v1787, 2147483648
      %v1882 = vxor.u32 %v1792, 2147483648
      %v1883 = vxor.u32 %v1797, 2147483648
      %v1884 = vxor.u32 %v1802, 2147483648
      %v1885 = vxor.u32 %v1807, 2147483648
      %v1886 = vxor.u32 %v1812, 2147483648
      %v1887 = vxor.u32 %v1817, 2147483648
      %v1888 = vxor.u32 %v1822, 2147483648
      %v1889 = vxor.u32 %v1827, 2147483648
      %v1890 = vxor.u32 %v1832, 2147483648
      %v1891 = vxor.u32 %v1837, 2147483648
      %v1892 = vxor.u32 %v1842, 2147483648
      %v1893 = vxor.u32 %v1847, 2147483648
      %v1894 = vxor.u32 %v1852, 2147483648
      %v1895 = vxor.u32 %v1857, 2147483648
      %v1896 = vxor.u32 %v1862, 2147483648
      %v1897 = vmul.f32 %v1865, 1.442695
      %v1898 = vpow.pop %v1897
      %v1899 = vmul.f32 %v1866, 1.442695
      %v1900 = vpow.pop %v1899
      %v1901 = vmul.f32 %v1867, 1.442695
      %v1902 = vpow.pop %v1901
      %v1903 = vmul.f32 %v1868, 1.442695
      %v1904 = vpow.pop %v1903
      %v1905 = vmul.f32 %v1869, 1.442695
      %v1906 = vpow.pop %v1905
      %v1907 = vmul.f32 %v1870, 1.442695
      %v1908 = vpow.pop %v1907
      %v1909 = vmul.f32 %v1871, 1.442695
      %v1910 = vpow.pop %v1909
      %v1911 = vmul.f32 %v1872, 1.442695
      %v1912 = vpow.pop %v1911
      %v1913 = vmul.f32 %v1873, 1.442695
      %v1914 = vpow.pop %v1913
      %v1915 = vmul.f32 %v1874, 1.442695
      %v1916 = vpow.pop %v1915
      %v1917 = vmul.f32 %v1875, 1.442695
      %v1918 = vpow.pop %v1917
      %v1919 = vmul.f32 %v1876, 1.442695
      %v1920 = vpow.pop %v1919
      %v1921 = vmul.f32 %v1877, 1.442695
      %v1922 = vpow.pop %v1921
      %v1923 = vmul.f32 %v1878, 1.442695
      %v1924 = vpow.pop %v1923
      %v1925 = vmul.f32 %v1879, 1.442695
      %v1926 = vpow.pop %v1925
      %v1927 = vmul.f32 %v1880, 1.442695
      %v1928 = vpow.pop %v1927
      %v1929 = vmul.f32 %v1881, 1.442695
      %v1930 = vpow.pop %v1929
      %v1931 = vmul.f32 %v1882, 1.442695
      %v1932 = vpow.pop %v1931
      %v1933 = vmul.f32 %v1883, 1.442695
      %v1934 = vpow.pop %v1933
      %v1935 = vmul.f32 %v1884, 1.442695
      %v1936 = vpow.pop %v1935
      %v1937 = vmul.f32 %v1885, 1.442695
      %v1938 = vpow.pop %v1937
      %v1939 = vmul.f32 %v1886, 1.442695
      %v1940 = vpow.pop %v1939
      %v1941 = vmul.f32 %v1887, 1.442695
      %v1942 = vpow.pop %v1941
      %v1943 = vmul.f32 %v1888, 1.442695
      %v1944 = vpow.pop %v1943
      %v1945 = vmul.f32 %v1889, 1.442695
      %v1946 = vpow.pop %v1945
      %v1947 = vmul.f32 %v1890, 1.442695
      %v1948 = vpow.pop %v1947
      %v1949 = vmul.f32 %v1891, 1.442695
      %v1950 = vpow.pop %v1949
      %v1951 = vmul.f32 %v1892, 1.442695
      %v1952 = vpow.pop %v1951
      %v1953 = vmul.f32 %v1893, 1.442695
      %v1954 = vpow.pop %v1953
      %v1955 = vmul.f32 %v1894, 1.442695
      %v1956 = vpow.pop %v1955
      %v1957 = vmul.f32 %v1895, 1.442695
      %v1958 = vpow.pop %v1957
      %v1959 = vmul.f32 %v1896, 1.442695
      %v1960 = vpow.pop %v1959
      %v1961 = vadd.f32 %v1898, 1.0
      %v1962 = vadd.f32 %v1900, 1.0
      %v1963 = vadd.f32 %v1902, 1.0
      %v1964 = vadd.f32 %v1904, 1.0
      %v1965 = vadd.f32 %v1906, 1.0
      %v1966 = vadd.f32 %v1908, 1.0
      %v1967 = vadd.f32 %v1910, 1.0
      %v1968 = vadd.f32 %v1912, 1.0
      %v1969 = vadd.f32 %v1914, 1.0
      %v1970 = vadd.f32 %v1916, 1.0
      %v1971 = vadd.f32 %v1918, 1.0
      %v1972 = vadd.f32 %v1920, 1.0
      %v1973 = vadd.f32 %v1922, 1.0
      %v1974 = vadd.f32 %v1924, 1.0
      %v1975 = vadd.f32 %v1926, 1.0
      %v1976 = vadd.f32 %v1928, 1.0
      %v1977 = vadd.f32 %v1930, 1.0
      %v1978 = vadd.f32 %v1932, 1.0
      %v1979 = vadd.f32 %v1934, 1.0
      %v1980 = vadd.f32 %v1936, 1.0
      %v1981 = vadd.f32 %v1938, 1.0
      %v1982 = vadd.f32 %v1940, 1.0
      %v1983 = vadd.f32 %v1942, 1.0
      %v1984 = vadd.f32 %v1944, 1.0
      %v1985 = vadd.f32 %v1946, 1.0
      %v1986 = vadd.f32 %v1948, 1.0
      %v1987 = vadd.f32 %v1950, 1.0
      %v1988 = vadd.f32 %v1952, 1.0
      %v1989 = vadd.f32 %v1954, 1.0
      %v1990 = vadd.f32 %v1956, 1.0
      %v1991 = vadd.f32 %v1958, 1.0
      %v1992 = vadd.f32 %v1960, 1.0
      %v1993 = vrcp.pop %v1961
      %v1994 = vmul.f32 1.0, %v1993
      %v1995 = vrcp.pop %v1962
      %v1996 = vmul.f32 1.0, %v1995
      %v1997 = vrcp.pop %v1963
      %v1998 = vmul.f32 1.0, %v1997
      %v1999 = vrcp.pop %v1964
      %v2000 = vmul.f32 1.0, %v1999
      %v2001 = vrcp.pop %v1965
      %v2002 = vmul.f32 1.0, %v2001
      %v2003 = vrcp.pop %v1966
      %v2004 = vmul.f32 1.0, %v2003
      %v2005 = vrcp.pop %v1967
      %v2006 = vmul.f32 1.0, %v2005
      %v2007 = vrcp.pop %v1968
      %v2008 = vmul.f32 1.0, %v2007
      %v2009 = vrcp.pop %v1969
      %v2010 = vmul.f32 1.0, %v2009
      %v2011 = vrcp.pop %v1970
      %v2012 = vmul.f32 1.0, %v2011
      %v2013 = vrcp.pop %v1971
      %v2014 = vmul.f32 1.0, %v2013
      %v2015 = vrcp.pop %v1972
      %v2016 = vmul.f32 1.0, %v2015
      %v2017 = vrcp.pop %v1973
      %v2018 = vmul.f32 1.0, %v2017
      %v2019 = vrcp.pop %v1974
      %v2020 = vmul.f32 1.0, %v2019
      %v2021 = vrcp.pop %v1975
      %v2022 = vmul.f32 1.0, %v2021
      %v2023 = vrcp.pop %v1976
      %v2024 = vmul.f32 1.0, %v2023
      %v2025 = vrcp.pop %v1977
      %v2026 = vmul.f32 1.0, %v2025
      %v2027 = vrcp.pop %v1978
      %v2028 = vmul.f32 1.0, %v2027
      %v2029 = vrcp.pop %v1979
      %v2030 = vmul.f32 1.0, %v2029
      %v2031 = vrcp.pop %v1980
      %v2032 = vmul.f32 1.0, %v2031
      %v2033 = vrcp.pop %v1981
      %v2034 = vmul.f32 1.0, %v2033
      %v2035 = vrcp.pop %v1982
      %v2036 = vmul.f32 1.0, %v2035
      %v2037 = vrcp.pop %v1983
      %v2038 = vmul.f32 1.0, %v2037
      %v2039 = vrcp.pop %v1984
      %v2040 = vmul.f32 1.0, %v2039
      %v2041 = vrcp.pop %v1985
      %v2042 = vmul.f32 1.0, %v2041
      %v2043 = vrcp.pop %v1986
      %v2044 = vmul.f32 1.0, %v2043
      %v2045 = vrcp.pop %v1987
      %v2046 = vmul.f32 1.0, %v2045
      %v2047 = vrcp.pop %v1988
      %v2048 = vmul.f32 1.0, %v2047
      %v2049 = vrcp.pop %v1989
      %v2050 = vmul.f32 1.0, %v2049
      %v2051 = vrcp.pop %v1990
      %v2052 = vmul.f32 1.0, %v2051
      %v2053 = vrcp.pop %v1991
      %v2054 = vmul.f32 1.0, %v2053
      %v2055 = vrcp.pop %v1992
      %v2056 = vmul.f32 1.0, %v2055
      %2058 = vset.pattern.permute.xlu0 0
      %2059 = vperm.xlu0 %2058, %v1994
      %v2060 = vpop.permute.xlu0 %2059
      %2063 = vset.pattern.permute.xlu0 0
      %2064 = vperm.xlu0 %2063, %v1996
      %v2065 = vpop.permute.xlu0 %2064
      %2068 = vset.pattern.permute.xlu0 0
      %2069 = vperm.xlu0 %2068, %v1998
      %v2070 = vpop.permute.xlu0 %2069
      %2073 = vset.pattern.permute.xlu0 0
      %2074 = vperm.xlu0 %2073, %v2000
      %v2075 = vpop.permute.xlu0 %2074
      %2078 = vset.pattern.permute.xlu0 0
      %2079 = vperm.xlu0 %2078, %v2002
      %v2080 = vpop.permute.xlu0 %2079
      %2083 = vset.pattern.permute.xlu0 0
      %2084 = vperm.xlu0 %2083, %v2004
      %v2085 = vpop.permute.xlu0 %2084
      %2088 = vset.pattern.permute.xlu0 0
      %2089 = vperm.xlu0 %2088, %v2006
      %v2090 = vpop.permute.xlu0 %2089
      %2093 = vset.pattern.permute.xlu0 0
      %2094 = vperm.xlu0 %2093, %v2008
      %v2095 = vpop.permute.xlu0 %2094
      %2098 = vset.pattern.permute.xlu0 0
      %2099 = vperm.xlu0 %2098, %v2010
      %v2100 = vpop.permute.xlu0 %2099
      %2103 = vset.pattern.permute.xlu0 0
      %2104 = vperm.xlu0 %2103, %v2012
      %v2105 = vpop.permute.xlu0 %2104
      %2108 = vset.pattern.permute.xlu0 0
      %2109 = vperm.xlu0 %2108, %v2014
      %v2110 = vpop.permute.xlu0 %2109
      %2113 = vset.pattern.permute.xlu0 0
      %2114 = vperm.xlu0 %2113, %v2016
      %v2115 = vpop.permute.xlu0 %2114
      %2118 = vset.pattern.permute.xlu0 0
      %2119 = vperm.xlu0 %2118, %v2018
      %v2120 = vpop.permute.xlu0 %2119
      %2123 = vset.pattern.permute.xlu0 0
      %2124 = vperm.xlu0 %2123, %v2020
      %v2125 = vpop.permute.xlu0 %2124
      %2128 = vset.pattern.permute.xlu0 0
      %2129 = vperm.xlu0 %2128, %v2022
      %v2130 = vpop.permute.xlu0 %2129
      %2133 = vset.pattern.permute.xlu0 0
      %2134 = vperm.xlu0 %2133, %v2024
      %v2135 = vpop.permute.xlu0 %2134
      %2138 = vset.pattern.permute.xlu0 0
      %2139 = vperm.xlu0 %2138, %v2026
      %v2140 = vpop.permute.xlu0 %2139
      %2143 = vset.pattern.permute.xlu0 0
      %2144 = vperm.xlu0 %2143, %v2028
      %v2145 = vpop.permute.xlu0 %2144
      %2148 = vset.pattern.permute.xlu0 0
      %2149 = vperm.xlu0 %2148, %v2030
      %v2150 = vpop.permute.xlu0 %2149
      %2153 = vset.pattern.permute.xlu0 0
      %2154 = vperm.xlu0 %2153, %v2032
      %v2155 = vpop.permute.xlu0 %2154
      %2158 = vset.pattern.permute.xlu0 0
      %2159 = vperm.xlu0 %2158, %v2034
      %v2160 = vpop.permute.xlu0 %2159
      %2163 = vset.pattern.permute.xlu0 0
      %2164 = vperm.xlu0 %2163, %v2036
      %v2165 = vpop.permute.xlu0 %2164
      %2168 = vset.pattern.permute.xlu0 0
      %2169 = vperm.xlu0 %2168, %v2038
      %v2170 = vpop.permute.xlu0 %2169
      %2173 = vset.pattern.permute.xlu0 0
      %2174 = vperm.xlu0 %2173, %v2040
      %v2175 = vpop.permute.xlu0 %2174
      %2178 = vset.pattern.permute.xlu0 0
      %2179 = vperm.xlu0 %2178, %v2042
      %v2180 = vpop.permute.xlu0 %2179
      %2183 = vset.pattern.permute.xlu0 0
      %2184 = vperm.xlu0 %2183, %v2044
      %v2185 = vpop.permute.xlu0 %2184
      %2188 = vset.pattern.permute.xlu0 0
      %2189 = vperm.xlu0 %2188, %v2046
      %v2190 = vpop.permute.xlu0 %2189
      %2193 = vset.pattern.permute.xlu0 0
      %2194 = vperm.xlu0 %2193, %v2048
      %v2195 = vpop.permute.xlu0 %2194
      %2198 = vset.pattern.permute.xlu0 0
      %2199 = vperm.xlu0 %2198, %v2050
      %v2200 = vpop.permute.xlu0 %2199
      %2203 = vset.pattern.permute.xlu0 0
      %2204 = vperm.xlu0 %2203, %v2052
      %v2205 = vpop.permute.xlu0 %2204
      %2208 = vset.pattern.permute.xlu0 0
      %2209 = vperm.xlu0 %2208, %v2054
      %v2210 = vpop.permute.xlu0 %2209
      %2213 = vset.pattern.permute.xlu0 0
      %2214 = vperm.xlu0 %2213, %v2056
      %v2215 = vpop.permute.xlu0 %2214
      %v2217 = vmul.f32 %v1094, %v2060
      %v2218 = vmul.f32 %v1095, %v2065
      %v2219 = vmul.f32 %v1096, %v2070
      %v2220 = vmul.f32 %v1097, %v2075
      %v2221 = vmul.f32 %v1098, %v2080
      %v2222 = vmul.f32 %v1099, %v2085
      %v2223 = vmul.f32 %v1100, %v2090
      %v2224 = vmul.f32 %v1101, %v2095
      %v2225 = vmul.f32 %v1102, %v2100
      %v2226 = vmul.f32 %v1103, %v2105
      %v2227 = vmul.f32 %v1104, %v2110
      %v2228 = vmul.f32 %v1105, %v2115
      %v2229 = vmul.f32 %v1106, %v2120
      %v2230 = vmul.f32 %v1107, %v2125
      %v2231 = vmul.f32 %v1108, %v2130
      %v2232 = vmul.f32 %v1109, %v2135
      %v2233 = vmul.f32 %v1110, %v2140
      %v2234 = vmul.f32 %v1111, %v2145
      %v2235 = vmul.f32 %v1112, %v2150
      %v2236 = vmul.f32 %v1113, %v2155
      %v2237 = vmul.f32 %v1114, %v2160
      %v2238 = vmul.f32 %v1115, %v2165
      %v2239 = vmul.f32 %v1116, %v2170
      %v2240 = vmul.f32 %v1117, %v2175
      %v2241 = vmul.f32 %v1118, %v2180
      %v2242 = vmul.f32 %v1119, %v2185
      %v2243 = vmul.f32 %v1120, %v2190
      %v2244 = vmul.f32 %v1121, %v2195
      %v2245 = vmul.f32 %v1122, %v2200
      %v2246 = vmul.f32 %v1123, %v2205
      %v2247 = vmul.f32 %v1124, %v2210
      %v2248 = vmul.f32 %v1125, %v2215
      %2249 = vst [vmem:[#allocation2] sm:$0xff] %v2217
      %2250 = vst [vmem:[#allocation2 + $0x8] sm:$0xff] %v2218
      %2251 = vst [vmem:[#allocation2 + $0x10] sm:$0xff] %v2219
      %2252 = vst [vmem:[#allocation2 + $0x18] sm:$0xff] %v2220
      %2253 = vst [vmem:[#allocation2 + $0x20] sm:$0xff] %v2221
      %2254 = vst [vmem:[#allocation2 + $0x28] sm:$0xff] %v2222
      %2255 = vst [vmem:[#allocation2 + $0x30] sm:$0xff] %v2223
      %2256 = vst [vmem:[#allocation2 + $0x38] sm:$0xff] %v2224
      %2257 = vst [vmem:[#allocation2 + $0x40] sm:$0xff] %v2225
      %2258 = vst [vmem:[#allocation2 + $0x48] sm:$0xff] %v2226
      %2259 = vst [vmem:[#allocation2 + $0x50] sm:$0xff] %v2227
      %2260 = vst [vmem:[#allocation2 + $0x58] sm:$0xff] %v2228
      %2261 = vst [vmem:[#allocation2 + $0x60] sm:$0xff] %v2229
      %2262 = vst [vmem:[#allocation2 + $0x68] sm:$0xff] %v2230
      %2263 = vst [vmem:[#allocation2 + $0x70] sm:$0xff] %v2231
      %2264 = vst [vmem:[#allocation2 + $0x78] sm:$0xff] %v2232
      %2265 = vst [vmem:[#allocation2 + $0x80] sm:$0xff] %v2233
      %2266 = vst [vmem:[#allocation2 + $0x88] sm:$0xff] %v2234
      %2267 = vst [vmem:[#allocation2 + $0x90] sm:$0xff] %v2235
      %2268 = vst [vmem:[#allocation2 + $0x98] sm:$0xff] %v2236
      %2269 = vst [vmem:[#allocation2 + $0xa0] sm:$0xff] %v2237
      %2270 = vst [vmem:[#allocation2 + $0xa8] sm:$0xff] %v2238
      %2271 = vst [vmem:[#allocation2 + $0xb0] sm:$0xff] %v2239
      %2272 = vst [vmem:[#allocation2 + $0xb8] sm:$0xff] %v2240
      %2273 = vst [vmem:[#allocation2 + $0xc0] sm:$0xff] %v2241
      %2274 = vst [vmem:[#allocation2 + $0xc8] sm:$0xff] %v2242
      %2275 = vst [vmem:[#allocation2 + $0xd0] sm:$0xff] %v2243
      %2276 = vst [vmem:[#allocation2 + $0xd8] sm:$0xff] %v2244
      %2277 = vst [vmem:[#allocation2 + $0xe0] sm:$0xff] %v2245
      %2278 = vst [vmem:[#allocation2 + $0xe8] sm:$0xff] %v2246
      %2279 = vst [vmem:[#allocation2 + $0xf0] sm:$0xff] %v2247
      %2280 = vst [vmem:[#allocation2 + $0xf8] sm:$0xff] %v2248
      %v2281 = vld [vmem:[%s8] sm:$0xff]
      %v2282 = vld [vmem:[%s8 + $0x8] sm:$0xff]
      %v2283 = vld [vmem:[%s8 + $0x10] sm:$0xff]
      %v2284 = vld [vmem:[%s8 + $0x18] sm:$0xff]
      %v2285 = vld [vmem:[%s8 + $0x20] sm:$0xff]
      %v2286 = vld [vmem:[%s8 + $0x28] sm:$0xff]
      %v2287 = vld [vmem:[%s8 + $0x30] sm:$0xff]
      %v2288 = vld [vmem:[%s8 + $0x38] sm:$0xff]
      %v2289 = vld [vmem:[%s8 + $0x40] sm:$0xff]
      %v2290 = vld [vmem:[%s8 + $0x48] sm:$0xff]
      %v2291 = vld [vmem:[%s8 + $0x50] sm:$0xff]
      %v2292 = vld [vmem:[%s8 + $0x58] sm:$0xff]
      %v2293 = vld [vmem:[%s8 + $0x60] sm:$0xff]
      %v2294 = vld [vmem:[%s8 + $0x68] sm:$0xff]
      %v2295 = vld [vmem:[%s8 + $0x70] sm:$0xff]
      %v2296 = vld [vmem:[%s8 + $0x78] sm:$0xff]
      %v2297 = vld [vmem:[%s11] sm:$0x1]
      %v2299 = vlaneseq
      %v2300 = vshrl.u32 %v2299, 7
      %v2301 = vsub.s32 0, %v2300
      %v2302 = vrot.slane %v2297, %v2301
      %2304 = vmatprep.subr.mxu0 0.0
      %2305 = vmatpush1.msra.mxu0 %v2296
      %2306 = vmatprep.subr.mxu0 0.0
      %2307 = vmatpush1.msra.mxu0 %v2295
      %2308 = vmatprep.subr.mxu0 0.0
      %2309 = vmatpush1.msra.mxu0 %v2294
      %2310 = vmatprep.subr.mxu0 0.0
      %2311 = vmatpush1.msra.mxu0 %v2293
      %2312 = vmatprep.subr.mxu0 0.0
      %2313 = vmatpush1.msra.mxu0 %v2292
      %2314 = vmatprep.subr.mxu0 0.0
      %2315 = vmatpush1.msra.mxu0 %v2291
      %2316 = vmatprep.subr.mxu0 0.0
      %2317 = vmatpush1.msra.mxu0 %v2290
      %2318 = vmatprep.subr.mxu0 0.0
      %2319 = vmatpush1.msra.mxu0 %v2289
      %2320 = vmatprep.subr.mxu0 0.0
      %2321 = vmatpush1.msra.mxu0 %v2288
      %2322 = vmatprep.subr.mxu0 0.0
      %2323 = vmatpush1.msra.mxu0 %v2287
      %2324 = vmatprep.subr.mxu0 0.0
      %2325 = vmatpush1.msra.mxu0 %v2286
      %2326 = vmatprep.subr.mxu0 0.0
      %2327 = vmatpush1.msra.mxu0 %v2285
      %2328 = vmatprep.subr.mxu0 0.0
      %2329 = vmatpush1.msra.mxu0 %v2284
      %2330 = vmatprep.subr.mxu0 0.0
      %2331 = vmatpush1.msra.mxu0 %v2283
      %2332 = vmatprep.subr.mxu0 0.0
      %2333 = vmatpush1.msra.mxu0 %v2282
      %2334 = vmatprep.subr.mxu0 0.0
      %2335 = vmatpush1.msra.mxu0 %v2281
      %2336 = vmatprep.subr.mxu0 0.0
      %2337 = vmatpush2.msra.mxu0 0.0
      %2338 = vmatprep.subr.mxu0 0.0
      %2339 = vmatpush2.msra.mxu0 0.0
      %2340 = vmatprep.subr.mxu0 0.0
      %2341 = vmatpush2.msra.mxu0 0.0
      %2342 = vmatprep.subr.mxu0 0.0
      %2343 = vmatpush2.msra.mxu0 0.0
      %2344 = vmatprep.subr.mxu0 0.0
      %2345 = vmatpush2.msra.mxu0 0.0
      %2346 = vmatprep.subr.mxu0 0.0
      %2347 = vmatpush2.msra.mxu0 0.0
      %2348 = vmatprep.subr.mxu0 0.0
      %2349 = vmatpush2.msra.mxu0 0.0
      %2350 = vmatprep.subr.mxu0 0.0
      %2351 = vmatpush2.msra.mxu0 0.0
      %2352 = vmatprep.subr.mxu0 0.0
      %2353 = vmatpush2.msra.mxu0 0.0
      %2354 = vmatprep.subr.mxu0 0.0
      %2355 = vmatpush2.msra.mxu0 0.0
      %2356 = vmatprep.subr.mxu0 0.0
      %2357 = vmatpush2.msra.mxu0 0.0
      %2358 = vmatprep.subr.mxu0 0.0
      %2359 = vmatpush2.msra.mxu0 0.0
      %2360 = vmatprep.subr.mxu0 0.0
      %2361 = vmatpush2.msra.mxu0 0.0
      %2362 = vmatprep.subr.mxu0 0.0
      %2363 = vmatpush2.msra.mxu0 0.0
      %2364 = vmatprep.subr.mxu0 0.0
      %2365 = vmatpush2.msra.mxu0 0.0
      %2366 = vmatprep.subr.mxu0 0.0
      %2367 = vmatpush2.msra.mxu0 0.0
      %2368 = vmatprep.mubr.f32.mxu0 0.0
      %2369 = vmatmul.mubr.f32.gmra.mxu0 %v2217
      %v2370 = vpop.f32.mrf.mxu0
      %v2371 = vadd.f32 %v2302, %v2370
      %v2372 = vpop.f32.mrf.mxu0
      %2373 = vmatprep.mubr.f32.mxu0 0.0
      %2374 = vmatmul.mubr.f32.gmra.mxu0 %v2218
      %v2375 = vpop.f32.mrf.mxu0
      %v2376 = vadd.f32 %v2302, %v2375
      %v2377 = vpop.f32.mrf.mxu0
      %2378 = vmatprep.mubr.f32.mxu0 0.0
      %2379 = vmatmul.mubr.f32.gmra.mxu0 %v2219
      %v2380 = vpop.f32.mrf.mxu0
      %v2381 = vadd.f32 %v2302, %v2380
      %v2382 = vpop.f32.mrf.mxu0
      %2383 = vmatprep.mubr.f32.mxu0 0.0
      %2384 = vmatmul.mubr.f32.gmra.mxu0 %v2220
      %v2385 = vpop.f32.mrf.mxu0
      %v2386 = vadd.f32 %v2302, %v2385
      %v2387 = vpop.f32.mrf.mxu0
      %2388 = vmatprep.mubr.f32.mxu0 0.0
      %2389 = vmatmul.mubr.f32.gmra.mxu0 %v2221
      %v2390 = vpop.f32.mrf.mxu0
      %v2391 = vadd.f32 %v2302, %v2390
      %v2392 = vpop.f32.mrf.mxu0
      %2393 = vmatprep.mubr.f32.mxu0 0.0
      %2394 = vmatmul.mubr.f32.gmra.mxu0 %v2222
      %v2395 = vpop.f32.mrf.mxu0
      %v2396 = vadd.f32 %v2302, %v2395
      %v2397 = vpop.f32.mrf.mxu0
      %2398 = vmatprep.mubr.f32.mxu0 0.0
      %2399 = vmatmul.mubr.f32.gmra.mxu0 %v2223
      %v2400 = vpop.f32.mrf.mxu0
      %v2401 = vadd.f32 %v2302, %v2400
      %v2402 = vpop.f32.mrf.mxu0
      %2403 = vmatprep.mubr.f32.mxu0 0.0
      %2404 = vmatmul.mubr.f32.gmra.mxu0 %v2224
      %v2405 = vpop.f32.mrf.mxu0
      %v2406 = vadd.f32 %v2302, %v2405
      %v2407 = vpop.f32.mrf.mxu0
      %2408 = vmatprep.mubr.f32.mxu0 0.0
      %2409 = vmatmul.mubr.f32.gmra.mxu0 %v2225
      %v2410 = vpop.f32.mrf.mxu0
      %v2411 = vadd.f32 %v2302, %v2410
      %v2412 = vpop.f32.mrf.mxu0
      %2413 = vmatprep.mubr.f32.mxu0 0.0
      %2414 = vmatmul.mubr.f32.gmra.mxu0 %v2226
      %v2415 = vpop.f32.mrf.mxu0
      %v2416 = vadd.f32 %v2302, %v2415
      %v2417 = vpop.f32.mrf.mxu0
      %2418 = vmatprep.mubr.f32.mxu0 0.0
      %2419 = vmatmul.mubr.f32.gmra.mxu0 %v2227
      %v2420 = vpop.f32.mrf.mxu0
      %v2421 = vadd.f32 %v2302, %v2420
      %v2422 = vpop.f32.mrf.mxu0
      %2423 = vmatprep.mubr.f32.mxu0 0.0
      %2424 = vmatmul.mubr.f32.gmra.mxu0 %v2228
      %v2425 = vpop.f32.mrf.mxu0
      %v2426 = vadd.f32 %v2302, %v2425
      %v2427 = vpop.f32.mrf.mxu0
      %2428 = vmatprep.mubr.f32.mxu0 0.0
      %2429 = vmatmul.mubr.f32.gmra.mxu0 %v2229
      %v2430 = vpop.f32.mrf.mxu0
      %v2431 = vadd.f32 %v2302, %v2430
      %v2432 = vpop.f32.mrf.mxu0
      %2433 = vmatprep.mubr.f32.mxu0 0.0
      %2434 = vmatmul.mubr.f32.gmra.mxu0 %v2230
      %v2435 = vpop.f32.mrf.mxu0
      %v2436 = vadd.f32 %v2302, %v2435
      %v2437 = vpop.f32.mrf.mxu0
      %2438 = vmatprep.mubr.f32.mxu0 0.0
      %2439 = vmatmul.mubr.f32.gmra.mxu0 %v2231
      %v2440 = vpop.f32.mrf.mxu0
      %v2441 = vadd.f32 %v2302, %v2440
      %v2442 = vpop.f32.mrf.mxu0
      %2443 = vmatprep.mubr.f32.mxu0 0.0
      %2444 = vmatmul.mubr.f32.gmra.mxu0 %v2232
      %v2445 = vpop.f32.mrf.mxu0
      %v2446 = vadd.f32 %v2302, %v2445
      %v2447 = vpop.f32.mrf.mxu0
      %2448 = vmatprep.mubr.f32.mxu0 0.0
      %2449 = vmatmul.mubr.f32.gmra.mxu0 %v2233
      %v2450 = vpop.f32.mrf.mxu0
      %v2451 = vadd.f32 %v2302, %v2450
      %v2452 = vpop.f32.mrf.mxu0
      %2453 = vmatprep.mubr.f32.mxu0 0.0
      %2454 = vmatmul.mubr.f32.gmra.mxu0 %v2234
      %v2455 = vpop.f32.mrf.mxu0
      %v2456 = vadd.f32 %v2302, %v2455
      %v2457 = vpop.f32.mrf.mxu0
      %2458 = vmatprep.mubr.f32.mxu0 0.0
      %2459 = vmatmul.mubr.f32.gmra.mxu0 %v2235
      %v2460 = vpop.f32.mrf.mxu0
      %v2461 = vadd.f32 %v2302, %v2460
      %v2462 = vpop.f32.mrf.mxu0
      %2463 = vmatprep.mubr.f32.mxu0 0.0
      %2464 = vmatmul.mubr.f32.gmra.mxu0 %v2236
      %v2465 = vpop.f32.mrf.mxu0
      %v2466 = vadd.f32 %v2302, %v2465
      %v2467 = vpop.f32.mrf.mxu0
      %2468 = vmatprep.mubr.f32.mxu0 0.0
      %2469 = vmatmul.mubr.f32.gmra.mxu0 %v2237
      %v2470 = vpop.f32.mrf.mxu0
      %v2471 = vadd.f32 %v2302, %v2470
      %v2472 = vpop.f32.mrf.mxu0
      %2473 = vmatprep.mubr.f32.mxu0 0.0
      %2474 = vmatmul.mubr.f32.gmra.mxu0 %v2238
      %v2475 = vpop.f32.mrf.mxu0
      %v2476 = vadd.f32 %v2302, %v2475
      %v2477 = vpop.f32.mrf.mxu0
      %2478 = vmatprep.mubr.f32.mxu0 0.0
      %2479 = vmatmul.mubr.f32.gmra.mxu0 %v2239
      %v2480 = vpop.f32.mrf.mxu0
      %v2481 = vadd.f32 %v2302, %v2480
      %v2482 = vpop.f32.mrf.mxu0
      %2483 = vmatprep.mubr.f32.mxu0 0.0
      %2484 = vmatmul.mubr.f32.gmra.mxu0 %v2240
      %v2485 = vpop.f32.mrf.mxu0
      %v2486 = vadd.f32 %v2302, %v2485
      %v2487 = vpop.f32.mrf.mxu0
      %2488 = vmatprep.mubr.f32.mxu0 0.0
      %2489 = vmatmul.mubr.f32.gmra.mxu0 %v2241
      %v2490 = vpop.f32.mrf.mxu0
      %v2491 = vadd.f32 %v2302, %v2490
      %v2492 = vpop.f32.mrf.mxu0
      %2493 = vmatprep.mubr.f32.mxu0 0.0
      %2494 = vmatmul.mubr.f32.gmra.mxu0 %v2242
      %v2495 = vpop.f32.mrf.mxu0
      %v2496 = vadd.f32 %v2302, %v2495
      %v2497 = vpop.f32.mrf.mxu0
      %2498 = vmatprep.mubr.f32.mxu0 0.0
      %2499 = vmatmul.mubr.f32.gmra.mxu0 %v2243
      %v2500 = vpop.f32.mrf.mxu0
      %v2501 = vadd.f32 %v2302, %v2500
      %v2502 = vpop.f32.mrf.mxu0
      %2503 = vmatprep.mubr.f32.mxu0 0.0
      %2504 = vmatmul.mubr.f32.gmra.mxu0 %v2244
      %v2505 = vpop.f32.mrf.mxu0
      %v2506 = vadd.f32 %v2302, %v2505
      %v2507 = vpop.f32.mrf.mxu0
      %2508 = vmatprep.mubr.f32.mxu0 0.0
      %2509 = vmatmul.mubr.f32.gmra.mxu0 %v2245
      %v2510 = vpop.f32.mrf.mxu0
      %v2511 = vadd.f32 %v2302, %v2510
      %v2512 = vpop.f32.mrf.mxu0
      %2513 = vmatprep.mubr.f32.mxu0 0.0
      %2514 = vmatmul.mubr.f32.gmra.mxu0 %v2246
      %v2515 = vpop.f32.mrf.mxu0
      %v2516 = vadd.f32 %v2302, %v2515
      %v2517 = vpop.f32.mrf.mxu0
      %2518 = vmatprep.mubr.f32.mxu0 0.0
      %2519 = vmatmul.mubr.f32.gmra.mxu0 %v2247
      %v2520 = vpop.f32.mrf.mxu0
      %v2521 = vadd.f32 %v2302, %v2520
      %v2522 = vpop.f32.mrf.mxu0
      %2523 = vmatprep.mubr.f32.mxu0 0.0
      %2524 = vmatmul.mubr.f32.gmra.mxu0 %v2248
      %v2525 = vpop.f32.mrf.mxu0
      %v2526 = vadd.f32 %v2302, %v2525
      %v2527 = vpop.f32.mrf.mxu0
      %2528 = vdwg.mxu0
      %2529 = vst [vmem:[#allocation3] sm:$0xff] %v2371
      %2530 = vst [vmem:[#allocation3 + $0x8] sm:$0xff] %v2376
      %2531 = vst [vmem:[#allocation3 + $0x10] sm:$0xff] %v2381
      %2532 = vst [vmem:[#allocation3 + $0x18] sm:$0xff] %v2386
      %2533 = vst [vmem:[#allocation3 + $0x20] sm:$0xff] %v2391
      %2534 = vst [vmem:[#allocation3 + $0x28] sm:$0xff] %v2396
      %2535 = vst [vmem:[#allocation3 + $0x30] sm:$0xff] %v2401
      %2536 = vst [vmem:[#allocation3 + $0x38] sm:$0xff] %v2406
      %2537 = vst [vmem:[#allocation3 + $0x40] sm:$0xff] %v2411
      %2538 = vst [vmem:[#allocation3 + $0x48] sm:$0xff] %v2416
      %2539 = vst [vmem:[#allocation3 + $0x50] sm:$0xff] %v2421
      %2540 = vst [vmem:[#allocation3 + $0x58] sm:$0xff] %v2426
      %2541 = vst [vmem:[#allocation3 + $0x60] sm:$0xff] %v2431
      %2542 = vst [vmem:[#allocation3 + $0x68] sm:$0xff] %v2436
      %2543 = vst [vmem:[#allocation3 + $0x70] sm:$0xff] %v2441
      %2544 = vst [vmem:[#allocation3 + $0x78] sm:$0xff] %v2446
      %2545 = vst [vmem:[#allocation3 + $0x80] sm:$0xff] %v2451
      %2546 = vst [vmem:[#allocation3 + $0x88] sm:$0xff] %v2456
      %2547 = vst [vmem:[#allocation3 + $0x90] sm:$0xff] %v2461
      %2548 = vst [vmem:[#allocation3 + $0x98] sm:$0xff] %v2466
      %2549 = vst [vmem:[#allocation3 + $0xa0] sm:$0xff] %v2471
      %2550 = vst [vmem:[#allocation3 + $0xa8] sm:$0xff] %v2476
      %2551 = vst [vmem:[#allocation3 + $0xb0] sm:$0xff] %v2481
      %2552 = vst [vmem:[#allocation3 + $0xb8] sm:$0xff] %v2486
      %2553 = vst [vmem:[#allocation3 + $0xc0] sm:$0xff] %v2491
      %2554 = vst [vmem:[#allocation3 + $0xc8] sm:$0xff] %v2496
      %2555 = vst [vmem:[#allocation3 + $0xd0] sm:$0xff] %v2501
      %2556 = vst [vmem:[#allocation3 + $0xd8] sm:$0xff] %v2506
      %2557 = vst [vmem:[#allocation3 + $0xe0] sm:$0xff] %v2511
      %2558 = vst [vmem:[#allocation3 + $0xe8] sm:$0xff] %v2516
      %2559 = vst [vmem:[#allocation3 + $0xf0] sm:$0xff] %v2521
      %2560 = vst [vmem:[#allocation3 + $0xf8] sm:$0xff] %v2526
      %v2561 = vld [vmem:[%s9] sm:$0xff]
      %v2562 = vld [vmem:[%s9 + $0x8] sm:$0xff]
      %v2563 = vld [vmem:[%s9 + $0x10] sm:$0xff]
      %v2564 = vld [vmem:[%s9 + $0x18] sm:$0xff]
      %v2565 = vld [vmem:[%s9 + $0x20] sm:$0xff]
      %v2566 = vld [vmem:[%s9 + $0x28] sm:$0xff]
      %v2567 = vld [vmem:[%s9 + $0x30] sm:$0xff]
      %v2568 = vld [vmem:[%s9 + $0x38] sm:$0xff]
      %v2569 = vld [vmem:[%s9 + $0x40] sm:$0xff]
      %v2570 = vld [vmem:[%s9 + $0x48] sm:$0xff]
      %v2571 = vld [vmem:[%s9 + $0x50] sm:$0xff]
      %v2572 = vld [vmem:[%s9 + $0x58] sm:$0xff]
      %v2573 = vld [vmem:[%s9 + $0x60] sm:$0xff]
      %v2574 = vld [vmem:[%s9 + $0x68] sm:$0xff]
      %v2575 = vld [vmem:[%s9 + $0x70] sm:$0xff]
      %v2576 = vld [vmem:[%s9 + $0x78] sm:$0xff]
      %v2577 = vld [vmem:[%s12] sm:$0x1]
      %v2579 = vlaneseq
      %v2580 = vshrl.u32 %v2579, 7
      %v2581 = vsub.s32 0, %v2580
      %v2582 = vrot.slane %v2577, %v2581
      %2584 = vmatprep.subr.mxu0 0.0
      %2585 = vmatpush1.msra.mxu0 %v2576
      %2586 = vmatprep.subr.mxu0 0.0
      %2587 = vmatpush1.msra.mxu0 %v2575
      %2588 = vmatprep.subr.mxu0 0.0
      %2589 = vmatpush1.msra.mxu0 %v2574
      %2590 = vmatprep.subr.mxu0 0.0
      %2591 = vmatpush1.msra.mxu0 %v2573
      %2592 = vmatprep.subr.mxu0 0.0
      %2593 = vmatpush1.msra.mxu0 %v2572
      %2594 = vmatprep.subr.mxu0 0.0
      %2595 = vmatpush1.msra.mxu0 %v2571
      %2596 = vmatprep.subr.mxu0 0.0
      %2597 = vmatpush1.msra.mxu0 %v2570
      %2598 = vmatprep.subr.mxu0 0.0
      %2599 = vmatpush1.msra.mxu0 %v2569
      %2600 = vmatprep.subr.mxu0 0.0
      %2601 = vmatpush1.msra.mxu0 %v2568
      %2602 = vmatprep.subr.mxu0 0.0
      %2603 = vmatpush1.msra.mxu0 %v2567
      %2604 = vmatprep.subr.mxu0 0.0
      %2605 = vmatpush1.msra.mxu0 %v2566
      %2606 = vmatprep.subr.mxu0 0.0
      %2607 = vmatpush1.msra.mxu0 %v2565
      %2608 = vmatprep.subr.mxu0 0.0
      %2609 = vmatpush1.msra.mxu0 %v2564
      %2610 = vmatprep.subr.mxu0 0.0
      %2611 = vmatpush1.msra.mxu0 %v2563
      %2612 = vmatprep.subr.mxu0 0.0
      %2613 = vmatpush1.msra.mxu0 %v2562
      %2614 = vmatprep.subr.mxu0 0.0
      %2615 = vmatpush1.msra.mxu0 %v2561
      %2616 = vmatprep.subr.mxu0 0.0
      %2617 = vmatpush2.msra.mxu0 0.0
      %2618 = vmatprep.subr.mxu0 0.0
      %2619 = vmatpush2.msra.mxu0 0.0
      %2620 = vmatprep.subr.mxu0 0.0
      %2621 = vmatpush2.msra.mxu0 0.0
      %2622 = vmatprep.subr.mxu0 0.0
      %2623 = vmatpush2.msra.mxu0 0.0
      %2624 = vmatprep.subr.mxu0 0.0
      %2625 = vmatpush2.msra.mxu0 0.0
      %2626 = vmatprep.subr.mxu0 0.0
      %2627 = vmatpush2.msra.mxu0 0.0
      %2628 = vmatprep.subr.mxu0 0.0
      %2629 = vmatpush2.msra.mxu0 0.0
      %2630 = vmatprep.subr.mxu0 0.0
      %2631 = vmatpush2.msra.mxu0 0.0
      %2632 = vmatprep.subr.mxu0 0.0
      %2633 = vmatpush2.msra.mxu0 0.0
      %2634 = vmatprep.subr.mxu0 0.0
      %2635 = vmatpush2.msra.mxu0 0.0
      %2636 = vmatprep.subr.mxu0 0.0
      %2637 = vmatpush2.msra.mxu0 0.0
      %2638 = vmatprep.subr.mxu0 0.0
      %2639 = vmatpush2.msra.mxu0 0.0
      %2640 = vmatprep.subr.mxu0 0.0
      %2641 = vmatpush2.msra.mxu0 0.0
      %2642 = vmatprep.subr.mxu0 0.0
      %2643 = vmatpush2.msra.mxu0 0.0
      %2644 = vmatprep.subr.mxu0 0.0
      %2645 = vmatpush2.msra.mxu0 0.0
      %2646 = vmatprep.subr.mxu0 0.0
      %2647 = vmatpush2.msra.mxu0 0.0
      %2648 = vmatprep.mubr.f32.mxu0 0.0
      %2649 = vmatmul.mubr.f32.gmra.mxu0 %v2217
      %v2650 = vpop.f32.mrf.mxu0
      %v2651 = vadd.f32 %v2582, %v2650
      %v2652 = vpop.f32.mrf.mxu0
      %2653 = vmatprep.mubr.f32.mxu0 0.0
      %2654 = vmatmul.mubr.f32.gmra.mxu0 %v2218
      %v2655 = vpop.f32.mrf.mxu0
      %v2656 = vadd.f32 %v2582, %v2655
      %v2657 = vpop.f32.mrf.mxu0
      %2658 = vmatprep.mubr.f32.mxu0 0.0
      %2659 = vmatmul.mubr.f32.gmra.mxu0 %v2219
      %v2660 = vpop.f32.mrf.mxu0
      %v2661 = vadd.f32 %v2582, %v2660
      %v2662 = vpop.f32.mrf.mxu0
      %2663 = vmatprep.mubr.f32.mxu0 0.0
      %2664 = vmatmul.mubr.f32.gmra.mxu0 %v2220
      %v2665 = vpop.f32.mrf.mxu0
      %v2666 = vadd.f32 %v2582, %v2665
      %v2667 = vpop.f32.mrf.mxu0
      %2668 = vmatprep.mubr.f32.mxu0 0.0
      %2669 = vmatmul.mubr.f32.gmra.mxu0 %v2221
      %v2670 = vpop.f32.mrf.mxu0
      %v2671 = vadd.f32 %v2582, %v2670
      %v2672 = vpop.f32.mrf.mxu0
      %2673 = vmatprep.mubr.f32.mxu0 0.0
      %2674 = vmatmul.mubr.f32.gmra.mxu0 %v2222
      %v2675 = vpop.f32.mrf.mxu0
      %v2676 = vadd.f32 %v2582, %v2675
      %v2677 = vpop.f32.mrf.mxu0
      %2678 = vmatprep.mubr.f32.mxu0 0.0
      %2679 = vmatmul.mubr.f32.gmra.mxu0 %v2223
      %v2680 = vpop.f32.mrf.mxu0
      %v2681 = vadd.f32 %v2582, %v2680
      %v2682 = vpop.f32.mrf.mxu0
      %2683 = vmatprep.mubr.f32.mxu0 0.0
      %2684 = vmatmul.mubr.f32.gmra.mxu0 %v2224
      %v2685 = vpop.f32.mrf.mxu0
      %v2686 = vadd.f32 %v2582, %v2685
      %v2687 = vpop.f32.mrf.mxu0
      %2688 = vmatprep.mubr.f32.mxu0 0.0
      %2689 = vmatmul.mubr.f32.gmra.mxu0 %v2225
      %v2690 = vpop.f32.mrf.mxu0
      %v2691 = vadd.f32 %v2582, %v2690
      %v2692 = vpop.f32.mrf.mxu0
      %2693 = vmatprep.mubr.f32.mxu0 0.0
      %2694 = vmatmul.mubr.f32.gmra.mxu0 %v2226
      %v2695 = vpop.f32.mrf.mxu0
      %v2696 = vadd.f32 %v2582, %v2695
      %v2697 = vpop.f32.mrf.mxu0
      %2698 = vmatprep.mubr.f32.mxu0 0.0
      %2699 = vmatmul.mubr.f32.gmra.mxu0 %v2227
      %v2700 = vpop.f32.mrf.mxu0
      %v2701 = vadd.f32 %v2582, %v2700
      %v2702 = vpop.f32.mrf.mxu0
      %2703 = vmatprep.mubr.f32.mxu0 0.0
      %2704 = vmatmul.mubr.f32.gmra.mxu0 %v2228
      %v2705 = vpop.f32.mrf.mxu0
      %v2706 = vadd.f32 %v2582, %v2705
      %v2707 = vpop.f32.mrf.mxu0
      %2708 = vmatprep.mubr.f32.mxu0 0.0
      %2709 = vmatmul.mubr.f32.gmra.mxu0 %v2229
      %v2710 = vpop.f32.mrf.mxu0
      %v2711 = vadd.f32 %v2582, %v2710
      %v2712 = vpop.f32.mrf.mxu0
      %2713 = vmatprep.mubr.f32.mxu0 0.0
      %2714 = vmatmul.mubr.f32.gmra.mxu0 %v2230
      %v2715 = vpop.f32.mrf.mxu0
      %v2716 = vadd.f32 %v2582, %v2715
      %v2717 = vpop.f32.mrf.mxu0
      %2718 = vmatprep.mubr.f32.mxu0 0.0
      %2719 = vmatmul.mubr.f32.gmra.mxu0 %v2231
      %v2720 = vpop.f32.mrf.mxu0
      %v2721 = vadd.f32 %v2582, %v2720
      %v2722 = vpop.f32.mrf.mxu0
      %2723 = vmatprep.mubr.f32.mxu0 0.0
      %2724 = vmatmul.mubr.f32.gmra.mxu0 %v2232
      %v2725 = vpop.f32.mrf.mxu0
      %v2726 = vadd.f32 %v2582, %v2725
      %v2727 = vpop.f32.mrf.mxu0
      %2728 = vmatprep.mubr.f32.mxu0 0.0
      %2729 = vmatmul.mubr.f32.gmra.mxu0 %v2233
      %v2730 = vpop.f32.mrf.mxu0
      %v2731 = vadd.f32 %v2582, %v2730
      %v2732 = vpop.f32.mrf.mxu0
      %2733 = vmatprep.mubr.f32.mxu0 0.0
      %2734 = vmatmul.mubr.f32.gmra.mxu0 %v2234
      %v2735 = vpop.f32.mrf.mxu0
      %v2736 = vadd.f32 %v2582, %v2735
      %v2737 = vpop.f32.mrf.mxu0
      %2738 = vmatprep.mubr.f32.mxu0 0.0
      %2739 = vmatmul.mubr.f32.gmra.mxu0 %v2235
      %v2740 = vpop.f32.mrf.mxu0
      %v2741 = vadd.f32 %v2582, %v2740
      %v2742 = vpop.f32.mrf.mxu0
      %2743 = vmatprep.mubr.f32.mxu0 0.0
      %2744 = vmatmul.mubr.f32.gmra.mxu0 %v2236
      %v2745 = vpop.f32.mrf.mxu0
      %v2746 = vadd.f32 %v2582, %v2745
      %v2747 = vpop.f32.mrf.mxu0
      %2748 = vmatprep.mubr.f32.mxu0 0.0
      %2749 = vmatmul.mubr.f32.gmra.mxu0 %v2237
      %v2750 = vpop.f32.mrf.mxu0
      %v2751 = vadd.f32 %v2582, %v2750
      %v2752 = vpop.f32.mrf.mxu0
      %2753 = vmatprep.mubr.f32.mxu0 0.0
      %2754 = vmatmul.mubr.f32.gmra.mxu0 %v2238
      %v2755 = vpop.f32.mrf.mxu0
      %v2756 = vadd.f32 %v2582, %v2755
      %v2757 = vpop.f32.mrf.mxu0
      %2758 = vmatprep.mubr.f32.mxu0 0.0
      %2759 = vmatmul.mubr.f32.gmra.mxu0 %v2239
      %v2760 = vpop.f32.mrf.mxu0
      %v2761 = vadd.f32 %v2582, %v2760
      %v2762 = vpop.f32.mrf.mxu0
      %2763 = vmatprep.mubr.f32.mxu0 0.0
      %2764 = vmatmul.mubr.f32.gmra.mxu0 %v2240
      %v2765 = vpop.f32.mrf.mxu0
      %v2766 = vadd.f32 %v2582, %v2765
      %v2767 = vpop.f32.mrf.mxu0
      %2768 = vmatprep.mubr.f32.mxu0 0.0
      %2769 = vmatmul.mubr.f32.gmra.mxu0 %v2241
      %v2770 = vpop.f32.mrf.mxu0
      %v2771 = vadd.f32 %v2582, %v2770
      %v2772 = vpop.f32.mrf.mxu0
      %2773 = vmatprep.mubr.f32.mxu0 0.0
      %2774 = vmatmul.mubr.f32.gmra.mxu0 %v2242
      %v2775 = vpop.f32.mrf.mxu0
      %v2776 = vadd.f32 %v2582, %v2775
      %v2777 = vpop.f32.mrf.mxu0
      %2778 = vmatprep.mubr.f32.mxu0 0.0
      %2779 = vmatmul.mubr.f32.gmra.mxu0 %v2243
      %v2780 = vpop.f32.mrf.mxu0
      %v2781 = vadd.f32 %v2582, %v2780
      %v2782 = vpop.f32.mrf.mxu0
      %2783 = vmatprep.mubr.f32.mxu0 0.0
      %2784 = vmatmul.mubr.f32.gmra.mxu0 %v2244
      %v2785 = vpop.f32.mrf.mxu0
      %v2786 = vadd.f32 %v2582, %v2785
      %v2787 = vpop.f32.mrf.mxu0
      %2788 = vmatprep.mubr.f32.mxu0 0.0
      %2789 = vmatmul.mubr.f32.gmra.mxu0 %v2245
      %v2790 = vpop.f32.mrf.mxu0
      %v2791 = vadd.f32 %v2582, %v2790
      %v2792 = vpop.f32.mrf.mxu0
      %2793 = vmatprep.mubr.f32.mxu0 0.0
      %2794 = vmatmul.mubr.f32.gmra.mxu0 %v2246
      %v2795 = vpop.f32.mrf.mxu0
      %v2796 = vadd.f32 %v2582, %v2795
      %v2797 = vpop.f32.mrf.mxu0
      %2798 = vmatprep.mubr.f32.mxu0 0.0
      %2799 = vmatmul.mubr.f32.gmra.mxu0 %v2247
      %v2800 = vpop.f32.mrf.mxu0
      %v2801 = vadd.f32 %v2582, %v2800
      %v2802 = vpop.f32.mrf.mxu0
      %2803 = vmatprep.mubr.f32.mxu0 0.0
      %2804 = vmatmul.mubr.f32.gmra.mxu0 %v2248
      %v2805 = vpop.f32.mrf.mxu0
      %v2806 = vadd.f32 %v2582, %v2805
      %v2807 = vpop.f32.mrf.mxu0
      %2808 = vdwg.mxu0
      %2809 = vst [vmem:[#allocation4] sm:$0xff] %v2651
      %2810 = vst [vmem:[#allocation4 + $0x8] sm:$0xff] %v2656
      %2811 = vst [vmem:[#allocation4 + $0x10] sm:$0xff] %v2661
      %2812 = vst [vmem:[#allocation4 + $0x18] sm:$0xff] %v2666
      %2813 = vst [vmem:[#allocation4 + $0x20] sm:$0xff] %v2671
      %2814 = vst [vmem:[#allocation4 + $0x28] sm:$0xff] %v2676
      %2815 = vst [vmem:[#allocation4 + $0x30] sm:$0xff] %v2681
      %2816 = vst [vmem:[#allocation4 + $0x38] sm:$0xff] %v2686
      %2817 = vst [vmem:[#allocation4 + $0x40] sm:$0xff] %v2691
      %2818 = vst [vmem:[#allocation4 + $0x48] sm:$0xff] %v2696
      %2819 = vst [vmem:[#allocation4 + $0x50] sm:$0xff] %v2701
      %2820 = vst [vmem:[#allocation4 + $0x58] sm:$0xff] %v2706
      %2821 = vst [vmem:[#allocation4 + $0x60] sm:$0xff] %v2711
      %2822 = vst [vmem:[#allocation4 + $0x68] sm:$0xff] %v2716
      %2823 = vst [vmem:[#allocation4 + $0x70] sm:$0xff] %v2721
      %2824 = vst [vmem:[#allocation4 + $0x78] sm:$0xff] %v2726
      %2825 = vst [vmem:[#allocation4 + $0x80] sm:$0xff] %v2731
      %2826 = vst [vmem:[#allocation4 + $0x88] sm:$0xff] %v2736
      %2827 = vst [vmem:[#allocation4 + $0x90] sm:$0xff] %v2741
      %2828 = vst [vmem:[#allocation4 + $0x98] sm:$0xff] %v2746
      %2829 = vst [vmem:[#allocation4 + $0xa0] sm:$0xff] %v2751
      %2830 = vst [vmem:[#allocation4 + $0xa8] sm:$0xff] %v2756
      %2831 = vst [vmem:[#allocation4 + $0xb0] sm:$0xff] %v2761
      %2832 = vst [vmem:[#allocation4 + $0xb8] sm:$0xff] %v2766
      %2833 = vst [vmem:[#allocation4 + $0xc0] sm:$0xff] %v2771
      %2834 = vst [vmem:[#allocation4 + $0xc8] sm:$0xff] %v2776
      %2835 = vst [vmem:[#allocation4 + $0xd0] sm:$0xff] %v2781
      %2836 = vst [vmem:[#allocation4 + $0xd8] sm:$0xff] %v2786
      %2837 = vst [vmem:[#allocation4 + $0xe0] sm:$0xff] %v2791
      %2838 = vst [vmem:[#allocation4 + $0xe8] sm:$0xff] %v2796
      %2839 = vst [vmem:[#allocation4 + $0xf0] sm:$0xff] %v2801
      %2840 = vst [vmem:[#allocation4 + $0xf8] sm:$0xff] %v2806
      %s2841 = sld [smem:[#allocation5]]
      loop: start=0, step=1, limit=4
      $region77: #{_lambda_.7} parent=75 // loop_pre_header
        _
      $region78: #{_lambda_.7} parent=75 // loop_header
        %s2843 = sphi 0, %s2847
        %p2844 = scmp.ge.s32.totalorder %s2843, 4
      $region79: #{_lambda_.7} parent=75 // loop_header_branch
        %2846 = sbr.rel (%p2844) target = $region83
      $region80: #{_lambda_.7} parent=75 // loop_body
        %s2848 = smul.u32 %s2843, 64
        %s2849 = scalar_lea.vmem [#allocation2], %s2848
        %v2850 = vld [vmem:[%s2849] sm:$0xff]
        %v2851 = vld [vmem:[%s2849 + $0x8] sm:$0xff]
        %v2852 = vld [vmem:[%s2849 + $0x10] sm:$0xff]
        %v2853 = vld [vmem:[%s2849 + $0x18] sm:$0xff]
        %v2854 = vld [vmem:[%s2849 + $0x20] sm:$0xff]
        %v2855 = vld [vmem:[%s2849 + $0x28] sm:$0xff]
        %v2856 = vld [vmem:[%s2849 + $0x30] sm:$0xff]
        %v2857 = vld [vmem:[%s2849 + $0x38] sm:$0xff]
        %v2858 = vld [vmem:[%s7] sm:$0xff]
        %v2859 = vld [vmem:[%s7 + $0x8] sm:$0xff]
        %v2860 = vld [vmem:[%s7 + $0x10] sm:$0xff]
        %v2861 = vld [vmem:[%s7 + $0x18] sm:$0xff]
        %v2862 = vld [vmem:[%s7 + $0x20] sm:$0xff]
        %v2863 = vld [vmem:[%s7 + $0x28] sm:$0xff]
        %v2864 = vld [vmem:[%s7 + $0x30] sm:$0xff]
        %v2865 = vld [vmem:[%s7 + $0x38] sm:$0xff]
        %v2866 = vld [vmem:[%s7 + $0x40] sm:$0xff]
        %v2867 = vld [vmem:[%s7 + $0x48] sm:$0xff]
        %v2868 = vld [vmem:[%s7 + $0x50] sm:$0xff]
        %v2869 = vld [vmem:[%s7 + $0x58] sm:$0xff]
        %v2870 = vld [vmem:[%s7 + $0x60] sm:$0xff]
        %v2871 = vld [vmem:[%s7 + $0x68] sm:$0xff]
        %v2872 = vld [vmem:[%s7 + $0x70] sm:$0xff]
        %v2873 = vld [vmem:[%s7 + $0x78] sm:$0xff]
        %v2874 = vld [vmem:[%s10] sm:$0x1]
        %v2876 = vlaneseq
        %v2877 = vshrl.u32 %v2876, 7
        %v2878 = vsub.s32 0, %v2877
        %v2879 = vrot.slane %v2874, %v2878
        %2881 = vmatprep.subr.mxu0 0.0
        %2882 = vmatpush1.msra.mxu0 %v2873
        %2883 = vmatprep.subr.mxu0 0.0
        %2884 = vmatpush1.msra.mxu0 %v2872
        %2885 = vmatprep.subr.mxu0 0.0
        %2886 = vmatpush1.msra.mxu0 %v2871
        %2887 = vmatprep.subr.mxu0 0.0
        %2888 = vmatpush1.msra.mxu0 %v2870
        %2889 = vmatprep.subr.mxu0 0.0
        %2890 = vmatpush1.msra.mxu0 %v2869
        %2891 = vmatprep.subr.mxu0 0.0
        %2892 = vmatpush1.msra.mxu0 %v2868
        %2893 = vmatprep.subr.mxu0 0.0
        %2894 = vmatpush1.msra.mxu0 %v2867
        %2895 = vmatprep.subr.mxu0 0.0
        %2896 = vmatpush1.msra.mxu0 %v2866
        %2897 = vmatprep.subr.mxu0 0.0
        %2898 = vmatpush1.msra.mxu0 %v2865
        %2899 = vmatprep.subr.mxu0 0.0
        %2900 = vmatpush1.msra.mxu0 %v2864
        %2901 = vmatprep.subr.mxu0 0.0
        %2902 = vmatpush1.msra.mxu0 %v2863
        %2903 = vmatprep.subr.mxu0 0.0
        %2904 = vmatpush1.msra.mxu0 %v2862
        %2905 = vmatprep.subr.mxu0 0.0
        %2906 = vmatpush1.msra.mxu0 %v2861
        %2907 = vmatprep.subr.mxu0 0.0
        %2908 = vmatpush1.msra.mxu0 %v2860
        %2909 = vmatprep.subr.mxu0 0.0
        %2910 = vmatpush1.msra.mxu0 %v2859
        %2911 = vmatprep.subr.mxu0 0.0
        %2912 = vmatpush1.msra.mxu0 %v2858
        %2913 = vmatprep.subr.mxu0 0.0
        %2914 = vmatpush2.msra.mxu0 0.0
        %2915 = vmatprep.subr.mxu0 0.0
        %2916 = vmatpush2.msra.mxu0 0.0
        %2917 = vmatprep.subr.mxu0 0.0
        %2918 = vmatpush2.msra.mxu0 0.0
        %2919 = vmatprep.subr.mxu0 0.0
        %2920 = vmatpush2.msra.mxu0 0.0
        %2921 = vmatprep.subr.mxu0 0.0
        %2922 = vmatpush2.msra.mxu0 0.0
        %2923 = vmatprep.subr.mxu0 0.0
        %2924 = vmatpush2.msra.mxu0 0.0
        %2925 = vmatprep.subr.mxu0 0.0
        %2926 = vmatpush2.msra.mxu0 0.0
        %2927 = vmatprep.subr.mxu0 0.0
        %2928 = vmatpush2.msra.mxu0 0.0
        %2929 = vmatprep.subr.mxu0 0.0
        %2930 = vmatpush2.msra.mxu0 0.0
        %2931 = vmatprep.subr.mxu0 0.0
        %2932 = vmatpush2.msra.mxu0 0.0
        %2933 = vmatprep.subr.mxu0 0.0
        %2934 = vmatpush2.msra.mxu0 0.0
        %2935 = vmatprep.subr.mxu0 0.0
        %2936 = vmatpush2.msra.mxu0 0.0
        %2937 = vmatprep.subr.mxu0 0.0
        %2938 = vmatpush2.msra.mxu0 0.0
        %2939 = vmatprep.subr.mxu0 0.0
        %2940 = vmatpush2.msra.mxu0 0.0
        %2941 = vmatprep.subr.mxu0 0.0
        %2942 = vmatpush2.msra.mxu0 0.0
        %2943 = vmatprep.subr.mxu0 0.0
        %2944 = vmatpush2.msra.mxu0 0.0
        %2945 = vmatprep.mubr.f32.mxu0 0.0
        %2946 = vmatmul.mubr.f32.gmra.mxu0 %v2850
        %v2947 = vpop.f32.mrf.mxu0
        %v2948 = vadd.f32 %v2879, %v2947
        %v2949 = vpop.f32.mrf.mxu0
        %2950 = vmatprep.mubr.f32.mxu0 0.0
        %2951 = vmatmul.mubr.f32.gmra.mxu0 %v2851
        %v2952 = vpop.f32.mrf.mxu0
        %v2953 = vadd.f32 %v2879, %v2952
        %v2954 = vpop.f32.mrf.mxu0
        %2955 = vmatprep.mubr.f32.mxu0 0.0
        %2956 = vmatmul.mubr.f32.gmra.mxu0 %v2852
        %v2957 = vpop.f32.mrf.mxu0
        %v2958 = vadd.f32 %v2879, %v2957
        %v2959 = vpop.f32.mrf.mxu0
        %2960 = vmatprep.mubr.f32.mxu0 0.0
        %2961 = vmatmul.mubr.f32.gmra.mxu0 %v2853
        %v2962 = vpop.f32.mrf.mxu0
        %v2963 = vadd.f32 %v2879, %v2962
        %v2964 = vpop.f32.mrf.mxu0
        %2965 = vmatprep.mubr.f32.mxu0 0.0
        %2966 = vmatmul.mubr.f32.gmra.mxu0 %v2854
        %v2967 = vpop.f32.mrf.mxu0
        %v2968 = vadd.f32 %v2879, %v2967
        %v2969 = vpop.f32.mrf.mxu0
        %2970 = vmatprep.mubr.f32.mxu0 0.0
        %2971 = vmatmul.mubr.f32.gmra.mxu0 %v2855
        %v2972 = vpop.f32.mrf.mxu0
        %v2973 = vadd.f32 %v2879, %v2972
        %v2974 = vpop.f32.mrf.mxu0
        %2975 = vmatprep.mubr.f32.mxu0 0.0
        %2976 = vmatmul.mubr.f32.gmra.mxu0 %v2856
        %v2977 = vpop.f32.mrf.mxu0
        %v2978 = vadd.f32 %v2879, %v2977
        %v2979 = vpop.f32.mrf.mxu0
        %2980 = vmatprep.mubr.f32.mxu0 0.0
        %2981 = vmatmul.mubr.f32.gmra.mxu0 %v2857
        %v2982 = vpop.f32.mrf.mxu0
        %v2983 = vadd.f32 %v2879, %v2982
        %v2984 = vpop.f32.mrf.mxu0
        %2985 = vdwg.mxu0
        %v2986 = vld [vmem:[#allocation3] sm:$0xff]
        %v2987 = vld [vmem:[#allocation3 + $0x8] sm:$0xff]
        %v2988 = vld [vmem:[#allocation3 + $0x10] sm:$0xff]
        %v2989 = vld [vmem:[#allocation3 + $0x18] sm:$0xff]
        %v2990 = vld [vmem:[#allocation3 + $0x20] sm:$0xff]
        %v2991 = vld [vmem:[#allocation3 + $0x28] sm:$0xff]
        %v2992 = vld [vmem:[#allocation3 + $0x30] sm:$0xff]
        %v2993 = vld [vmem:[#allocation3 + $0x38] sm:$0xff]
        %v2994 = vld [vmem:[#allocation3 + $0x40] sm:$0xff]
        %v2995 = vld [vmem:[#allocation3 + $0x48] sm:$0xff]
        %v2996 = vld [vmem:[#allocation3 + $0x50] sm:$0xff]
        %v2997 = vld [vmem:[#allocation3 + $0x58] sm:$0xff]
        %v2998 = vld [vmem:[#allocation3 + $0x60] sm:$0xff]
        %v2999 = vld [vmem:[#allocation3 + $0x68] sm:$0xff]
        %v3000 = vld [vmem:[#allocation3 + $0x70] sm:$0xff]
        %v3001 = vld [vmem:[#allocation3 + $0x78] sm:$0xff]
        %v3002 = vld [vmem:[#allocation3 + $0x80] sm:$0xff]
        %v3003 = vld [vmem:[#allocation3 + $0x88] sm:$0xff]
        %v3004 = vld [vmem:[#allocation3 + $0x90] sm:$0xff]
        %v3005 = vld [vmem:[#allocation3 + $0x98] sm:$0xff]
        %v3006 = vld [vmem:[#allocation3 + $0xa0] sm:$0xff]
        %v3007 = vld [vmem:[#allocation3 + $0xa8] sm:$0xff]
        %v3008 = vld [vmem:[#allocation3 + $0xb0] sm:$0xff]
        %v3009 = vld [vmem:[#allocation3 + $0xb8] sm:$0xff]
        %v3010 = vld [vmem:[#allocation3 + $0xc0] sm:$0xff]
        %v3011 = vld [vmem:[#allocation3 + $0xc8] sm:$0xff]
        %v3012 = vld [vmem:[#allocation3 + $0xd0] sm:$0xff]
        %v3013 = vld [vmem:[#allocation3 + $0xd8] sm:$0xff]
        %v3014 = vld [vmem:[#allocation3 + $0xe0] sm:$0xff]
        %v3015 = vld [vmem:[#allocation3 + $0xe8] sm:$0xff]
        %v3016 = vld [vmem:[#allocation3 + $0xf0] sm:$0xff]
        %v3017 = vld [vmem:[#allocation3 + $0xf8] sm:$0xff]
        %3018 = vmatprep.subr.mxu0 0.0
        %3019 = vmatpush1.xpose.msra.mxu0 %v3001
        %3020 = vmatprep.subr.mxu0 0.0
        %3021 = vmatpush1.xpose.msra.mxu0 %v3000
        %3022 = vmatprep.subr.mxu0 0.0
        %3023 = vmatpush1.xpose.msra.mxu0 %v2999
        %3024 = vmatprep.subr.mxu0 0.0
        %3025 = vmatpush1.xpose.msra.mxu0 %v2998
        %3026 = vmatprep.subr.mxu0 0.0
        %3027 = vmatpush1.xpose.msra.mxu0 %v2997
        %3028 = vmatprep.subr.mxu0 0.0
        %3029 = vmatpush1.xpose.msra.mxu0 %v2996
        %3030 = vmatprep.subr.mxu0 0.0
        %3031 = vmatpush1.xpose.msra.mxu0 %v2995
        %3032 = vmatprep.subr.mxu0 0.0
        %3033 = vmatpush1.xpose.msra.mxu0 %v2994
        %3034 = vmatprep.subr.mxu0 0.0
        %3035 = vmatpush1.xpose.msra.mxu0 %v2993
        %3036 = vmatprep.subr.mxu0 0.0
        %3037 = vmatpush1.xpose.msra.mxu0 %v2992
        %3038 = vmatprep.subr.mxu0 0.0
        %3039 = vmatpush1.xpose.msra.mxu0 %v2991
        %3040 = vmatprep.subr.mxu0 0.0
        %3041 = vmatpush1.xpose.msra.mxu0 %v2990
        %3042 = vmatprep.subr.mxu0 0.0
        %3043 = vmatpush1.xpose.msra.mxu0 %v2989
        %3044 = vmatprep.subr.mxu0 0.0
        %3045 = vmatpush1.xpose.msra.mxu0 %v2988
        %3046 = vmatprep.subr.mxu0 0.0
        %3047 = vmatpush1.xpose.msra.mxu0 %v2987
        %3048 = vmatprep.subr.mxu0 0.0
        %3049 = vmatpush1.xpose.msra.mxu0 %v2986
        %3050 = vmatprep.subr.mxu0 0.0
        %3051 = vmatpush2.xpose.msra.mxu0 %v3017
        %3052 = vmatprep.subr.mxu0 0.0
        %3053 = vmatpush2.xpose.msra.mxu0 %v3016
        %3054 = vmatprep.subr.mxu0 0.0
        %3055 = vmatpush2.xpose.msra.mxu0 %v3015
        %3056 = vmatprep.subr.mxu0 0.0
        %3057 = vmatpush2.xpose.msra.mxu0 %v3014
        %3058 = vmatprep.subr.mxu0 0.0
        %3059 = vmatpush2.xpose.msra.mxu0 %v3013
        %3060 = vmatprep.subr.mxu0 0.0
        %3061 = vmatpush2.xpose.msra.mxu0 %v3012
        %3062 = vmatprep.subr.mxu0 0.0
        %3063 = vmatpush2.xpose.msra.mxu0 %v3011
        %3064 = vmatprep.subr.mxu0 0.0
        %3065 = vmatpush2.xpose.msra.mxu0 %v3010
        %3066 = vmatprep.subr.mxu0 0.0
        %3067 = vmatpush2.xpose.msra.mxu0 %v3009
        %3068 = vmatprep.subr.mxu0 0.0
        %3069 = vmatpush2.xpose.msra.mxu0 %v3008
        %3070 = vmatprep.subr.mxu0 0.0
        %3071 = vmatpush2.xpose.msra.mxu0 %v3007
        %3072 = vmatprep.subr.mxu0 0.0
        %3073 = vmatpush2.xpose.msra.mxu0 %v3006
        %3074 = vmatprep.subr.mxu0 0.0
        %3075 = vmatpush2.xpose.msra.mxu0 %v3005
        %3076 = vmatprep.subr.mxu0 0.0
        %3077 = vmatpush2.xpose.msra.mxu0 %v3004
        %3078 = vmatprep.subr.mxu0 0.0
        %3079 = vmatpush2.xpose.msra.mxu0 %v3003
        %3080 = vmatprep.subr.mxu0 0.0
        %3081 = vmatpush2.xpose.msra.mxu0 %v3002
        %3082 = vmatprep.mubr.f32.mxu0 0.0
        %3083 = vmatmul.mubr.f32.gmra.mxu0 %v2948
        %v3084 = vpop.f32.mrf.mxu0
        %v3085 = vadd.f32 0.0, %v3084
        %v3086 = vpop.f32.mrf.mxu0
        %v3087 = vadd.f32 0.0, %v3086
        %3088 = vmatprep.mubr.f32.mxu0 0.0
        %3089 = vmatmul.mubr.f32.gmra.mxu0 %v2953
        %v3090 = vpop.f32.mrf.mxu0
        %v3091 = vadd.f32 0.0, %v3090
        %v3092 = vpop.f32.mrf.mxu0
        %v3093 = vadd.f32 0.0, %v3092
        %3094 = vmatprep.mubr.f32.mxu0 0.0
        %3095 = vmatmul.mubr.f32.gmra.mxu0 %v2958
        %v3096 = vpop.f32.mrf.mxu0
        %v3097 = vadd.f32 0.0, %v3096
        %v3098 = vpop.f32.mrf.mxu0
        %v3099 = vadd.f32 0.0, %v3098
        %3100 = vmatprep.mubr.f32.mxu0 0.0
        %3101 = vmatmul.mubr.f32.gmra.mxu0 %v2963
        %v3102 = vpop.f32.mrf.mxu0
        %v3103 = vadd.f32 0.0, %v3102
        %v3104 = vpop.f32.mrf.mxu0
        %v3105 = vadd.f32 0.0, %v3104
        %3106 = vmatprep.mubr.f32.mxu0 0.0
        %3107 = vmatmul.mubr.f32.gmra.mxu0 %v2968
        %v3108 = vpop.f32.mrf.mxu0
        %v3109 = vadd.f32 0.0, %v3108
        %v3110 = vpop.f32.mrf.mxu0
        %v3111 = vadd.f32 0.0, %v3110
        %3112 = vmatprep.mubr.f32.mxu0 0.0
        %3113 = vmatmul.mubr.f32.gmra.mxu0 %v2973
        %v3114 = vpop.f32.mrf.mxu0
        %v3115 = vadd.f32 0.0, %v3114
        %v3116 = vpop.f32.mrf.mxu0
        %v3117 = vadd.f32 0.0, %v3116
        %3118 = vmatprep.mubr.f32.mxu0 0.0
        %3119 = vmatmul.mubr.f32.gmra.mxu0 %v2978
        %v3120 = vpop.f32.mrf.mxu0
        %v3121 = vadd.f32 0.0, %v3120
        %v3122 = vpop.f32.mrf.mxu0
        %v3123 = vadd.f32 0.0, %v3122
        %3124 = vmatprep.mubr.f32.mxu0 0.0
        %3125 = vmatmul.mubr.f32.gmra.mxu0 %v2983
        %v3126 = vpop.f32.mrf.mxu0
        %v3127 = vadd.f32 0.0, %v3126
        %v3128 = vpop.f32.mrf.mxu0
        %v3129 = vadd.f32 0.0, %v3128
        %3130 = vdwg.mxu0
        %v3131 = vmax.f32 %v3085, %v3087
        %3132 = vmax.xlane.f32.xlu0 %v3131
        %v3133 = vpop.xlane.xlu0 %3132
        %v3134 = vmax.f32 %v3091, %v3093
        %3135 = vmax.xlane.f32.xlu0 %v3134
        %v3136 = vpop.xlane.xlu0 %3135
        %v3137 = vmax.f32 %v3097, %v3099
        %3138 = vmax.xlane.f32.xlu0 %v3137
        %v3139 = vpop.xlane.xlu0 %3138
        %v3140 = vmax.f32 %v3103, %v3105
        %3141 = vmax.xlane.f32.xlu0 %v3140
        %v3142 = vpop.xlane.xlu0 %3141
        %v3143 = vmax.f32 %v3109, %v3111
        %3144 = vmax.xlane.f32.xlu0 %v3143
        %v3145 = vpop.xlane.xlu0 %3144
        %v3146 = vmax.f32 %v3115, %v3117
        %3147 = vmax.xlane.f32.xlu0 %v3146
        %v3148 = vpop.xlane.xlu0 %3147
        %v3149 = vmax.f32 %v3121, %v3123
        %3150 = vmax.xlane.f32.xlu0 %v3149
        %v3151 = vpop.xlane.xlu0 %3150
        %v3152 = vmax.f32 %v3127, %v3129
        %3153 = vmax.xlane.f32.xlu0 %v3152
        %v3154 = vpop.xlane.xlu0 %3153
        %v3155 = vsub.f32 %v3085, %v3133
        %v3156 = vsub.f32 %v3087, %v3133
        %v3157 = vsub.f32 %v3091, %v3136
        %v3158 = vsub.f32 %v3093, %v3136
        %v3159 = vsub.f32 %v3097, %v3139
        %v3160 = vsub.f32 %v3099, %v3139
        %v3161 = vsub.f32 %v3103, %v3142
        %v3162 = vsub.f32 %v3105, %v3142
        %v3163 = vsub.f32 %v3109, %v3145
        %v3164 = vsub.f32 %v3111, %v3145
        %v3165 = vsub.f32 %v3115, %v3148
        %v3166 = vsub.f32 %v3117, %v3148
        %v3167 = vsub.f32 %v3121, %v3151
        %v3168 = vsub.f32 %v3123, %v3151
        %v3169 = vsub.f32 %v3127, %v3154
        %v3170 = vsub.f32 %v3129, %v3154
        %v3171 = vmul.f32 %v3155, 1.442695
        %v3172 = vpow.pop %v3171
        %v3173 = vmul.f32 %v3156, 1.442695
        %v3174 = vpow.pop %v3173
        %v3175 = vmul.f32 %v3157, 1.442695
        %v3176 = vpow.pop %v3175
        %v3177 = vmul.f32 %v3158, 1.442695
        %v3178 = vpow.pop %v3177
        %v3179 = vmul.f32 %v3159, 1.442695
        %v3180 = vpow.pop %v3179
        %v3181 = vmul.f32 %v3160, 1.442695
        %v3182 = vpow.pop %v3181
        %v3183 = vmul.f32 %v3161, 1.442695
        %v3184 = vpow.pop %v3183
        %v3185 = vmul.f32 %v3162, 1.442695
        %v3186 = vpow.pop %v3185
        %v3187 = vmul.f32 %v3163, 1.442695
        %v3188 = vpow.pop %v3187
        %v3189 = vmul.f32 %v3164, 1.442695
        %v3190 = vpow.pop %v3189
        %v3191 = vmul.f32 %v3165, 1.442695
        %v3192 = vpow.pop %v3191
        %v3193 = vmul.f32 %v3166, 1.442695
        %v3194 = vpow.pop %v3193
        %v3195 = vmul.f32 %v3167, 1.442695
        %v3196 = vpow.pop %v3195
        %v3197 = vmul.f32 %v3168, 1.442695
        %v3198 = vpow.pop %v3197
        %v3199 = vmul.f32 %v3169, 1.442695
        %v3200 = vpow.pop %v3199
        %v3201 = vmul.f32 %v3170, 1.442695
        %v3202 = vpow.pop %v3201
        %v3203 = vld [vmem:[#allocation4] sm:$0xff]
        %v3204 = vld [vmem:[#allocation4 + $0x8] sm:$0xff]
        %v3205 = vld [vmem:[#allocation4 + $0x10] sm:$0xff]
        %v3206 = vld [vmem:[#allocation4 + $0x18] sm:$0xff]
        %v3207 = vld [vmem:[#allocation4 + $0x20] sm:$0xff]
        %v3208 = vld [vmem:[#allocation4 + $0x28] sm:$0xff]
        %v3209 = vld [vmem:[#allocation4 + $0x30] sm:$0xff]
        %v3210 = vld [vmem:[#allocation4 + $0x38] sm:$0xff]
        %v3211 = vld [vmem:[#allocation4 + $0x40] sm:$0xff]
        %v3212 = vld [vmem:[#allocation4 + $0x48] sm:$0xff]
        %v3213 = vld [vmem:[#allocation4 + $0x50] sm:$0xff]
        %v3214 = vld [vmem:[#allocation4 + $0x58] sm:$0xff]
        %v3215 = vld [vmem:[#allocation4 + $0x60] sm:$0xff]
        %v3216 = vld [vmem:[#allocation4 + $0x68] sm:$0xff]
        %v3217 = vld [vmem:[#allocation4 + $0x70] sm:$0xff]
        %v3218 = vld [vmem:[#allocation4 + $0x78] sm:$0xff]
        %v3219 = vld [vmem:[#allocation4 + $0x80] sm:$0xff]
        %v3220 = vld [vmem:[#allocation4 + $0x88] sm:$0xff]
        %v3221 = vld [vmem:[#allocation4 + $0x90] sm:$0xff]
        %v3222 = vld [vmem:[#allocation4 + $0x98] sm:$0xff]
        %v3223 = vld [vmem:[#allocation4 + $0xa0] sm:$0xff]
        %v3224 = vld [vmem:[#allocation4 + $0xa8] sm:$0xff]
        %v3225 = vld [vmem:[#allocation4 + $0xb0] sm:$0xff]
        %v3226 = vld [vmem:[#allocation4 + $0xb8] sm:$0xff]
        %v3227 = vld [vmem:[#allocation4 + $0xc0] sm:$0xff]
        %v3228 = vld [vmem:[#allocation4 + $0xc8] sm:$0xff]
        %v3229 = vld [vmem:[#allocation4 + $0xd0] sm:$0xff]
        %v3230 = vld [vmem:[#allocation4 + $0xd8] sm:$0xff]
        %v3231 = vld [vmem:[#allocation4 + $0xe0] sm:$0xff]
        %v3232 = vld [vmem:[#allocation4 + $0xe8] sm:$0xff]
        %v3233 = vld [vmem:[#allocation4 + $0xf0] sm:$0xff]
        %v3234 = vld [vmem:[#allocation4 + $0xf8] sm:$0xff]
        %3235 = vmatprep.subr.mxu0 0.0
        %3236 = vmatpush1.msra.mxu0 %v3218
        %3237 = vmatprep.subr.mxu0 0.0
        %3238 = vmatpush1.msra.mxu0 %v3217
        %3239 = vmatprep.subr.mxu0 0.0
        %3240 = vmatpush1.msra.mxu0 %v3216
        %3241 = vmatprep.subr.mxu0 0.0
        %3242 = vmatpush1.msra.mxu0 %v3215
        %3243 = vmatprep.subr.mxu0 0.0
        %3244 = vmatpush1.msra.mxu0 %v3214
        %3245 = vmatprep.subr.mxu0 0.0
        %3246 = vmatpush1.msra.mxu0 %v3213
        %3247 = vmatprep.subr.mxu0 0.0
        %3248 = vmatpush1.msra.mxu0 %v3212
        %3249 = vmatprep.subr.mxu0 0.0
        %3250 = vmatpush1.msra.mxu0 %v3211
        %3251 = vmatprep.subr.mxu0 0.0
        %3252 = vmatpush1.msra.mxu0 %v3210
        %3253 = vmatprep.subr.mxu0 0.0
        %3254 = vmatpush1.msra.mxu0 %v3209
        %3255 = vmatprep.subr.mxu0 0.0
        %3256 = vmatpush1.msra.mxu0 %v3208
        %3257 = vmatprep.subr.mxu0 0.0
        %3258 = vmatpush1.msra.mxu0 %v3207
        %3259 = vmatprep.subr.mxu0 0.0
        %3260 = vmatpush1.msra.mxu0 %v3206
        %3261 = vmatprep.subr.mxu0 0.0
        %3262 = vmatpush1.msra.mxu0 %v3205
        %3263 = vmatprep.subr.mxu0 0.0
        %3264 = vmatpush1.msra.mxu0 %v3204
        %3265 = vmatprep.subr.mxu0 0.0
        %3266 = vmatpush1.msra.mxu0 %v3203
        %3267 = vmatprep.subr.mxu0 0.0
        %3268 = vmatpush2.msra.mxu0 %v3234
        %3269 = vmatprep.subr.mxu0 0.0
        %3270 = vmatpush2.msra.mxu0 %v3233
        %3271 = vmatprep.subr.mxu0 0.0
        %3272 = vmatpush2.msra.mxu0 %v3232
        %3273 = vmatprep.subr.mxu0 0.0
        %3274 = vmatpush2.msra.mxu0 %v3231
        %3275 = vmatprep.subr.mxu0 0.0
        %3276 = vmatpush2.msra.mxu0 %v3230
        %3277 = vmatprep.subr.mxu0 0.0
        %3278 = vmatpush2.msra.mxu0 %v3229
        %3279 = vmatprep.subr.mxu0 0.0
        %3280 = vmatpush2.msra.mxu0 %v3228
        %3281 = vmatprep.subr.mxu0 0.0
        %3282 = vmatpush2.msra.mxu0 %v3227
        %3283 = vmatprep.subr.mxu0 0.0
        %3284 = vmatpush2.msra.mxu0 %v3226
        %3285 = vmatprep.subr.mxu0 0.0
        %3286 = vmatpush2.msra.mxu0 %v3225
        %3287 = vmatprep.subr.mxu0 0.0
        %3288 = vmatpush2.msra.mxu0 %v3224
        %3289 = vmatprep.subr.mxu0 0.0
        %3290 = vmatpush2.msra.mxu0 %v3223
        %3291 = vmatprep.subr.mxu0 0.0
        %3292 = vmatpush2.msra.mxu0 %v3222
        %3293 = vmatprep.subr.mxu0 0.0
        %3294 = vmatpush2.msra.mxu0 %v3221
        %3295 = vmatprep.subr.mxu0 0.0
        %3296 = vmatpush2.msra.mxu0 %v3220
        %3297 = vmatprep.subr.mxu0 0.0
        %3298 = vmatpush2.msra.mxu0 %v3219
        %3299 = vmatprep.mubr.f32.mxu0 %v3174
        %3300 = vmatmul.mubr.f32.gmra.mxu0 %v3172
        %v3301 = vpop.f32.mrf.mxu0
        %v3302 = vadd.f32 0.0, %v3301
        %v3303 = vpop.f32.mrf.mxu0
        %3304 = vmatprep.mubr.f32.mxu0 %v3178
        %3305 = vmatmul.mubr.f32.gmra.mxu0 %v3176
        %v3306 = vpop.f32.mrf.mxu0
        %v3307 = vadd.f32 0.0, %v3306
        %v3308 = vpop.f32.mrf.mxu0
        %3309 = vmatprep.mubr.f32.mxu0 %v3182
        %3310 = vmatmul.mubr.f32.gmra.mxu0 %v3180
        %v3311 = vpop.f32.mrf.mxu0
        %v3312 = vadd.f32 0.0, %v3311
        %v3313 = vpop.f32.mrf.mxu0
        %3314 = vmatprep.mubr.f32.mxu0 %v3186
        %3315 = vmatmul.mubr.f32.gmra.mxu0 %v3184
        %v3316 = vpop.f32.mrf.mxu0
        %v3317 = vadd.f32 0.0, %v3316
        %v3318 = vpop.f32.mrf.mxu0
        %3319 = vmatprep.mubr.f32.mxu0 %v3190
        %3320 = vmatmul.mubr.f32.gmra.mxu0 %v3188
        %v3321 = vpop.f32.mrf.mxu0
        %v3322 = vadd.f32 0.0, %v3321
        %v3323 = vpop.f32.mrf.mxu0
        %3324 = vmatprep.mubr.f32.mxu0 %v3194
        %3325 = vmatmul.mubr.f32.gmra.mxu0 %v3192
        %v3326 = vpop.f32.mrf.mxu0
        %v3327 = vadd.f32 0.0, %v3326
        %v3328 = vpop.f32.mrf.mxu0
        %3329 = vmatprep.mubr.f32.mxu0 %v3198
        %3330 = vmatmul.mubr.f32.gmra.mxu0 %v3196
        %v3331 = vpop.f32.mrf.mxu0
        %v3332 = vadd.f32 0.0, %v3331
        %v3333 = vpop.f32.mrf.mxu0
        %3334 = vmatprep.mubr.f32.mxu0 %v3202
        %3335 = vmatmul.mubr.f32.gmra.mxu0 %v3200
        %v3336 = vpop.f32.mrf.mxu0
        %v3337 = vadd.f32 0.0, %v3336
        %v3338 = vpop.f32.mrf.mxu0
        %3339 = vdwg.mxu0
        %v3340 = vadd.f32 %v3172, %v3174
        %3341 = vadd.xlane.f32.xlu0 %v3340
        %v3342 = vpop.xlane.xlu0 %3341
        %v3343 = vadd.f32 %v3176, %v3178
        %3344 = vadd.xlane.f32.xlu0 %v3343
        %v3345 = vpop.xlane.xlu0 %3344
        %v3346 = vadd.f32 %v3180, %v3182
        %3347 = vadd.xlane.f32.xlu0 %v3346
        %v3348 = vpop.xlane.xlu0 %3347
        %v3349 = vadd.f32 %v3184, %v3186
        %3350 = vadd.xlane.f32.xlu0 %v3349
        %v3351 = vpop.xlane.xlu0 %3350
        %v3352 = vadd.f32 %v3188, %v3190
        %3353 = vadd.xlane.f32.xlu0 %v3352
        %v3354 = vpop.xlane.xlu0 %3353
        %v3355 = vadd.f32 %v3192, %v3194
        %3356 = vadd.xlane.f32.xlu0 %v3355
        %v3357 = vpop.xlane.xlu0 %3356
        %v3358 = vadd.f32 %v3196, %v3198
        %3359 = vadd.xlane.f32.xlu0 %v3358
        %v3360 = vpop.xlane.xlu0 %3359
        %v3361 = vadd.f32 %v3200, %v3202
        %3362 = vadd.xlane.f32.xlu0 %v3361
        %v3363 = vpop.xlane.xlu0 %3362
        %v3364 = vrcp.pop %v3342
        %v3365 = vmul.f32 %v3302, %v3364
        %v3366 = vrcp.pop %v3345
        %v3367 = vmul.f32 %v3307, %v3366
        %v3368 = vrcp.pop %v3348
        %v3369 = vmul.f32 %v3312, %v3368
        %v3370 = vrcp.pop %v3351
        %v3371 = vmul.f32 %v3317, %v3370
        %v3372 = vrcp.pop %v3354
        %v3373 = vmul.f32 %v3322, %v3372
        %v3374 = vrcp.pop %v3357
        %v3375 = vmul.f32 %v3327, %v3374
        %v3376 = vrcp.pop %v3360
        %v3377 = vmul.f32 %v3332, %v3376
        %v3378 = vrcp.pop %v3363
        %v3379 = vmul.f32 %v3337, %v3378
        %v3380 = vstv %s2841
        %v3381 = vmul.f32 %v3380, %v3365
        %v3382 = vmul.f32 %v3380, %v3367
        %v3383 = vmul.f32 %v3380, %v3369
        %v3384 = vmul.f32 %v3380, %v3371
        %v3385 = vmul.f32 %v3380, %v3373
        %v3386 = vmul.f32 %v3380, %v3375
        %v3387 = vmul.f32 %v3380, %v3377
        %v3388 = vmul.f32 %v3380, %v3379
        %v3389 = vadd.f32 %v3381, %v2850
        %v3390 = vadd.f32 %v3382, %v2851
        %v3391 = vadd.f32 %v3383, %v2852
        %v3392 = vadd.f32 %v3384, %v2853
        %v3393 = vadd.f32 %v3385, %v2854
        %v3394 = vadd.f32 %v3386, %v2855
        %v3395 = vadd.f32 %v3387, %v2856
        %v3396 = vadd.f32 %v3388, %v2857
        %s3397 = scalar_lea.vmem %s488, %s2848
        %3398 = vst [vmem:[%s3397] sm:$0xff] %v3389
        %3399 = vst [vmem:[%s3397 + $0x8] sm:$0xff] %v3390
        %3400 = vst [vmem:[%s3397 + $0x10] sm:$0xff] %v3391
        %3401 = vst [vmem:[%s3397 + $0x18] sm:$0xff] %v3392
        %3402 = vst [vmem:[%s3397 + $0x20] sm:$0xff] %v3393
        %3403 = vst [vmem:[%s3397 + $0x28] sm:$0xff] %v3394
        %3404 = vst [vmem:[%s3397 + $0x30] sm:$0xff] %v3395
        %3405 = vst [vmem:[%s3397 + $0x38] sm:$0xff] %v3396
      $region81: #{_lambda_.7} parent=75 // loop_footer
        %s2847 = sadd.s32 1, %s2843
      $region82: #{_lambda_.7} parent=75 // loop_footer_branch
        %2842 = sbr.rel target = $region78
      $region83: #{_lambda_.7} parent=75 // loop_exit
        _
      %p3406 = scmp.lt.s32.totalorder %s26, 1
      %s3407 = scalar_select %p3406, %s26, 1
      %s3408 = smul.addr %s3407, 32
      %s3409 = smul.addr %s3408, 8
      %s3410 = scalar_lea.vmem %s14, %s3409
      // Predicated region
      $region84: #{_lambda_.7} parent=75 // pred_check
        %p3411 = pneg %p348
      $region85: #{_lambda_.7} parent=75 // pred_check_branch
        %3413 = sbr.rel (%p3411) target = $region87
      $region86: #{_lambda_.7} parent=75 // pred_region
        _
      $region87: #{_lambda_.7} parent=75 // pred_fallthru
        _
    $region76: #{_lambda_.7} parent=5 // pred_fallthru
      _
    %p3414 = scmp.le.s32.totalorder 2, %s21
    // Predicated region
    $region88: #{_lambda_.7} parent=5 // pred_check
      %p3415 = pneg %p3414
    $region89: #{_lambda_.7} parent=5 // pred_check_branch
      %3417 = sbr.rel (%p3415) target = $region91
    $region90: #{_lambda_.7} parent=5 // pred_region
      %s3418 = ssub.s32 %s21, 2
      // Predicated region
      $region92: #{_lambda_.7} parent=90 // pred_check
        %p3419 = pneg %p354
      $region93: #{_lambda_.7} parent=90 // pred_check_branch
        %3421 = sbr.rel (%p3419) target = $region95
      $region94: #{_lambda_.7} parent=90 // pred_region
        %p3422 = scmp.lt.s32.totalorder %s27, 1
        %s3423 = scalar_select %p3422, %s27, 1
        %s3424 = smul.addr %s3423, 32
        %s3425 = smul.addr %s3424, 8
        %s3426 = scalar_lea.vmem %s14, %s3425
      $region95: #{_lambda_.7} parent=90 // pred_fallthru
        _
    $region91: #{_lambda_.7} parent=5 // pred_fallthru
      _
  $region6: #{_lambda_.7} parent=0 // loop_footer
    %s25 = sadd.s32 1, %s21
  $region7: #{_lambda_.7} parent=0 // loop_footer_branch
    %20 = sbr.rel target = $region3
  $region8: #{_lambda_.7} parent=0 // loop_exit
    _

</llo_original>
